<compile_context>
chip_gen: v7x
topology: tpu7x:2x2x1
jax: 0.10.0
libtpu: 0.0.40
codegen_flags: <defaults>
</compile_context>

<pallas_src>
import functools

import jax
import jax.numpy as jnp
from jax.experimental import pallas as pl
from jax.experimental.pallas import tpu as pltpu

BN_EPS = 1e-5


# ---------------------------------------------------------------------------
# Kernel 1: global average pool, streamed over (batch, channel) tiles.
# ---------------------------------------------------------------------------
def _gap_kernel(x_ref, gfeat_ref, *, inv_hw):
    # x_ref:    (tb, tc, HW) native dtype (f32 or bf16)
    # gfeat_ref:(tb, tc)     f32
    x = x_ref[...].astype(jnp.float32)          # upcast per block, accumulate in f32
    gfeat_ref[...] = jnp.sum(x, axis=-1) * inv_hw


def _pick_tiles(B, C, HW, itemsize, max_block_bytes=4 * 1024 * 1024):
    """Pick (tb, tc) so that:
       - tc is a multiple of 128 dividing C (or C itself when C % 128 != 0),
       - tb is a multiple of 8 dividing B (or B itself)  -> lane/sublane-dense
         output blocks,
       - the double-buffered input block (tb * tc * HW * itemsize) stays a few
         MiB so it fits scoped VMEM on v5e/v6e and v7x's smaller 64 MiB VMEM.
    """
    if C % 128 == 0:
        c_tiles = [t for t in range(128, C + 1, 128) if C % t == 0]
    else:
        c_tiles = [C]
    b_tiles = sorted({B} | {t for t in range(8, B + 1, 8) if B % t == 0})

    best = (min(b_tiles), min(c_tiles))          # fallback: smallest legal block
    best_elems = best[0] * best[1]
    for tb in b_tiles:
        for tc in c_tiles:
            if tb * tc * HW * itemsize <= max_block_bytes and tb * tc > best_elems:
                best, best_elems = (tb, tc), tb * tc
    return best


def _global_avg_pool(x_nchw):
    B, C, H, W = x_nchw.shape
    HW = H * W
    x = x_nchw.reshape(B, C, HW)       # free reshape — no HBM transpose/rewrite
    tb, tc = _pick_tiles(B, C, HW, x.dtype.itemsize)
    return pl.pallas_call(
        functools.partial(_gap_kernel, inv_hw=1.0 / float(HW)),
        out_shape=jax.ShapeDtypeStruct((B, C), jnp.float32),
        grid_spec=pltpu.PrefetchScalarGridSpec(
            num_scalar_prefetch=0,
            grid=(B // tb, C // tc),
            in_specs=[pl.BlockSpec((tb, tc, HW), lambda b, c: (b, c, 0))],
            out_specs=pl.BlockSpec((tb, tc), lambda b, c: (b, c)),
        ),
        compiler_params=pltpu.CompilerParams(
            dimension_semantics=("parallel", "parallel")),
    )(x)


# ---------------------------------------------------------------------------
# Kernel 2a: BN (batch stats) / identity + Linear classifier  (training path)
# ---------------------------------------------------------------------------
def _bn_classifier_kernel(gfeat_ref, w_ref, gamma_ref, beta_ref, cls_ref, *,
                          apply_bn, eps):
    g = gfeat_ref[...]                                         # (B, C) f32
    if apply_bn:                                               # neck == 'bnneck'
        mu = jnp.mean(g, axis=0, keepdims=True)
        var = jnp.mean((g - mu) ** 2, axis=0, keepdims=True)   # biased, as PyTorch BN
        feat = (g - mu) * jax.lax.rsqrt(var + eps) * gamma_ref[...] + beta_ref[...]
    else:                                                      # neck == 'no'
        feat = g
    cls_ref[...] = jnp.dot(feat, w_ref[...], preferred_element_type=jnp.float32)


# ---------------------------------------------------------------------------
# Kernel 2b: BN with running statistics  (eval, neck_feat == 'after')
# ---------------------------------------------------------------------------
def _bn_eval_kernel(gfeat_ref, gamma_ref, beta_ref, mean_ref, var_ref,
                    feat_ref, *, eps):
    g = gfeat_ref[...]
    feat_ref[...] = ((g - mean_ref[...]) * jax.lax.rsqrt(var_ref[...] + eps)
                     * gamma_ref[...] + beta_ref[...])


_VMEM = pl.BlockSpec(memory_space=pltpu.MemorySpace.VMEM)


@functools.partial(jax.jit, static_argnames=("training", "neck", "neck_feat"))
def backbone_forward(x_nchw, w_classifier, bn_gamma, bn_beta,
                     bn_running_mean, bn_running_var,
                     training=True, neck="bnneck", neck_feat="before"):
    """Backbone.forward after self.base(x).

    Returns:
      training                      -> (cls_score, global_feat)
      eval  & neck_feat == 'after'  -> feat (BN'd with running stats)
      eval  & otherwise             -> global_feat
    """
    B, C, H, W = x_nchw.shape

    global_feat = _global_avg_pool(x_nchw)                     # (B, C) f32

    gamma = bn_gamma.reshape(1, C).astype(jnp.float32)
    beta = bn_beta.reshape(1, C).astype(jnp.float32)

    if training:
        # TODO(synk): PyTorch BN also updates running_mean/var (momentum) as a
        #             training side-effect; those updated buffers are not returned.
        NC = w_classifier.shape[0]                             # Linear weight (NC, C)
        NCp = ((NC + 127) // 128) * 128                        # lane-dense output width
        w_t = jnp.transpose(w_classifier.astype(jnp.float32), (1, 0))   # (C, NC)
        if NCp != NC:
            w_t = jnp.pad(w_t, ((0, 0), (0, NCp - NC)))
        cls_padded = pl.pallas_call(
            functools.partial(_bn_classifier_kernel,
                              apply_bn=(neck == "bnneck"), eps=BN_EPS),
            out_shape=jax.ShapeDtypeStruct((B, NCp), jnp.float32),
            in_specs=[_VMEM, _VMEM, _VMEM, _VMEM],
            out_specs=_VMEM,
        )(global_feat, w_t, gamma, beta)
        cls_score = cls_padded[:, :NC]
        return cls_score, global_feat

    if neck_feat == "after" and neck == "bnneck":
        mean = bn_running_mean.reshape(1, C).astype(jnp.float32)
        var = bn_running_var.reshape(1, C).astype(jnp.float32)
        feat = pl.pallas_call(
            functools.partial(_bn_eval_kernel, eps=BN_EPS),
            out_shape=jax.ShapeDtypeStruct((B, C), jnp.float32),
            in_specs=[_VMEM, _VMEM, _VMEM, _VMEM, _VMEM],
            out_specs=_VMEM,
        )(global_feat, gamma, beta, mean, var)
        return feat

    # eval + neck_feat == 'before' (or neck == 'no'): no BN / classifier work.
    return global_feat


# ---------------------------------------------------------------------------
# Pure-JAX references
# ---------------------------------------------------------------------------
def _reference_train(x_nchw, w_classifier, bn_gamma, bn_beta, neck="bnneck"):
    gfeat = jnp.mean(x_nchw.astype(jnp.float32), axis=(2, 3))
    if neck == "bnneck":
        mu = jnp.mean(gfeat, axis=0, keepdims=True)
        var = jnp.mean((gfeat - mu) ** 2, axis=0, keepdims=True)
        feat = (gfeat - mu) / jnp.sqrt(var + BN_EPS) * bn_gamma[None, :] + bn_beta[None, :]
    else:
        feat = gfeat
    cls = feat @ w_classifier.astype(jnp.float32).T
    return cls, gfeat


def _reference_eval_after(x_nchw, bn_gamma, bn_beta, rmean, rvar):
    gfeat = jnp.mean(x_nchw.astype(jnp.float32), axis=(2, 3))
    return ((gfeat - rmean[None, :]) / jnp.sqrt(rvar[None, :] + BN_EPS)
            * bn_gamma[None, :] + bn_beta[None, :])


if __name__ == "__main__":
    # Small deterministic shapes (in_planes=2048 scaled down to 256).
    B, C, H, W = 2, 256, 8, 8
    NUM_CLASSES = 16          # deliberately not a multiple of 128 (exercises padding)

    key = jax.random.PRNGKey(0)
    k_x, k_w, k_m, k_v = jax.random.split(key, 4)

    # stands in for self.base(images) output, NCHW
    x = jax.random.normal(k_x, (B, C, H, W), dtype=jnp.float32)

    # classifier: weights_init_classifier -> normal(std=0.001), bias=False
    w_classifier = 0.001 * jax.random.normal(k_w, (NUM_CLASSES, C), dtype=jnp.float32)

    # bottleneck BatchNorm1d: weights_init_kaiming -> gamma=1, beta=0
    bn_gamma = jnp.ones((C,), dtype=jnp.float32)
    bn_beta = jnp.zeros((C,), dtype=jnp.float32)
    bn_running_mean = 0.1 * jax.random.normal(k_m, (C,), dtype=jnp.float32)
    bn_running_var = 1.0 + 0.05 * jax.random.uniform(k_v, (C,), dtype=jnp.float32)

    # --- training path, bnneck ------------------------------------------------
    cls_score, global_feat = backbone_forward(
        x, w_classifier, bn_gamma, bn_beta, bn_running_mean, bn_running_var,
        training=True, neck="bnneck", neck_feat="before")
    jax.block_until_ready((cls_score, global_feat))

    ref_cls, ref_gfeat = _reference_train(x, w_classifier, bn_gamma, bn_beta, "bnneck")
    assert cls_score.shape == (B, NUM_CLASSES)
    assert global_feat.shape == (B, C)
    assert jnp.allclose(global_feat, ref_gfeat, atol=1e-5, rtol=1e-5)
    assert jnp.allclose(cls_score, ref_cls, atol=1e-5, rtol=1e-4)

    # --- training path, neck='no' (classifier consumes global_feat directly) --
    cls_no, _ = backbone_forward(
        x, w_classifier, bn_gamma, bn_beta, bn_running_mean, bn_running_var,
        training=True, neck="no", neck_feat="before")
    ref_cls_no, _ = _reference_train(x, w_classifier, bn_gamma, bn_beta, "no")
    assert jnp.allclose(cls_no, ref_cls_no, atol=1e-5, rtol=1e-4)

    # --- eval, neck_feat='after' (running statistics) --------------------------
    feat_after = backbone_forward(
        x, w_classifier, bn_gamma, bn_beta, bn_running_mean, bn_running_var,
        training=False, neck="bnneck", neck_feat="after")
    ref_after = _reference_eval_after(x, bn_gamma, bn_beta,
                                      bn_running_mean, bn_running_var)
    assert jnp.allclose(feat_after, ref_after, atol=1e-5, rtol=1e-5)

    # --- eval, neck_feat='before' (pool only, head skipped) --------------------
    gfeat_eval = backbone_forward(
        x, w_classifier, bn_gamma, bn_beta, bn_running_mean, bn_running_var,
        training=False, neck="bnneck", neck_feat="before")
    assert jnp.allclose(gfeat_eval, ref_gfeat, atol=1e-5, rtol=1e-5)

    # --- bf16 feature map is streamed at native width (no host upcast) ---------
    gfeat_bf16 = backbone_forward(
        x.astype(jnp.bfloat16), w_classifier, bn_gamma, bn_beta,
        bn_running_mean, bn_running_var,
        training=False, neck="bnneck", neck_feat="before")
    assert jnp.allclose(gfeat_bf16, ref_gfeat, atol=5e-2, rtol=5e-2)

    # --- larger, ResNet50-like shape exercises the batch/channel tiling --------
    B2, C2, H2, W2 = 16, 2048, 12, 12
    x2 = jax.random.normal(jax.random.PRNGKey(1), (B2, C2, H2, W2), dtype=jnp.bfloat16)
    g2 = backbone_forward(
        x2, jnp.zeros((NUM_CLASSES, C2), jnp.float32),
        jnp.ones((C2,), jnp.float32), jnp.zeros((C2,), jnp.float32),
        jnp.zeros((C2,), jnp.float32), jnp.ones((C2,), jnp.float32),
        training=False, neck="bnneck", neck_feat="before")
    ref_g2 = jnp.mean(x2.astype(jnp.float32), axis=(2, 3))
    assert jnp.allclose(g2, ref_g2, atol=5e-2, rtol=5e-2)

    jax.block_until_ready((cls_no, feat_after, gfeat_eval, gfeat_bf16, g2))
    print("KERNEL_OK")
</pallas_src>

<mosaic_0001>
module attributes {stable_mosaic.version = 11 : i64} {
  func.func @_gap_kernel(%arg0: i32, %arg1: i32, %arg2: memref<2x256x64xf32, #tpu.memory_space<vmem>>, %arg3: memref<2x256xf32, #tpu.memory_space<vmem>>) attributes {dimension_semantics = [#tpu.dimension_semantics<parallel>, #tpu.dimension_semantics<parallel>], iteration_bounds = array<i64: 1, 1>, scalar_prefetch = 0 : i64, scratch_operands = 0 : i64, tpu.core_type = #tpu.core_type<tc>, window_params = [{transform_indices = @transform_0, window_bounds = array<i64: 2, 256, 64>}, {transform_indices = @transform_1, window_bounds = array<i64: 2, 256>}]} {
    %c0 = arith.constant 0 : index
    %c0_0 = arith.constant 0 : index
    %c0_1 = arith.constant 0 : index
    %0 = vector.load %arg2[%c0, %c0_0, %c0_1] : memref<2x256x64xf32, #tpu.memory_space<vmem>>, vector<2x256x64xf32>
    %cst = arith.constant dense<0.000000e+00> : vector<2x256xf32>
    %1 = vector.multi_reduction <add>, %0, %cst [2] : vector<2x256x64xf32> to vector<2x256xf32>
    %cst_2 = arith.constant 1.562500e-02 : f32
    %2 = vector.broadcast %cst_2 : f32 to vector<2x256xf32>
    %3 = arith.mulf %1, %2 : vector<2x256xf32>
    %c0_3 = arith.constant 0 : index
    %c0_4 = arith.constant 0 : index
    %4 = vector.load %arg3[%c0_3, %c0_4] : memref<2x256xf32, #tpu.memory_space<vmem>>, vector<2x256xf32>
    tpu.vector_store %arg3[%c0_3, %c0_4], %3 {strides = array<i32>} : memref<2x256xf32, #tpu.memory_space<vmem>>, vector<2x256xf32>,
    return
  }
  func.func @transform_0(%arg0: i32, %arg1: i32) -> (i32, i32, i32) {
    %c0_i32 = arith.constant 0 : i32
    %c0_i32_0 = arith.constant 0 : i32
    return %arg0, %arg1, %c0_i32 : i32, i32, i32
  }
  func.func @transform_1(%arg0: i32, %arg1: i32) -> (i32, i32) {
    %c0_i32 = arith.constant 0 : i32
    return %arg0, %arg1 : i32, i32
  }
}

module attributes {stable_mosaic.version = 11 : i64} {
  func.func @_bn_classifier_kernel(%arg0: memref<2x256xf32, #tpu.memory_space<vmem>>, %arg1: memref<256x128xf32, #tpu.memory_space<vmem>>, %arg2: memref<1x256xf32, #tpu.memory_space<vmem>>, %arg3: memref<1x256xf32, #tpu.memory_space<vmem>>, %arg4: memref<2x128xf32, #tpu.memory_space<vmem>>) attributes {dimension_semantics = [], scalar_prefetch = 0 : i64, scratch_operands = 0 : i64, tpu.core_type = #tpu.core_type<tc>} {
    %c0 = arith.constant 0 : index
    %c0_0 = arith.constant 0 : index
    %0 = vector.load %arg0[%c0, %c0_0] : memref<2x256xf32, #tpu.memory_space<vmem>>, vector<2x256xf32>
    %cst = arith.constant dense<0.000000e+00> : vector<256xf32>
    %1 = vector.multi_reduction <add>, %0, %cst [0] : vector<2x256xf32> to vector<256xf32>
    %2 = vector.shape_cast %1 : vector<256xf32> to vector<1x256xf32>
    %cst_1 = arith.constant 2.000000e+00 : f32
    %3 = vector.broadcast %cst_1 : f32 to vector<1x256xf32>
    %4 = arith.divf %2, %3 : vector<1x256xf32>
    %5 = vector.broadcast %4 : vector<1x256xf32> to vector<2x256xf32>
    %6 = arith.subf %0, %5 : vector<2x256xf32>
    %7 = arith.mulf %6, %6 : vector<2x256xf32>
    %cst_2 = arith.constant dense<0.000000e+00> : vector<256xf32>
    %8 = vector.multi_reduction <add>, %7, %cst_2 [0] : vector<2x256xf32> to vector<256xf32>
    %9 = vector.shape_cast %8 : vector<256xf32> to vector<1x256xf32>
    %cst_3 = arith.constant 2.000000e+00 : f32
    %10 = vector.broadcast %cst_3 : f32 to vector<1x256xf32>
    %11 = arith.divf %9, %10 : vector<1x256xf32>
    %12 = vector.broadcast %4 : vector<1x256xf32> to vector<2x256xf32>
    %13 = arith.subf %0, %12 : vector<2x256xf32>
    %cst_4 = arith.constant 9.99999974E-6 : f32
    %14 = vector.broadcast %cst_4 : f32 to vector<1x256xf32>
    %15 = arith.addf %11, %14 : vector<1x256xf32>
    %16 = math.rsqrt %15 : vector<1x256xf32>
    %17 = vector.broadcast %16 : vector<1x256xf32> to vector<2x256xf32>
    %18 = arith.mulf %13, %17 : vector<2x256xf32>
    %c0_5 = arith.constant 0 : index
    %c0_6 = arith.constant 0 : index
    %19 = vector.load %arg2[%c0_5, %c0_6] : memref<1x256xf32, #tpu.memory_space<vmem>>, vector<1x256xf32>
    %20 = vector.broadcast %19 : vector<1x256xf32> to vector<2x256xf32>
    %21 = arith.mulf %18, %20 : vector<2x256xf32>
    %c0_7 = arith.constant 0 : index
    %c0_8 = arith.constant 0 : index
    %22 = vector.load %arg3[%c0_7, %c0_8] : memref<1x256xf32, #tpu.memory_space<vmem>>, vector<1x256xf32>
    %23 = vector.broadcast %22 : vector<1x256xf32> to vector<2x256xf32>
    %24 = arith.addf %21, %23 : vector<2x256xf32>
    %c0_9 = arith.constant 0 : index
    %c0_10 = arith.constant 0 : index
    %25 = vector.load %arg1[%c0_9, %c0_10] : memref<256x128xf32, #tpu.memory_space<vmem>>, vector<256x128xf32>
    %cst_11 = arith.constant dense<0.000000e+00> : vector<2x128xf32>
    %26 = tpu.matmul %24, %25, %cst_11 {dimension_numbers = #tpu.dot_dimension_numbers<[1], [0], [0], [1], [0, 0, 1, 1], [], []>} : vector<2x256xf32>, vector<256x128xf32>, vector<2x128xf32> -> vector<2x128xf32>
    %c0_12 = arith.constant 0 : index
    %c0_13 = arith.constant 0 : index
    %27 = vector.load %arg4[%c0_12, %c0_13] : memref<2x128xf32, #tpu.memory_space<vmem>>, vector<2x128xf32>
    tpu.vector_store %arg4[%c0_12, %c0_13], %26 {strides = array<i32>} : memref<2x128xf32, #tpu.memory_space<vmem>>, vector<2x128xf32>,
    return
  }
}

</mosaic_0001>

<llo_original>
// kernel: backbone_forward.3
$region0: #{backbone_forward.3}
  #allocation0 [shape = 'u32[]', space=smem, size = 0x4, offset = 0x4, fixed_abs, tag = 'smem constant byte address 0x4 - core index']
  #allocation1 [shape = 'u32[144,128]{1,0:T(1,128)}', space=vmem, size = 0x12000, scoped, tag = 'internal scratch']
  %s0 = inlined_call_operand.vmem [shape: f32[2,256], index: 0, kind: input, shape index: {}]
  %s1 = inlined_call_operand.vmem [shape: f32[256,128], index: 1, kind: input, shape index: {}]
  %s2 = inlined_call_operand.vmem [shape: f32[1,256], index: 2, kind: input, shape index: {}]
  %s3 = inlined_call_operand.vmem [shape: f32[1,256], index: 3, kind: input, shape index: {}]
  %s4 = inlined_call_operand.hbm [shape: f32[2,128], index: 4, kind: output, shape index: {}]
  %s5 = sld [smem:[#allocation0]]
  $region26: #{backbone_forward.3} parent=0
    _
  %s7 = ssub.s32 1, %s5
  %s8 = scalar_select 0, %s7, %s5
  $region1: #{backbone_forward.3} parent=0
    #allocation2 [shape = 'u8[1024]{0}', space=vmem, size = 0x400, scoped, tag = 'output window, operand 0, single buffered']
    #allocation3 [shape = 's32[1]{0}', space=sflag, size = 0x4, scoped, tag = 'scoped memory for backbone_forward.3']
    %9 = vsyncpa [#allocation3], 0
    // Predicated region
    $region2: #{backbone_forward.3} parent=1 // pred_check
      _
    $region3: #{backbone_forward.3} parent=1 // pred_check_branch
      %11 = sbr.rel (0) target = $region5
    $region4: #{backbone_forward.3} parent=1 // pred_region
      _
    $region5: #{backbone_forward.3} parent=1 // pred_fallthru
      _
    // Predicated region
    $region6: #{backbone_forward.3} parent=1 // pred_check
      _
    $region7: #{backbone_forward.3} parent=1 // pred_check_branch
      %13 = sbr.rel (0) target = $region9
    $region8: #{backbone_forward.3} parent=1 // pred_region
      _
    $region9: #{backbone_forward.3} parent=1 // pred_fallthru
      _
    // Predicated region
    $region10: #{backbone_forward.3} parent=1 // pred_check
      _
    $region11: #{backbone_forward.3} parent=1 // pred_check_branch
      %15 = sbr.rel (0) target = $region13
    $region12: #{backbone_forward.3} parent=1 // pred_region
      _
    $region13: #{backbone_forward.3} parent=1 // pred_fallthru
      _
    // Predicated region
    $region14: #{backbone_forward.3} parent=1 // pred_check
      _
    $region15: #{backbone_forward.3} parent=1 // pred_check_branch
      %17 = sbr.rel (0) target = $region17
    $region16: #{backbone_forward.3} parent=1 // pred_region
      _
    $region17: #{backbone_forward.3} parent=1 // pred_fallthru
      _
    %v18 = vld [vmem:[%s0] sm:$0xf]
    %v21 = vunpack.c.l.s4 1983009808
    %v22 = vunpack.c.0.s8 %v21
    %v23 = vlaneseq
    %v24 = vshrl.u32 %v23, 7
    %v25 = vsub.s32 %v22, %v24
    %v26 = vrot.slane %v18, %v25
    %v27 = vcombine.high %v26, %v26
    %vm30 = vcmask 1041408
    %v31 = vsel %vm30, %v26, 0.0
    %v32 = vrot.slane %v31, 4
    %v33 = vadd.f32 %v31, %v32
    %v34 = vrot.slane %v33, 2
    %v35 = vadd.f32 %v33, %v34
    %v36 = vrot.slane %v35, 1
    %v37 = vadd.f32 %v35, %v36
    %v38 = vsel %vm30, %v27, 0.0
    %v39 = vrot.slane %v38, 4
    %v40 = vadd.f32 %v38, %v39
    %v41 = vrot.slane %v40, 2
    %v42 = vadd.f32 %v40, %v41
    %v43 = vrot.slane %v42, 1
    %v44 = vadd.f32 %v42, %v43
    %v45 = vrcp.pop 2.0
    %v46 = vmul.f32 %v37, %v45
    %v47 = vmul.f32 %v44, %v45
    %v50 = vcombine.low %v46, %v47
    %v52 = vunpack.c.l.s4 1983009808
    %v53 = vunpack.c.0.s8 %v52
    %v54 = vlaneseq
    %v55 = vshrl.u32 %v54, 7
    %v56 = vsub.s32 %v53, %v55
    %v57 = vrot.slane %v50, %v56
    %v59 = vsub.f32 %v18, %v57
    %v60 = vmul.f32 %v59, %v59
    %v63 = vunpack.c.l.s4 1983009808
    %v64 = vunpack.c.0.s8 %v63
    %v65 = vlaneseq
    %v66 = vshrl.u32 %v65, 7
    %v67 = vsub.s32 %v64, %v66
    %v68 = vrot.slane %v60, %v67
    %v69 = vcombine.high %v68, %v68
    %v72 = vsel %vm30, %v68, 0.0
    %v73 = vrot.slane %v72, 4
    %v74 = vadd.f32 %v72, %v73
    %v75 = vrot.slane %v74, 2
    %v76 = vadd.f32 %v74, %v75
    %v77 = vrot.slane %v76, 1
    %v78 = vadd.f32 %v76, %v77
    %v79 = vsel %vm30, %v69, 0.0
    %v80 = vrot.slane %v79, 4
    %v81 = vadd.f32 %v79, %v80
    %v82 = vrot.slane %v81, 2
    %v83 = vadd.f32 %v81, %v82
    %v84 = vrot.slane %v83, 1
    %v85 = vadd.f32 %v83, %v84
    %v86 = vmul.f32 %v78, %v45
    %v87 = vmul.f32 %v85, %v45
    %v88 = vadd.f32 %v86, 1e-05
    %v89 = vadd.f32 %v87, 1e-05
    %v90 = vrsqrt.pop %v88
    %v91 = vrsqrt.pop %v89
    %v94 = vcombine.low %v90, %v91
    %v96 = vunpack.c.l.s4 1983009808
    %v97 = vunpack.c.0.s8 %v96
    %v98 = vlaneseq
    %v99 = vshrl.u32 %v98, 7
    %v100 = vsub.s32 %v97, %v99
    %v101 = vrot.slane %v94, %v100
    %v103 = vmul.f32 %v59, %v101
    %v104 = vld [vmem:[%s2] sm:$0x3]
    %v106 = vlaneseq
    %v107 = vshrl.u32 %v106, 7
    %v108 = vsub.s32 0, %v107
    %v109 = vrot.slane %v104, %v108
    %v110 = vlaneseq
    %v111 = vshrl.u32 %v110, 7
    %v112 = vsub.s32 1, %v111
    %v113 = vrot.slane %v104, %v112
    %v114 = vcombine.low %v109, %v113
    %v116 = vunpack.c.l.s4 1983009808
    %v117 = vunpack.c.0.s8 %v116
    %v118 = vlaneseq
    %v119 = vshrl.u32 %v118, 7
    %v120 = vsub.s32 %v117, %v119
    %v121 = vrot.slane %v114, %v120
    %v123 = vmul.f32 %v103, %v121
    %v124 = vld [vmem:[%s3] sm:$0x3]
    %v126 = vlaneseq
    %v127 = vshrl.u32 %v126, 7
    %v128 = vsub.s32 0, %v127
    %v129 = vrot.slane %v124, %v128
    %v130 = vlaneseq
    %v131 = vshrl.u32 %v130, 7
    %v132 = vsub.s32 1, %v131
    %v133 = vrot.slane %v124, %v132
    %v134 = vcombine.low %v129, %v133
    %v136 = vunpack.c.l.s4 1983009808
    %v137 = vunpack.c.0.s8 %v136
    %v138 = vlaneseq
    %v139 = vshrl.u32 %v138, 7
    %v140 = vsub.s32 %v137, %v139
    %v141 = vrot.slane %v134, %v140
    %v143 = vadd.f32 %v123, %v141
    %v144 = vld [vmem:[%s1] sm:$0xff]
    %v145 = vld [vmem:[%s1 + $0x8] sm:$0xff]
    %v146 = vld [vmem:[%s1 + $0x10] sm:$0xff]
    %v147 = vld [vmem:[%s1 + $0x18] sm:$0xff]
    %v148 = vld [vmem:[%s1 + $0x20] sm:$0xff]
    %v149 = vld [vmem:[%s1 + $0x28] sm:$0xff]
    %v150 = vld [vmem:[%s1 + $0x30] sm:$0xff]
    %v151 = vld [vmem:[%s1 + $0x38] sm:$0xff]
    %v152 = vld [vmem:[%s1 + $0x40] sm:$0xff]
    %v153 = vld [vmem:[%s1 + $0x48] sm:$0xff]
    %v154 = vld [vmem:[%s1 + $0x50] sm:$0xff]
    %v155 = vld [vmem:[%s1 + $0x58] sm:$0xff]
    %v156 = vld [vmem:[%s1 + $0x60] sm:$0xff]
    %v157 = vld [vmem:[%s1 + $0x68] sm:$0xff]
    %v158 = vld [vmem:[%s1 + $0x70] sm:$0xff]
    %v159 = vld [vmem:[%s1 + $0x78] sm:$0xff]
    %v160 = vld [vmem:[%s1 + $0x80] sm:$0xff]
    %v161 = vld [vmem:[%s1 + $0x88] sm:$0xff]
    %v162 = vld [vmem:[%s1 + $0x90] sm:$0xff]
    %v163 = vld [vmem:[%s1 + $0x98] sm:$0xff]
    %v164 = vld [vmem:[%s1 + $0xa0] sm:$0xff]
    %v165 = vld [vmem:[%s1 + $0xa8] sm:$0xff]
    %v166 = vld [vmem:[%s1 + $0xb0] sm:$0xff]
    %v167 = vld [vmem:[%s1 + $0xb8] sm:$0xff]
    %v168 = vld [vmem:[%s1 + $0xc0] sm:$0xff]
    %v169 = vld [vmem:[%s1 + $0xc8] sm:$0xff]
    %v170 = vld [vmem:[%s1 + $0xd0] sm:$0xff]
    %v171 = vld [vmem:[%s1 + $0xd8] sm:$0xff]
    %v172 = vld [vmem:[%s1 + $0xe0] sm:$0xff]
    %v173 = vld [vmem:[%s1 + $0xe8] sm:$0xff]
    %v174 = vld [vmem:[%s1 + $0xf0] sm:$0xff]
    %v175 = vld [vmem:[%s1 + $0xf8] sm:$0xff]
    %v178 = vunpack.c.l.s4 1983009808
    %v179 = vunpack.c.0.s8 %v178
    %v180 = vlaneseq
    %v181 = vshrl.u32 %v180, 7
    %v182 = vsub.s32 %v179, %v181
    %v183 = vrot.slane %v143, %v182
    %v184 = vcombine.high %v183, %v183
    %187 = vmatprep.subr.mxu0 0.0
    %188 = vmatpush1.msra.mxu0 %v144
    %189 = vmatprep.subr.mxu0 0.0
    %190 = vmatpush1.msra.mxu0 %v145
    %191 = vmatprep.subr.mxu0 0.0
    %192 = vmatpush1.msra.mxu0 %v146
    %193 = vmatprep.subr.mxu0 0.0
    %194 = vmatpush1.msra.mxu0 %v147
    %195 = vmatprep.subr.mxu0 0.0
    %196 = vmatpush1.msra.mxu0 %v148
    %197 = vmatprep.subr.mxu0 0.0
    %198 = vmatpush1.msra.mxu0 %v149
    %199 = vmatprep.subr.mxu0 0.0
    %200 = vmatpush1.msra.mxu0 %v150
    %201 = vmatprep.subr.mxu0 0.0
    %202 = vmatpush1.msra.mxu0 %v151
    %203 = vmatprep.subr.mxu0 0.0
    %204 = vmatpush1.msra.mxu0 %v152
    %205 = vmatprep.subr.mxu0 0.0
    %206 = vmatpush1.msra.mxu0 %v153
    %207 = vmatprep.subr.mxu0 0.0
    %208 = vmatpush1.msra.mxu0 %v154
    %209 = vmatprep.subr.mxu0 0.0
    %210 = vmatpush1.msra.mxu0 %v155
    %211 = vmatprep.subr.mxu0 0.0
    %212 = vmatpush1.msra.mxu0 %v156
    %213 = vmatprep.subr.mxu0 0.0
    %214 = vmatpush1.msra.mxu0 %v157
    %215 = vmatprep.subr.mxu0 0.0
    %216 = vmatpush1.msra.mxu0 %v158
    %217 = vmatprep.subr.mxu0 0.0
    %218 = vmatpush1.msra.mxu0 %v159
    %219 = vmatprep.subr.mxu0 0.0
    %220 = vmatpush1.msra.mxu0 %v160
    %221 = vmatprep.subr.mxu0 0.0
    %222 = vmatpush1.msra.mxu0 %v161
    %223 = vmatprep.subr.mxu0 0.0
    %224 = vmatpush1.msra.mxu0 %v162
    %225 = vmatprep.subr.mxu0 0.0
    %226 = vmatpush1.msra.mxu0 %v163
    %227 = vmatprep.subr.mxu0 0.0
    %228 = vmatpush1.msra.mxu0 %v164
    %229 = vmatprep.subr.mxu0 0.0
    %230 = vmatpush1.msra.mxu0 %v165
    %231 = vmatprep.subr.mxu0 0.0
    %232 = vmatpush1.msra.mxu0 %v166
    %233 = vmatprep.subr.mxu0 0.0
    %234 = vmatpush1.msra.mxu0 %v167
    %235 = vmatprep.subr.mxu0 0.0
    %236 = vmatpush1.msra.mxu0 %v168
    %237 = vmatprep.subr.mxu0 0.0
    %238 = vmatpush1.msra.mxu0 %v169
    %239 = vmatprep.subr.mxu0 0.0
    %240 = vmatpush1.msra.mxu0 %v170
    %241 = vmatprep.subr.mxu0 0.0
    %242 = vmatpush1.msra.mxu0 %v171
    %243 = vmatprep.subr.mxu0 0.0
    %244 = vmatpush1.msra.mxu0 %v172
    %245 = vmatprep.subr.mxu0 0.0
    %246 = vmatpush1.msra.mxu0 %v173
    %247 = vmatprep.subr.mxu0 0.0
    %248 = vmatpush1.msra.mxu0 %v174
    %249 = vmatprep.subr.mxu0 0.0
    %250 = vmatpush1.msra.mxu0 %v175
    %251 = vmatprep.mubr.f32.mxu0 %v184
    %252 = vmatmul.mubr.f32.gmra.mrb[0].mxu0 %v183
    %v253 = vpop.f32.mrb[0].mxu0
    %v254 = vadd.f32 0.0, %v253
    %v255 = vpop.f32.mrb[0].mxu0
    %256 = vdwg.mxu0
    %257 = vst [vmem:[#allocation2] sm:$0x3] %v254
    // Predicated region
    $region18: #{backbone_forward.3} parent=1 // pred_check
      _
    $region19: #{backbone_forward.3} parent=1 // pred_check_branch
      %259 = sbr.rel (0) target = $region21
    $region20: #{backbone_forward.3} parent=1 // pred_region
      %s261 = ssub.s32 32, 32
      %262 = vsyncadd [#allocation3], %s261
      %s264 = sshll.u32 [#allocation2], 4
      %s265 = int_to_ptr.vmem [resolvable:$true] %s264
      %267 = dma.vmem_to_hbm [thread:$0]  %s265, 32, %s4, [#allocation3]
    $region21: #{backbone_forward.3} parent=1 // pred_fallthru
      _
    // Predicated region
    $region22: #{backbone_forward.3} parent=1 // pred_check
      _
    $region23: #{backbone_forward.3} parent=1 // pred_check_branch
      %269 = sbr.rel (0) target = $region25
    $region24: #{backbone_forward.3} parent=1 // pred_region
      %270 = dma.done [#allocation3], 32
    $region25: #{backbone_forward.3} parent=1 // pred_fallthru
      _
    %271 = vsyncpa [#allocation3], 1

// kernel: backbone_forward.2
$region0: #{backbone_forward.2}
  #allocation0 [shape = 'u32[]', space=smem, size = 0x4, offset = 0x4, fixed_abs, tag = 'smem constant byte address 0x4 - core index']
  #allocation1 [shape = 'u32[144,128]{1,0:T(1,128)}', space=vmem, size = 0x12000, scoped, tag = 'internal scratch']
  %s0 = inlined_call_operand.vmem [shape: f32[2,256,64], index: 0, kind: input, shape index: {}]
  %s1 = inlined_call_operand.vmem [shape: f32[2,256], index: 1, kind: output, shape index: {}]
  %s2 = sld [smem:[#allocation0]]
  $region14: #{backbone_forward.2} parent=0
    _
  %s4 = ssub.s32 1, %s2
  %s5 = scalar_select 0, %s4, %s2
  // Predicated region
  $region2: #{backbone_forward.2} parent=0 // pred_check
    _
  $region3: #{backbone_forward.2} parent=0 // pred_check_branch
    %7 = sbr.rel (0) target = $region5
  $region4: #{backbone_forward.2} parent=0 // pred_region
    _
  $region5: #{backbone_forward.2} parent=0 // pred_fallthru
    _
  %v8 = vld [vmem:[%s0] sm:$0xff]
  %v9 = vld [vmem:[%s0 + $0x8] sm:$0xff]
  %v10 = vld [vmem:[%s0 + $0x10] sm:$0xff]
  %v11 = vld [vmem:[%s0 + $0x18] sm:$0xff]
  %v12 = vld [vmem:[%s0 + $0x20] sm:$0xff]
  %v13 = vld [vmem:[%s0 + $0x28] sm:$0xff]
  %v14 = vld [vmem:[%s0 + $0x30] sm:$0xff]
  %v15 = vld [vmem:[%s0 + $0x38] sm:$0xff]
  %v16 = vld [vmem:[%s0 + $0x40] sm:$0xff]
  %v17 = vld [vmem:[%s0 + $0x48] sm:$0xff]
  %v18 = vld [vmem:[%s0 + $0x50] sm:$0xff]
  %v19 = vld [vmem:[%s0 + $0x58] sm:$0xff]
  %v20 = vld [vmem:[%s0 + $0x60] sm:$0xff]
  %v21 = vld [vmem:[%s0 + $0x68] sm:$0xff]
  %v22 = vld [vmem:[%s0 + $0x70] sm:$0xff]
  %v23 = vld [vmem:[%s0 + $0x78] sm:$0xff]
  %v24 = vld [vmem:[%s0 + $0x80] sm:$0xff]
  %v25 = vld [vmem:[%s0 + $0x88] sm:$0xff]
  %v26 = vld [vmem:[%s0 + $0x90] sm:$0xff]
  %v27 = vld [vmem:[%s0 + $0x98] sm:$0xff]
  %v28 = vld [vmem:[%s0 + $0xa0] sm:$0xff]
  %v29 = vld [vmem:[%s0 + $0xa8] sm:$0xff]
  %v30 = vld [vmem:[%s0 + $0xb0] sm:$0xff]
  %v31 = vld [vmem:[%s0 + $0xb8] sm:$0xff]
  %v32 = vld [vmem:[%s0 + $0xc0] sm:$0xff]
  %v33 = vld [vmem:[%s0 + $0xc8] sm:$0xff]
  %v34 = vld [vmem:[%s0 + $0xd0] sm:$0xff]
  %v35 = vld [vmem:[%s0 + $0xd8] sm:$0xff]
  %v36 = vld [vmem:[%s0 + $0xe0] sm:$0xff]
  %v37 = vld [vmem:[%s0 + $0xe8] sm:$0xff]
  %v38 = vld [vmem:[%s0 + $0xf0] sm:$0xff]
  %v39 = vld [vmem:[%s0 + $0xf8] sm:$0xff]
  %v40 = vld [vmem:[%s0 + $0x100] sm:$0xff]
  %v41 = vld [vmem:[%s0 + $0x108] sm:$0xff]
  %v42 = vld [vmem:[%s0 + $0x110] sm:$0xff]
  %v43 = vld [vmem:[%s0 + $0x118] sm:$0xff]
  %v44 = vld [vmem:[%s0 + $0x120] sm:$0xff]
  %v45 = vld [vmem:[%s0 + $0x128] sm:$0xff]
  %v46 = vld [vmem:[%s0 + $0x130] sm:$0xff]
  %v47 = vld [vmem:[%s0 + $0x138] sm:$0xff]
  %v48 = vld [vmem:[%s0 + $0x140] sm:$0xff]
  %v49 = vld [vmem:[%s0 + $0x148] sm:$0xff]
  %v50 = vld [vmem:[%s0 + $0x150] sm:$0xff]
  %v51 = vld [vmem:[%s0 + $0x158] sm:$0xff]
  %v52 = vld [vmem:[%s0 + $0x160] sm:$0xff]
  %v53 = vld [vmem:[%s0 + $0x168] sm:$0xff]
  %v54 = vld [vmem:[%s0 + $0x170] sm:$0xff]
  %v55 = vld [vmem:[%s0 + $0x178] sm:$0xff]
  %v56 = vld [vmem:[%s0 + $0x180] sm:$0xff]
  %v57 = vld [vmem:[%s0 + $0x188] sm:$0xff]
  %v58 = vld [vmem:[%s0 + $0x190] sm:$0xff]
  %v59 = vld [vmem:[%s0 + $0x198] sm:$0xff]
  %v60 = vld [vmem:[%s0 + $0x1a0] sm:$0xff]
  %v61 = vld [vmem:[%s0 + $0x1a8] sm:$0xff]
  %v62 = vld [vmem:[%s0 + $0x1b0] sm:$0xff]
  %v63 = vld [vmem:[%s0 + $0x1b8] sm:$0xff]
  %v64 = vld [vmem:[%s0 + $0x1c0] sm:$0xff]
  %v65 = vld [vmem:[%s0 + $0x1c8] sm:$0xff]
  %v66 = vld [vmem:[%s0 + $0x1d0] sm:$0xff]
  %v67 = vld [vmem:[%s0 + $0x1d8] sm:$0xff]
  %v68 = vld [vmem:[%s0 + $0x1e0] sm:$0xff]
  %v69 = vld [vmem:[%s0 + $0x1e8] sm:$0xff]
  %v70 = vld [vmem:[%s0 + $0x1f0] sm:$0xff]
  %v71 = vld [vmem:[%s0 + $0x1f8] sm:$0xff]
  %vm72 = vcmask 523264
  %v73 = vsel %vm72, %v8, 0.0
  %74 = vadd.xlane.f32.xlu0 %v73
  %v75 = vpop.xlane.xlu0 %74
  %v76 = vsel %vm72, %v9, 0.0
  %77 = vadd.xlane.f32.xlu0 %v76
  %v78 = vpop.xlane.xlu0 %77
  %v79 = vsel %vm72, %v10, 0.0
  %80 = vadd.xlane.f32.xlu0 %v79
  %v81 = vpop.xlane.xlu0 %80
  %v82 = vsel %vm72, %v11, 0.0
  %83 = vadd.xlane.f32.xlu0 %v82
  %v84 = vpop.xlane.xlu0 %83
  %v85 = vsel %vm72, %v12, 0.0
  %86 = vadd.xlane.f32.xlu0 %v85
  %v87 = vpop.xlane.xlu0 %86
  %v88 = vsel %vm72, %v13, 0.0
  %89 = vadd.xlane.f32.xlu0 %v88
  %v90 = vpop.xlane.xlu0 %89
  %v91 = vsel %vm72, %v14, 0.0
  %92 = vadd.xlane.f32.xlu0 %v91
  %v93 = vpop.xlane.xlu0 %92
  %v94 = vsel %vm72, %v15, 0.0
  %95 = vadd.xlane.f32.xlu0 %v94
  %v96 = vpop.xlane.xlu0 %95
  %v97 = vsel %vm72, %v16, 0.0
  %98 = vadd.xlane.f32.xlu0 %v97
  %v99 = vpop.xlane.xlu0 %98
  %v100 = vsel %vm72, %v17, 0.0
  %101 = vadd.xlane.f32.xlu0 %v100
  %v102 = vpop.xlane.xlu0 %101
  %v103 = vsel %vm72, %v18, 0.0
  %104 = vadd.xlane.f32.xlu0 %v103
  %v105 = vpop.xlane.xlu0 %104
  %v106 = vsel %vm72, %v19, 0.0
  %107 = vadd.xlane.f32.xlu0 %v106
  %v108 = vpop.xlane.xlu0 %107
  %v109 = vsel %vm72, %v20, 0.0
  %110 = vadd.xlane.f32.xlu0 %v109
  %v111 = vpop.xlane.xlu0 %110
  %v112 = vsel %vm72, %v21, 0.0
  %113 = vadd.xlane.f32.xlu0 %v112
  %v114 = vpop.xlane.xlu0 %113
  %v115 = vsel %vm72, %v22, 0.0
  %116 = vadd.xlane.f32.xlu0 %v115
  %v117 = vpop.xlane.xlu0 %116
  %v118 = vsel %vm72, %v23, 0.0
  %119 = vadd.xlane.f32.xlu0 %v118
  %v120 = vpop.xlane.xlu0 %119
  %v121 = vsel %vm72, %v24, 0.0
  %122 = vadd.xlane.f32.xlu0 %v121
  %v123 = vpop.xlane.xlu0 %122
  %v124 = vsel %vm72, %v25, 0.0
  %125 = vadd.xlane.f32.xlu0 %v124
  %v126 = vpop.xlane.xlu0 %125
  %v127 = vsel %vm72, %v26, 0.0
  %128 = vadd.xlane.f32.xlu0 %v127
  %v129 = vpop.xlane.xlu0 %128
  %v130 = vsel %vm72, %v27, 0.0
  %131 = vadd.xlane.f32.xlu0 %v130
  %v132 = vpop.xlane.xlu0 %131
  %v133 = vsel %vm72, %v28, 0.0
  %134 = vadd.xlane.f32.xlu0 %v133
  %v135 = vpop.xlane.xlu0 %134
  %v136 = vsel %vm72, %v29, 0.0
  %137 = vadd.xlane.f32.xlu0 %v136
  %v138 = vpop.xlane.xlu0 %137
  %v139 = vsel %vm72, %v30, 0.0
  %140 = vadd.xlane.f32.xlu0 %v139
  %v141 = vpop.xlane.xlu0 %140
  %v142 = vsel %vm72, %v31, 0.0
  %143 = vadd.xlane.f32.xlu0 %v142
  %v144 = vpop.xlane.xlu0 %143
  %v145 = vsel %vm72, %v32, 0.0
  %146 = vadd.xlane.f32.xlu0 %v145
  %v147 = vpop.xlane.xlu0 %146
  %v148 = vsel %vm72, %v33, 0.0
  %149 = vadd.xlane.f32.xlu0 %v148
  %v150 = vpop.xlane.xlu0 %149
  %v151 = vsel %vm72, %v34, 0.0
  %152 = vadd.xlane.f32.xlu0 %v151
  %v153 = vpop.xlane.xlu0 %152
  %v154 = vsel %vm72, %v35, 0.0
  %155 = vadd.xlane.f32.xlu0 %v154
  %v156 = vpop.xlane.xlu0 %155
  %v157 = vsel %vm72, %v36, 0.0
  %158 = vadd.xlane.f32.xlu0 %v157
  %v159 = vpop.xlane.xlu0 %158
  %v160 = vsel %vm72, %v37, 0.0
  %161 = vadd.xlane.f32.xlu0 %v160
  %v162 = vpop.xlane.xlu0 %161
  %v163 = vsel %vm72, %v38, 0.0
  %164 = vadd.xlane.f32.xlu0 %v163
  %v165 = vpop.xlane.xlu0 %164
  %v166 = vsel %vm72, %v39, 0.0
  %167 = vadd.xlane.f32.xlu0 %v166
  %v168 = vpop.xlane.xlu0 %167
  %v169 = vsel %vm72, %v40, 0.0
  %170 = vadd.xlane.f32.xlu0 %v169
  %v171 = vpop.xlane.xlu0 %170
  %v172 = vsel %vm72, %v41, 0.0
  %173 = vadd.xlane.f32.xlu0 %v172
  %v174 = vpop.xlane.xlu0 %173
  %v175 = vsel %vm72, %v42, 0.0
  %176 = vadd.xlane.f32.xlu0 %v175
  %v177 = vpop.xlane.xlu0 %176
  %v178 = vsel %vm72, %v43, 0.0
  %179 = vadd.xlane.f32.xlu0 %v178
  %v180 = vpop.xlane.xlu0 %179
  %v181 = vsel %vm72, %v44, 0.0
  %182 = vadd.xlane.f32.xlu0 %v181
  %v183 = vpop.xlane.xlu0 %182
  %v184 = vsel %vm72, %v45, 0.0
  %185 = vadd.xlane.f32.xlu0 %v184
  %v186 = vpop.xlane.xlu0 %185
  %v187 = vsel %vm72, %v46, 0.0
  %188 = vadd.xlane.f32.xlu0 %v187
  %v189 = vpop.xlane.xlu0 %188
  %v190 = vsel %vm72, %v47, 0.0
  %191 = vadd.xlane.f32.xlu0 %v190
  %v192 = vpop.xlane.xlu0 %191
  %v193 = vsel %vm72, %v48, 0.0
  %194 = vadd.xlane.f32.xlu0 %v193
  %v195 = vpop.xlane.xlu0 %194
  %v196 = vsel %vm72, %v49, 0.0
  %197 = vadd.xlane.f32.xlu0 %v196
  %v198 = vpop.xlane.xlu0 %197
  %v199 = vsel %vm72, %v50, 0.0
  %200 = vadd.xlane.f32.xlu0 %v199
  %v201 = vpop.xlane.xlu0 %200
  %v202 = vsel %vm72, %v51, 0.0
  %203 = vadd.xlane.f32.xlu0 %v202
  %v204 = vpop.xlane.xlu0 %203
  %v205 = vsel %vm72, %v52, 0.0
  %206 = vadd.xlane.f32.xlu0 %v205
  %v207 = vpop.xlane.xlu0 %206
  %v208 = vsel %vm72, %v53, 0.0
  %209 = vadd.xlane.f32.xlu0 %v208
  %v210 = vpop.xlane.xlu0 %209
  %v211 = vsel %vm72, %v54, 0.0
  %212 = vadd.xlane.f32.xlu0 %v211
  %v213 = vpop.xlane.xlu0 %212
  %v214 = vsel %vm72, %v55, 0.0
  %215 = vadd.xlane.f32.xlu0 %v214
  %v216 = vpop.xlane.xlu0 %215
  %v217 = vsel %vm72, %v56, 0.0
  %218 = vadd.xlane.f32.xlu0 %v217
  %v219 = vpop.xlane.xlu0 %218
  %v220 = vsel %vm72, %v57, 0.0
  %221 = vadd.xlane.f32.xlu0 %v220
  %v222 = vpop.xlane.xlu0 %221
  %v223 = vsel %vm72, %v58, 0.0
  %224 = vadd.xlane.f32.xlu0 %v223
  %v225 = vpop.xlane.xlu0 %224
  %v226 = vsel %vm72, %v59, 0.0
  %227 = vadd.xlane.f32.xlu0 %v226
  %v228 = vpop.xlane.xlu0 %227
  %v229 = vsel %vm72, %v60, 0.0
  %230 = vadd.xlane.f32.xlu0 %v229
  %v231 = vpop.xlane.xlu0 %230
  %v232 = vsel %vm72, %v61, 0.0
  %233 = vadd.xlane.f32.xlu0 %v232
  %v234 = vpop.xlane.xlu0 %233
  %v235 = vsel %vm72, %v62, 0.0
  %236 = vadd.xlane.f32.xlu0 %v235
  %v237 = vpop.xlane.xlu0 %236
  %v238 = vsel %vm72, %v63, 0.0
  %239 = vadd.xlane.f32.xlu0 %v238
  %v240 = vpop.xlane.xlu0 %239
  %v241 = vsel %vm72, %v64, 0.0
  %242 = vadd.xlane.f32.xlu0 %v241
  %v243 = vpop.xlane.xlu0 %242
  %v244 = vsel %vm72, %v65, 0.0
  %245 = vadd.xlane.f32.xlu0 %v244
  %v246 = vpop.xlane.xlu0 %245
  %v247 = vsel %vm72, %v66, 0.0
  %248 = vadd.xlane.f32.xlu0 %v247
  %v249 = vpop.xlane.xlu0 %248
  %v250 = vsel %vm72, %v67, 0.0
  %251 = vadd.xlane.f32.xlu0 %v250
  %v252 = vpop.xlane.xlu0 %251
  %v253 = vsel %vm72, %v68, 0.0
  %254 = vadd.xlane.f32.xlu0 %v253
  %v255 = vpop.xlane.xlu0 %254
  %v256 = vsel %vm72, %v69, 0.0
  %257 = vadd.xlane.f32.xlu0 %v256
  %v258 = vpop.xlane.xlu0 %257
  %v259 = vsel %vm72, %v70, 0.0
  %260 = vadd.xlane.f32.xlu0 %v259
  %v261 = vpop.xlane.xlu0 %260
  %v262 = vsel %vm72, %v71, 0.0
  %263 = vadd.xlane.f32.xlu0 %v262
  %v264 = vpop.xlane.xlu0 %263
  %v265 = vmul.f32 %v75, 0.015625
  %v266 = vmul.f32 %v78, 0.015625
  %v267 = vmul.f32 %v81, 0.015625
  %v268 = vmul.f32 %v84, 0.015625
  %v269 = vmul.f32 %v87, 0.015625
  %v270 = vmul.f32 %v90, 0.015625
  %v271 = vmul.f32 %v93, 0.015625
  %v272 = vmul.f32 %v96, 0.015625
  %v273 = vmul.f32 %v99, 0.015625
  %v274 = vmul.f32 %v102, 0.015625
  %v275 = vmul.f32 %v105, 0.015625
  %v276 = vmul.f32 %v108, 0.015625
  %v277 = vmul.f32 %v111, 0.015625
  %v278 = vmul.f32 %v114, 0.015625
  %v279 = vmul.f32 %v117, 0.015625
  %v280 = vmul.f32 %v120, 0.015625
  %v281 = vmul.f32 %v123, 0.015625
  %v282 = vmul.f32 %v126, 0.015625
  %v283 = vmul.f32 %v129, 0.015625
  %v284 = vmul.f32 %v132, 0.015625
  %v285 = vmul.f32 %v135, 0.015625
  %v286 = vmul.f32 %v138, 0.015625
  %v287 = vmul.f32 %v141, 0.015625
  %v288 = vmul.f32 %v144, 0.015625
  %v289 = vmul.f32 %v147, 0.015625
  %v290 = vmul.f32 %v150, 0.015625
  %v291 = vmul.f32 %v153, 0.015625
  %v292 = vmul.f32 %v156, 0.015625
  %v293 = vmul.f32 %v159, 0.015625
  %v294 = vmul.f32 %v162, 0.015625
  %v295 = vmul.f32 %v165, 0.015625
  %v296 = vmul.f32 %v168, 0.015625
  %v297 = vmul.f32 %v171, 0.015625
  %v298 = vmul.f32 %v174, 0.015625
  %v299 = vmul.f32 %v177, 0.015625
  %v300 = vmul.f32 %v180, 0.015625
  %v301 = vmul.f32 %v183, 0.015625
  %v302 = vmul.f32 %v186, 0.015625
  %v303 = vmul.f32 %v189, 0.015625
  %v304 = vmul.f32 %v192, 0.015625
  %v305 = vmul.f32 %v195, 0.015625
  %v306 = vmul.f32 %v198, 0.015625
  %v307 = vmul.f32 %v201, 0.015625
  %v308 = vmul.f32 %v204, 0.015625
  %v309 = vmul.f32 %v207, 0.015625
  %v310 = vmul.f32 %v210, 0.015625
  %v311 = vmul.f32 %v213, 0.015625
  %v312 = vmul.f32 %v216, 0.015625
  %v313 = vmul.f32 %v219, 0.015625
  %v314 = vmul.f32 %v222, 0.015625
  %v315 = vmul.f32 %v225, 0.015625
  %v316 = vmul.f32 %v228, 0.015625
  %v317 = vmul.f32 %v231, 0.015625
  %v318 = vmul.f32 %v234, 0.015625
  %v319 = vmul.f32 %v237, 0.015625
  %v320 = vmul.f32 %v240, 0.015625
  %v321 = vmul.f32 %v243, 0.015625
  %v322 = vmul.f32 %v246, 0.015625
  %v323 = vmul.f32 %v249, 0.015625
  %v324 = vmul.f32 %v252, 0.015625
  %v325 = vmul.f32 %v255, 0.015625
  %v326 = vmul.f32 %v258, 0.015625
  %v327 = vmul.f32 %v261, 0.015625
  %v328 = vmul.f32 %v264, 0.015625
  %v394 = vunpack.c.l.s4 269488144
  %v395 = vunpack.c.0.s8 %v394
  %v396 = vlaneseq
  %v397 = vshrl.u32 %v396, 7
  %v398 = vsub.s32 %v395, %v397
  %v399 = vrot.slane %v265, %v398
  %v401 = vunpack.c.l.s4 842150450
  %v402 = vunpack.c.0.s8 %v401
  %v403 = vlaneseq
  %v404 = vshrl.u32 %v403, 7
  %v405 = vsub.s32 %v402, %v404
  %v406 = vrot.slane %v265, %v405
  %v408 = vunpack.c.l.s4 1414812756
  %v409 = vunpack.c.0.s8 %v408
  %v410 = vlaneseq
  %v411 = vshrl.u32 %v410, 7
  %v412 = vsub.s32 %v409, %v411
  %v413 = vrot.slane %v265, %v412
  %v415 = vunpack.c.l.s4 1987475062
  %v416 = vunpack.c.0.s8 %v415
  %v417 = vlaneseq
  %v418 = vshrl.u32 %v417, 7
  %v419 = vsub.s32 %v416, %v418
  %v420 = vrot.slane %v265, %v419
  %v422 = vunpack.c.l.s4 269488144
  %v423 = vunpack.c.0.s8 %v422
  %v424 = vlaneseq
  %v425 = vshrl.u32 %v424, 7
  %v426 = vsub.s32 %v423, %v425
  %v427 = vrot.slane %v266, %v426
  %v429 = vunpack.c.l.s4 842150450
  %v430 = vunpack.c.0.s8 %v429
  %v431 = vlaneseq
  %v432 = vshrl.u32 %v431, 7
  %v433 = vsub.s32 %v430, %v432
  %v434 = vrot.slane %v266, %v433
  %v436 = vunpack.c.l.s4 1414812756
  %v437 = vunpack.c.0.s8 %v436
  %v438 = vlaneseq
  %v439 = vshrl.u32 %v438, 7
  %v440 = vsub.s32 %v437, %v439
  %v441 = vrot.slane %v266, %v440
  %v443 = vunpack.c.l.s4 1987475062
  %v444 = vunpack.c.0.s8 %v443
  %v445 = vlaneseq
  %v446 = vshrl.u32 %v445, 7
  %v447 = vsub.s32 %v444, %v446
  %v448 = vrot.slane %v266, %v447
  %v450 = vunpack.c.l.s4 269488144
  %v451 = vunpack.c.0.s8 %v450
  %v452 = vlaneseq
  %v453 = vshrl.u32 %v452, 7
  %v454 = vsub.s32 %v451, %v453
  %v455 = vrot.slane %v267, %v454
  %v457 = vunpack.c.l.s4 842150450
  %v458 = vunpack.c.0.s8 %v457
  %v459 = vlaneseq
  %v460 = vshrl.u32 %v459, 7
  %v461 = vsub.s32 %v458, %v460
  %v462 = vrot.slane %v267, %v461
  %v464 = vunpack.c.l.s4 1414812756
  %v465 = vunpack.c.0.s8 %v464
  %v466 = vlaneseq
  %v467 = vshrl.u32 %v466, 7
  %v468 = vsub.s32 %v465, %v467
  %v469 = vrot.slane %v267, %v468
  %v471 = vunpack.c.l.s4 1987475062
  %v472 = vunpack.c.0.s8 %v471
  %v473 = vlaneseq
  %v474 = vshrl.u32 %v473, 7
  %v475 = vsub.s32 %v472, %v474
  %v476 = vrot.slane %v267, %v475
  %v478 = vunpack.c.l.s4 269488144
  %v479 = vunpack.c.0.s8 %v478
  %v480 = vlaneseq
  %v481 = vshrl.u32 %v480, 7
  %v482 = vsub.s32 %v479, %v481
  %v483 = vrot.slane %v268, %v482
  %v485 = vunpack.c.l.s4 842150450
  %v486 = vunpack.c.0.s8 %v485
  %v487 = vlaneseq
  %v488 = vshrl.u32 %v487, 7
  %v489 = vsub.s32 %v486, %v488
  %v490 = vrot.slane %v268, %v489
  %v492 = vunpack.c.l.s4 1414812756
  %v493 = vunpack.c.0.s8 %v492
  %v494 = vlaneseq
  %v495 = vshrl.u32 %v494, 7
  %v496 = vsub.s32 %v493, %v495
  %v497 = vrot.slane %v268, %v496
  %v499 = vunpack.c.l.s4 1987475062
  %v500 = vunpack.c.0.s8 %v499
  %v501 = vlaneseq
  %v502 = vshrl.u32 %v501, 7
  %v503 = vsub.s32 %v500, %v502
  %v504 = vrot.slane %v268, %v503
  %v506 = vunpack.c.l.s4 269488144
  %v507 = vunpack.c.0.s8 %v506
  %v508 = vlaneseq
  %v509 = vshrl.u32 %v508, 7
  %v510 = vsub.s32 %v507, %v509
  %v511 = vrot.slane %v269, %v510
  %v513 = vunpack.c.l.s4 842150450
  %v514 = vunpack.c.0.s8 %v513
  %v515 = vlaneseq
  %v516 = vshrl.u32 %v515, 7
  %v517 = vsub.s32 %v514, %v516
  %v518 = vrot.slane %v269, %v517
  %v520 = vunpack.c.l.s4 1414812756
  %v521 = vunpack.c.0.s8 %v520
  %v522 = vlaneseq
  %v523 = vshrl.u32 %v522, 7
  %v524 = vsub.s32 %v521, %v523
  %v525 = vrot.slane %v269, %v524
  %v527 = vunpack.c.l.s4 1987475062
  %v528 = vunpack.c.0.s8 %v527
  %v529 = vlaneseq
  %v530 = vshrl.u32 %v529, 7
  %v531 = vsub.s32 %v528, %v530
  %v532 = vrot.slane %v269, %v531
  %v534 = vunpack.c.l.s4 269488144
  %v535 = vunpack.c.0.s8 %v534
  %v536 = vlaneseq
  %v537 = vshrl.u32 %v536, 7
  %v538 = vsub.s32 %v535, %v537
  %v539 = vrot.slane %v270, %v538
  %v541 = vunpack.c.l.s4 842150450
  %v542 = vunpack.c.0.s8 %v541
  %v543 = vlaneseq
  %v544 = vshrl.u32 %v543, 7
  %v545 = vsub.s32 %v542, %v544
  %v546 = vrot.slane %v270, %v545
  %v548 = vunpack.c.l.s4 1414812756
  %v549 = vunpack.c.0.s8 %v548
  %v550 = vlaneseq
  %v551 = vshrl.u32 %v550, 7
  %v552 = vsub.s32 %v549, %v551
  %v553 = vrot.slane %v270, %v552
  %v555 = vunpack.c.l.s4 1987475062
  %v556 = vunpack.c.0.s8 %v555
  %v557 = vlaneseq
  %v558 = vshrl.u32 %v557, 7
  %v559 = vsub.s32 %v556, %v558
  %v560 = vrot.slane %v270, %v559
  %v562 = vunpack.c.l.s4 269488144
  %v563 = vunpack.c.0.s8 %v562
  %v564 = vlaneseq
  %v565 = vshrl.u32 %v564, 7
  %v566 = vsub.s32 %v563, %v565
  %v567 = vrot.slane %v271, %v566
  %v569 = vunpack.c.l.s4 842150450
  %v570 = vunpack.c.0.s8 %v569
  %v571 = vlaneseq
  %v572 = vshrl.u32 %v571, 7
  %v573 = vsub.s32 %v570, %v572
  %v574 = vrot.slane %v271, %v573
  %v576 = vunpack.c.l.s4 1414812756
  %v577 = vunpack.c.0.s8 %v576
  %v578 = vlaneseq
  %v579 = vshrl.u32 %v578, 7
  %v580 = vsub.s32 %v577, %v579
  %v581 = vrot.slane %v271, %v580
  %v583 = vunpack.c.l.s4 1987475062
  %v584 = vunpack.c.0.s8 %v583
  %v585 = vlaneseq
  %v586 = vshrl.u32 %v585, 7
  %v587 = vsub.s32 %v584, %v586
  %v588 = vrot.slane %v271, %v587
  %v590 = vunpack.c.l.s4 269488144
  %v591 = vunpack.c.0.s8 %v590
  %v592 = vlaneseq
  %v593 = vshrl.u32 %v592, 7
  %v594 = vsub.s32 %v591, %v593
  %v595 = vrot.slane %v272, %v594
  %v597 = vunpack.c.l.s4 842150450
  %v598 = vunpack.c.0.s8 %v597
  %v599 = vlaneseq
  %v600 = vshrl.u32 %v599, 7
  %v601 = vsub.s32 %v598, %v600
  %v602 = vrot.slane %v272, %v601
  %v604 = vunpack.c.l.s4 1414812756
  %v605 = vunpack.c.0.s8 %v604
  %v606 = vlaneseq
  %v607 = vshrl.u32 %v606, 7
  %v608 = vsub.s32 %v605, %v607
  %v609 = vrot.slane %v272, %v608
  %v611 = vunpack.c.l.s4 1987475062
  %v612 = vunpack.c.0.s8 %v611
  %v613 = vlaneseq
  %v614 = vshrl.u32 %v613, 7
  %v615 = vsub.s32 %v612, %v614
  %v616 = vrot.slane %v272, %v615
  %v618 = vunpack.c.l.s4 269488144
  %v619 = vunpack.c.0.s8 %v618
  %v620 = vlaneseq
  %v621 = vshrl.u32 %v620, 7
  %v622 = vsub.s32 %v619, %v621
  %v623 = vrot.slane %v273, %v622
  %v625 = vunpack.c.l.s4 842150450
  %v626 = vunpack.c.0.s8 %v625
  %v627 = vlaneseq
  %v628 = vshrl.u32 %v627, 7
  %v629 = vsub.s32 %v626, %v628
  %v630 = vrot.slane %v273, %v629
  %v632 = vunpack.c.l.s4 1414812756
  %v633 = vunpack.c.0.s8 %v632
  %v634 = vlaneseq
  %v635 = vshrl.u32 %v634, 7
  %v636 = vsub.s32 %v633, %v635
  %v637 = vrot.slane %v273, %v636
  %v639 = vunpack.c.l.s4 1987475062
  %v640 = vunpack.c.0.s8 %v639
  %v641 = vlaneseq
  %v642 = vshrl.u32 %v641, 7
  %v643 = vsub.s32 %v640, %v642
  %v644 = vrot.slane %v273, %v643
  %v646 = vunpack.c.l.s4 269488144
  %v647 = vunpack.c.0.s8 %v646
  %v648 = vlaneseq
  %v649 = vshrl.u32 %v648, 7
  %v650 = vsub.s32 %v647, %v649
  %v651 = vrot.slane %v274, %v650
  %v653 = vunpack.c.l.s4 842150450
  %v654 = vunpack.c.0.s8 %v653
  %v655 = vlaneseq
  %v656 = vshrl.u32 %v655, 7
  %v657 = vsub.s32 %v654, %v656
  %v658 = vrot.slane %v274, %v657
  %v660 = vunpack.c.l.s4 1414812756
  %v661 = vunpack.c.0.s8 %v660
  %v662 = vlaneseq
  %v663 = vshrl.u32 %v662, 7
  %v664 = vsub.s32 %v661, %v663
  %v665 = vrot.slane %v274, %v664
  %v667 = vunpack.c.l.s4 1987475062
  %v668 = vunpack.c.0.s8 %v667
  %v669 = vlaneseq
  %v670 = vshrl.u32 %v669, 7
  %v671 = vsub.s32 %v668, %v670
  %v672 = vrot.slane %v274, %v671
  %v674 = vunpack.c.l.s4 269488144
  %v675 = vunpack.c.0.s8 %v674
  %v676 = vlaneseq
  %v677 = vshrl.u32 %v676, 7
  %v678 = vsub.s32 %v675, %v677
  %v679 = vrot.slane %v275, %v678
  %v681 = vunpack.c.l.s4 842150450
  %v682 = vunpack.c.0.s8 %v681
  %v683 = vlaneseq
  %v684 = vshrl.u32 %v683, 7
  %v685 = vsub.s32 %v682, %v684
  %v686 = vrot.slane %v275, %v685
  %v688 = vunpack.c.l.s4 1414812756
  %v689 = vunpack.c.0.s8 %v688
  %v690 = vlaneseq
  %v691 = vshrl.u32 %v690, 7
  %v692 = vsub.s32 %v689, %v691
  %v693 = vrot.slane %v275, %v692
  %v695 = vunpack.c.l.s4 1987475062
  %v696 = vunpack.c.0.s8 %v695
  %v697 = vlaneseq
  %v698 = vshrl.u32 %v697, 7
  %v699 = vsub.s32 %v696, %v698
  %v700 = vrot.slane %v275, %v699
  %v702 = vunpack.c.l.s4 269488144
  %v703 = vunpack.c.0.s8 %v702
  %v704 = vlaneseq
  %v705 = vshrl.u32 %v704, 7
  %v706 = vsub.s32 %v703, %v705
  %v707 = vrot.slane %v276, %v706
  %v709 = vunpack.c.l.s4 842150450
  %v710 = vunpack.c.0.s8 %v709
  %v711 = vlaneseq
  %v712 = vshrl.u32 %v711, 7
  %v713 = vsub.s32 %v710, %v712
  %v714 = vrot.slane %v276, %v713
  %v716 = vunpack.c.l.s4 1414812756
  %v717 = vunpack.c.0.s8 %v716
  %v718 = vlaneseq
  %v719 = vshrl.u32 %v718, 7
  %v720 = vsub.s32 %v717, %v719
  %v721 = vrot.slane %v276, %v720
  %v723 = vunpack.c.l.s4 1987475062
  %v724 = vunpack.c.0.s8 %v723
  %v725 = vlaneseq
  %v726 = vshrl.u32 %v725, 7
  %v727 = vsub.s32 %v724, %v726
  %v728 = vrot.slane %v276, %v727
  %v730 = vunpack.c.l.s4 269488144
  %v731 = vunpack.c.0.s8 %v730
  %v732 = vlaneseq
  %v733 = vshrl.u32 %v732, 7
  %v734 = vsub.s32 %v731, %v733
  %v735 = vrot.slane %v277, %v734
  %v737 = vunpack.c.l.s4 842150450
  %v738 = vunpack.c.0.s8 %v737
  %v739 = vlaneseq
  %v740 = vshrl.u32 %v739, 7
  %v741 = vsub.s32 %v738, %v740
  %v742 = vrot.slane %v277, %v741
  %v744 = vunpack.c.l.s4 1414812756
  %v745 = vunpack.c.0.s8 %v744
  %v746 = vlaneseq
  %v747 = vshrl.u32 %v746, 7
  %v748 = vsub.s32 %v745, %v747
  %v749 = vrot.slane %v277, %v748
  %v751 = vunpack.c.l.s4 1987475062
  %v752 = vunpack.c.0.s8 %v751
  %v753 = vlaneseq
  %v754 = vshrl.u32 %v753, 7
  %v755 = vsub.s32 %v752, %v754
  %v756 = vrot.slane %v277, %v755
  %v758 = vunpack.c.l.s4 269488144
  %v759 = vunpack.c.0.s8 %v758
  %v760 = vlaneseq
  %v761 = vshrl.u32 %v760, 7
  %v762 = vsub.s32 %v759, %v761
  %v763 = vrot.slane %v278, %v762
  %v765 = vunpack.c.l.s4 842150450
  %v766 = vunpack.c.0.s8 %v765
  %v767 = vlaneseq
  %v768 = vshrl.u32 %v767, 7
  %v769 = vsub.s32 %v766, %v768
  %v770 = vrot.slane %v278, %v769
  %v772 = vunpack.c.l.s4 1414812756
  %v773 = vunpack.c.0.s8 %v772
  %v774 = vlaneseq
  %v775 = vshrl.u32 %v774, 7
  %v776 = vsub.s32 %v773, %v775
  %v777 = vrot.slane %v278, %v776
  %v779 = vunpack.c.l.s4 1987475062
  %v780 = vunpack.c.0.s8 %v779
  %v781 = vlaneseq
  %v782 = vshrl.u32 %v781, 7
  %v783 = vsub.s32 %v780, %v782
  %v784 = vrot.slane %v278, %v783
  %v786 = vunpack.c.l.s4 269488144
  %v787 = vunpack.c.0.s8 %v786
  %v788 = vlaneseq
  %v789 = vshrl.u32 %v788, 7
  %v790 = vsub.s32 %v787, %v789
  %v791 = vrot.slane %v279, %v790
  %v793 = vunpack.c.l.s4 842150450
  %v794 = vunpack.c.0.s8 %v793
  %v795 = vlaneseq
  %v796 = vshrl.u32 %v795, 7
  %v797 = vsub.s32 %v794, %v796
  %v798 = vrot.slane %v279, %v797
  %v800 = vunpack.c.l.s4 1414812756
  %v801 = vunpack.c.0.s8 %v800
  %v802 = vlaneseq
  %v803 = vshrl.u32 %v802, 7
  %v804 = vsub.s32 %v801, %v803
  %v805 = vrot.slane %v279, %v804
  %v807 = vunpack.c.l.s4 1987475062
  %v808 = vunpack.c.0.s8 %v807
  %v809 = vlaneseq
  %v810 = vshrl.u32 %v809, 7
  %v811 = vsub.s32 %v808, %v810
  %v812 = vrot.slane %v279, %v811
  %v814 = vunpack.c.l.s4 269488144
  %v815 = vunpack.c.0.s8 %v814
  %v816 = vlaneseq
  %v817 = vshrl.u32 %v816, 7
  %v818 = vsub.s32 %v815, %v817
  %v819 = vrot.slane %v280, %v818
  %v821 = vunpack.c.l.s4 842150450
  %v822 = vunpack.c.0.s8 %v821
  %v823 = vlaneseq
  %v824 = vshrl.u32 %v823, 7
  %v825 = vsub.s32 %v822, %v824
  %v826 = vrot.slane %v280, %v825
  %v828 = vunpack.c.l.s4 1414812756
  %v829 = vunpack.c.0.s8 %v828
  %v830 = vlaneseq
  %v831 = vshrl.u32 %v830, 7
  %v832 = vsub.s32 %v829, %v831
  %v833 = vrot.slane %v280, %v832
  %v835 = vunpack.c.l.s4 1987475062
  %v836 = vunpack.c.0.s8 %v835
  %v837 = vlaneseq
  %v838 = vshrl.u32 %v837, 7
  %v839 = vsub.s32 %v836, %v838
  %v840 = vrot.slane %v280, %v839
  %v842 = vunpack.c.l.s4 269488144
  %v843 = vunpack.c.0.s8 %v842
  %v844 = vlaneseq
  %v845 = vshrl.u32 %v844, 7
  %v846 = vsub.s32 %v843, %v845
  %v847 = vrot.slane %v281, %v846
  %v849 = vunpack.c.l.s4 842150450
  %v850 = vunpack.c.0.s8 %v849
  %v851 = vlaneseq
  %v852 = vshrl.u32 %v851, 7
  %v853 = vsub.s32 %v850, %v852
  %v854 = vrot.slane %v281, %v853
  %v856 = vunpack.c.l.s4 1414812756
  %v857 = vunpack.c.0.s8 %v856
  %v858 = vlaneseq
  %v859 = vshrl.u32 %v858, 7
  %v860 = vsub.s32 %v857, %v859
  %v861 = vrot.slane %v281, %v860
  %v863 = vunpack.c.l.s4 1987475062
  %v864 = vunpack.c.0.s8 %v863
  %v865 = vlaneseq
  %v866 = vshrl.u32 %v865, 7
  %v867 = vsub.s32 %v864, %v866
  %v868 = vrot.slane %v281, %v867
  %v870 = vunpack.c.l.s4 269488144
  %v871 = vunpack.c.0.s8 %v870
  %v872 = vlaneseq
  %v873 = vshrl.u32 %v872, 7
  %v874 = vsub.s32 %v871, %v873
  %v875 = vrot.slane %v282, %v874
  %v877 = vunpack.c.l.s4 842150450
  %v878 = vunpack.c.0.s8 %v877
  %v879 = vlaneseq
  %v880 = vshrl.u32 %v879, 7
  %v881 = vsub.s32 %v878, %v880
  %v882 = vrot.slane %v282, %v881
  %v884 = vunpack.c.l.s4 1414812756
  %v885 = vunpack.c.0.s8 %v884
  %v886 = vlaneseq
  %v887 = vshrl.u32 %v886, 7
  %v888 = vsub.s32 %v885, %v887
  %v889 = vrot.slane %v282, %v888
  %v891 = vunpack.c.l.s4 1987475062
  %v892 = vunpack.c.0.s8 %v891
  %v893 = vlaneseq
  %v894 = vshrl.u32 %v893, 7
  %v895 = vsub.s32 %v892, %v894
  %v896 = vrot.slane %v282, %v895
  %v898 = vunpack.c.l.s4 269488144
  %v899 = vunpack.c.0.s8 %v898
  %v900 = vlaneseq
  %v901 = vshrl.u32 %v900, 7
  %v902 = vsub.s32 %v899, %v901
  %v903 = vrot.slane %v283, %v902
  %v905 = vunpack.c.l.s4 842150450
  %v906 = vunpack.c.0.s8 %v905
  %v907 = vlaneseq
  %v908 = vshrl.u32 %v907, 7
  %v909 = vsub.s32 %v906, %v908
  %v910 = vrot.slane %v283, %v909
  %v912 = vunpack.c.l.s4 1414812756
  %v913 = vunpack.c.0.s8 %v912
  %v914 = vlaneseq
  %v915 = vshrl.u32 %v914, 7
  %v916 = vsub.s32 %v913, %v915
  %v917 = vrot.slane %v283, %v916
  %v919 = vunpack.c.l.s4 1987475062
  %v920 = vunpack.c.0.s8 %v919
  %v921 = vlaneseq
  %v922 = vshrl.u32 %v921, 7
  %v923 = vsub.s32 %v920, %v922
  %v924 = vrot.slane %v283, %v923
  %v926 = vunpack.c.l.s4 269488144
  %v927 = vunpack.c.0.s8 %v926
  %v928 = vlaneseq
  %v929 = vshrl.u32 %v928, 7
  %v930 = vsub.s32 %v927, %v929
  %v931 = vrot.slane %v284, %v930
  %v933 = vunpack.c.l.s4 842150450
  %v934 = vunpack.c.0.s8 %v933
  %v935 = vlaneseq
  %v936 = vshrl.u32 %v935, 7
  %v937 = vsub.s32 %v934, %v936
  %v938 = vrot.slane %v284, %v937
  %v940 = vunpack.c.l.s4 1414812756
  %v941 = vunpack.c.0.s8 %v940
  %v942 = vlaneseq
  %v943 = vshrl.u32 %v942, 7
  %v944 = vsub.s32 %v941, %v943
  %v945 = vrot.slane %v284, %v944
  %v947 = vunpack.c.l.s4 1987475062
  %v948 = vunpack.c.0.s8 %v947
  %v949 = vlaneseq
  %v950 = vshrl.u32 %v949, 7
  %v951 = vsub.s32 %v948, %v950
  %v952 = vrot.slane %v284, %v951
  %v954 = vunpack.c.l.s4 269488144
  %v955 = vunpack.c.0.s8 %v954
  %v956 = vlaneseq
  %v957 = vshrl.u32 %v956, 7
  %v958 = vsub.s32 %v955, %v957
  %v959 = vrot.slane %v285, %v958
  %v961 = vunpack.c.l.s4 842150450
  %v962 = vunpack.c.0.s8 %v961
  %v963 = vlaneseq
  %v964 = vshrl.u32 %v963, 7
  %v965 = vsub.s32 %v962, %v964
  %v966 = vrot.slane %v285, %v965
  %v968 = vunpack.c.l.s4 1414812756
  %v969 = vunpack.c.0.s8 %v968
  %v970 = vlaneseq
  %v971 = vshrl.u32 %v970, 7
  %v972 = vsub.s32 %v969, %v971
  %v973 = vrot.slane %v285, %v972
  %v975 = vunpack.c.l.s4 1987475062
  %v976 = vunpack.c.0.s8 %v975
  %v977 = vlaneseq
  %v978 = vshrl.u32 %v977, 7
  %v979 = vsub.s32 %v976, %v978
  %v980 = vrot.slane %v285, %v979
  %v982 = vunpack.c.l.s4 269488144
  %v983 = vunpack.c.0.s8 %v982
  %v984 = vlaneseq
  %v985 = vshrl.u32 %v984, 7
  %v986 = vsub.s32 %v983, %v985
  %v987 = vrot.slane %v286, %v986
  %v989 = vunpack.c.l.s4 842150450
  %v990 = vunpack.c.0.s8 %v989
  %v991 = vlaneseq
  %v992 = vshrl.u32 %v991, 7
  %v993 = vsub.s32 %v990, %v992
  %v994 = vrot.slane %v286, %v993
  %v996 = vunpack.c.l.s4 1414812756
  %v997 = vunpack.c.0.s8 %v996
  %v998 = vlaneseq
  %v999 = vshrl.u32 %v998, 7
  %v1000 = vsub.s32 %v997, %v999
  %v1001 = vrot.slane %v286, %v1000
  %v1003 = vunpack.c.l.s4 1987475062
  %v1004 = vunpack.c.0.s8 %v1003
  %v1005 = vlaneseq
  %v1006 = vshrl.u32 %v1005, 7
  %v1007 = vsub.s32 %v1004, %v1006
  %v1008 = vrot.slane %v286, %v1007
  %v1010 = vunpack.c.l.s4 269488144
  %v1011 = vunpack.c.0.s8 %v1010
  %v1012 = vlaneseq
  %v1013 = vshrl.u32 %v1012, 7
  %v1014 = vsub.s32 %v1011, %v1013
  %v1015 = vrot.slane %v287, %v1014
  %v1017 = vunpack.c.l.s4 842150450
  %v1018 = vunpack.c.0.s8 %v1017
  %v1019 = vlaneseq
  %v1020 = vshrl.u32 %v1019, 7
  %v1021 = vsub.s32 %v1018, %v1020
  %v1022 = vrot.slane %v287, %v1021
  %v1024 = vunpack.c.l.s4 1414812756
  %v1025 = vunpack.c.0.s8 %v1024
  %v1026 = vlaneseq
  %v1027 = vshrl.u32 %v1026, 7
  %v1028 = vsub.s32 %v1025, %v1027
  %v1029 = vrot.slane %v287, %v1028
  %v1031 = vunpack.c.l.s4 1987475062
  %v1032 = vunpack.c.0.s8 %v1031
  %v1033 = vlaneseq
  %v1034 = vshrl.u32 %v1033, 7
  %v1035 = vsub.s32 %v1032, %v1034
  %v1036 = vrot.slane %v287, %v1035
  %v1038 = vunpack.c.l.s4 269488144
  %v1039 = vunpack.c.0.s8 %v1038
  %v1040 = vlaneseq
  %v1041 = vshrl.u32 %v1040, 7
  %v1042 = vsub.s32 %v1039, %v1041
  %v1043 = vrot.slane %v288, %v1042
  %v1045 = vunpack.c.l.s4 842150450
  %v1046 = vunpack.c.0.s8 %v1045
  %v1047 = vlaneseq
  %v1048 = vshrl.u32 %v1047, 7
  %v1049 = vsub.s32 %v1046, %v1048
  %v1050 = vrot.slane %v288, %v1049
  %v1052 = vunpack.c.l.s4 1414812756
  %v1053 = vunpack.c.0.s8 %v1052
  %v1054 = vlaneseq
  %v1055 = vshrl.u32 %v1054, 7
  %v1056 = vsub.s32 %v1053, %v1055
  %v1057 = vrot.slane %v288, %v1056
  %v1059 = vunpack.c.l.s4 1987475062
  %v1060 = vunpack.c.0.s8 %v1059
  %v1061 = vlaneseq
  %v1062 = vshrl.u32 %v1061, 7
  %v1063 = vsub.s32 %v1060, %v1062
  %v1064 = vrot.slane %v288, %v1063
  %v1066 = vunpack.c.l.s4 269488144
  %v1067 = vunpack.c.0.s8 %v1066
  %v1068 = vlaneseq
  %v1069 = vshrl.u32 %v1068, 7
  %v1070 = vsub.s32 %v1067, %v1069
  %v1071 = vrot.slane %v289, %v1070
  %v1073 = vunpack.c.l.s4 842150450
  %v1074 = vunpack.c.0.s8 %v1073
  %v1075 = vlaneseq
  %v1076 = vshrl.u32 %v1075, 7
  %v1077 = vsub.s32 %v1074, %v1076
  %v1078 = vrot.slane %v289, %v1077
  %v1080 = vunpack.c.l.s4 1414812756
  %v1081 = vunpack.c.0.s8 %v1080
  %v1082 = vlaneseq
  %v1083 = vshrl.u32 %v1082, 7
  %v1084 = vsub.s32 %v1081, %v1083
  %v1085 = vrot.slane %v289, %v1084
  %v1087 = vunpack.c.l.s4 1987475062
  %v1088 = vunpack.c.0.s8 %v1087
  %v1089 = vlaneseq
  %v1090 = vshrl.u32 %v1089, 7
  %v1091 = vsub.s32 %v1088, %v1090
  %v1092 = vrot.slane %v289, %v1091
  %v1094 = vunpack.c.l.s4 269488144
  %v1095 = vunpack.c.0.s8 %v1094
  %v1096 = vlaneseq
  %v1097 = vshrl.u32 %v1096, 7
  %v1098 = vsub.s32 %v1095, %v1097
  %v1099 = vrot.slane %v290, %v1098
  %v1101 = vunpack.c.l.s4 842150450
  %v1102 = vunpack.c.0.s8 %v1101
  %v1103 = vlaneseq
  %v1104 = vshrl.u32 %v1103, 7
  %v1105 = vsub.s32 %v1102, %v1104
  %v1106 = vrot.slane %v290, %v1105
  %v1108 = vunpack.c.l.s4 1414812756
  %v1109 = vunpack.c.0.s8 %v1108
  %v1110 = vlaneseq
  %v1111 = vshrl.u32 %v1110, 7
  %v1112 = vsub.s32 %v1109, %v1111
  %v1113 = vrot.slane %v290, %v1112
  %v1115 = vunpack.c.l.s4 1987475062
  %v1116 = vunpack.c.0.s8 %v1115
  %v1117 = vlaneseq
  %v1118 = vshrl.u32 %v1117, 7
  %v1119 = vsub.s32 %v1116, %v1118
  %v1120 = vrot.slane %v290, %v1119
  %v1122 = vunpack.c.l.s4 269488144
  %v1123 = vunpack.c.0.s8 %v1122
  %v1124 = vlaneseq
  %v1125 = vshrl.u32 %v1124, 7
  %v1126 = vsub.s32 %v1123, %v1125
  %v1127 = vrot.slane %v291, %v1126
  %v1129 = vunpack.c.l.s4 842150450
  %v1130 = vunpack.c.0.s8 %v1129
  %v1131 = vlaneseq
  %v1132 = vshrl.u32 %v1131, 7
  %v1133 = vsub.s32 %v1130, %v1132
  %v1134 = vrot.slane %v291, %v1133
  %v1136 = vunpack.c.l.s4 1414812756
  %v1137 = vunpack.c.0.s8 %v1136
  %v1138 = vlaneseq
  %v1139 = vshrl.u32 %v1138, 7
  %v1140 = vsub.s32 %v1137, %v1139
  %v1141 = vrot.slane %v291, %v1140
  %v1143 = vunpack.c.l.s4 1987475062
  %v1144 = vunpack.c.0.s8 %v1143
  %v1145 = vlaneseq
  %v1146 = vshrl.u32 %v1145, 7
  %v1147 = vsub.s32 %v1144, %v1146
  %v1148 = vrot.slane %v291, %v1147
  %v1150 = vunpack.c.l.s4 269488144
  %v1151 = vunpack.c.0.s8 %v1150
  %v1152 = vlaneseq
  %v1153 = vshrl.u32 %v1152, 7
  %v1154 = vsub.s32 %v1151, %v1153
  %v1155 = vrot.slane %v292, %v1154
  %v1157 = vunpack.c.l.s4 842150450
  %v1158 = vunpack.c.0.s8 %v1157
  %v1159 = vlaneseq
  %v1160 = vshrl.u32 %v1159, 7
  %v1161 = vsub.s32 %v1158, %v1160
  %v1162 = vrot.slane %v292, %v1161
  %v1164 = vunpack.c.l.s4 1414812756
  %v1165 = vunpack.c.0.s8 %v1164
  %v1166 = vlaneseq
  %v1167 = vshrl.u32 %v1166, 7
  %v1168 = vsub.s32 %v1165, %v1167
  %v1169 = vrot.slane %v292, %v1168
  %v1171 = vunpack.c.l.s4 1987475062
  %v1172 = vunpack.c.0.s8 %v1171
  %v1173 = vlaneseq
  %v1174 = vshrl.u32 %v1173, 7
  %v1175 = vsub.s32 %v1172, %v1174
  %v1176 = vrot.slane %v292, %v1175
  %v1178 = vunpack.c.l.s4 269488144
  %v1179 = vunpack.c.0.s8 %v1178
  %v1180 = vlaneseq
  %v1181 = vshrl.u32 %v1180, 7
  %v1182 = vsub.s32 %v1179, %v1181
  %v1183 = vrot.slane %v293, %v1182
  %v1185 = vunpack.c.l.s4 842150450
  %v1186 = vunpack.c.0.s8 %v1185
  %v1187 = vlaneseq
  %v1188 = vshrl.u32 %v1187, 7
  %v1189 = vsub.s32 %v1186, %v1188
  %v1190 = vrot.slane %v293, %v1189
  %v1192 = vunpack.c.l.s4 1414812756
  %v1193 = vunpack.c.0.s8 %v1192
  %v1194 = vlaneseq
  %v1195 = vshrl.u32 %v1194, 7
  %v1196 = vsub.s32 %v1193, %v1195
  %v1197 = vrot.slane %v293, %v1196
  %v1199 = vunpack.c.l.s4 1987475062
  %v1200 = vunpack.c.0.s8 %v1199
  %v1201 = vlaneseq
  %v1202 = vshrl.u32 %v1201, 7
  %v1203 = vsub.s32 %v1200, %v1202
  %v1204 = vrot.slane %v293, %v1203
  %v1206 = vunpack.c.l.s4 269488144
  %v1207 = vunpack.c.0.s8 %v1206
  %v1208 = vlaneseq
  %v1209 = vshrl.u32 %v1208, 7
  %v1210 = vsub.s32 %v1207, %v1209
  %v1211 = vrot.slane %v294, %v1210
  %v1213 = vunpack.c.l.s4 842150450
  %v1214 = vunpack.c.0.s8 %v1213
  %v1215 = vlaneseq
  %v1216 = vshrl.u32 %v1215, 7
  %v1217 = vsub.s32 %v1214, %v1216
  %v1218 = vrot.slane %v294, %v1217
  %v1220 = vunpack.c.l.s4 1414812756
  %v1221 = vunpack.c.0.s8 %v1220
  %v1222 = vlaneseq
  %v1223 = vshrl.u32 %v1222, 7
  %v1224 = vsub.s32 %v1221, %v1223
  %v1225 = vrot.slane %v294, %v1224
  %v1227 = vunpack.c.l.s4 1987475062
  %v1228 = vunpack.c.0.s8 %v1227
  %v1229 = vlaneseq
  %v1230 = vshrl.u32 %v1229, 7
  %v1231 = vsub.s32 %v1228, %v1230
  %v1232 = vrot.slane %v294, %v1231
  %v1234 = vunpack.c.l.s4 269488144
  %v1235 = vunpack.c.0.s8 %v1234
  %v1236 = vlaneseq
  %v1237 = vshrl.u32 %v1236, 7
  %v1238 = vsub.s32 %v1235, %v1237
  %v1239 = vrot.slane %v295, %v1238
  %v1241 = vunpack.c.l.s4 842150450
  %v1242 = vunpack.c.0.s8 %v1241
  %v1243 = vlaneseq
  %v1244 = vshrl.u32 %v1243, 7
  %v1245 = vsub.s32 %v1242, %v1244
  %v1246 = vrot.slane %v295, %v1245
  %v1248 = vunpack.c.l.s4 1414812756
  %v1249 = vunpack.c.0.s8 %v1248
  %v1250 = vlaneseq
  %v1251 = vshrl.u32 %v1250, 7
  %v1252 = vsub.s32 %v1249, %v1251
  %v1253 = vrot.slane %v295, %v1252
  %v1255 = vunpack.c.l.s4 1987475062
  %v1256 = vunpack.c.0.s8 %v1255
  %v1257 = vlaneseq
  %v1258 = vshrl.u32 %v1257, 7
  %v1259 = vsub.s32 %v1256, %v1258
  %v1260 = vrot.slane %v295, %v1259
  %v1262 = vunpack.c.l.s4 269488144
  %v1263 = vunpack.c.0.s8 %v1262
  %v1264 = vlaneseq
  %v1265 = vshrl.u32 %v1264, 7
  %v1266 = vsub.s32 %v1263, %v1265
  %v1267 = vrot.slane %v296, %v1266
  %v1269 = vunpack.c.l.s4 842150450
  %v1270 = vunpack.c.0.s8 %v1269
  %v1271 = vlaneseq
  %v1272 = vshrl.u32 %v1271, 7
  %v1273 = vsub.s32 %v1270, %v1272
  %v1274 = vrot.slane %v296, %v1273
  %v1276 = vunpack.c.l.s4 1414812756
  %v1277 = vunpack.c.0.s8 %v1276
  %v1278 = vlaneseq
  %v1279 = vshrl.u32 %v1278, 7
  %v1280 = vsub.s32 %v1277, %v1279
  %v1281 = vrot.slane %v296, %v1280
  %v1283 = vunpack.c.l.s4 1987475062
  %v1284 = vunpack.c.0.s8 %v1283
  %v1285 = vlaneseq
  %v1286 = vshrl.u32 %v1285, 7
  %v1287 = vsub.s32 %v1284, %v1286
  %v1288 = vrot.slane %v296, %v1287
  %v1290 = vunpack.c.l.s4 269488144
  %v1291 = vunpack.c.0.s8 %v1290
  %v1292 = vlaneseq
  %v1293 = vshrl.u32 %v1292, 7
  %v1294 = vsub.s32 %v1291, %v1293
  %v1295 = vrot.slane %v297, %v1294
  %v1297 = vunpack.c.l.s4 842150450
  %v1298 = vunpack.c.0.s8 %v1297
  %v1299 = vlaneseq
  %v1300 = vshrl.u32 %v1299, 7
  %v1301 = vsub.s32 %v1298, %v1300
  %v1302 = vrot.slane %v297, %v1301
  %v1304 = vunpack.c.l.s4 1414812756
  %v1305 = vunpack.c.0.s8 %v1304
  %v1306 = vlaneseq
  %v1307 = vshrl.u32 %v1306, 7
  %v1308 = vsub.s32 %v1305, %v1307
  %v1309 = vrot.slane %v297, %v1308
  %v1311 = vunpack.c.l.s4 1987475062
  %v1312 = vunpack.c.0.s8 %v1311
  %v1313 = vlaneseq
  %v1314 = vshrl.u32 %v1313, 7
  %v1315 = vsub.s32 %v1312, %v1314
  %v1316 = vrot.slane %v297, %v1315
  %v1318 = vunpack.c.l.s4 269488144
  %v1319 = vunpack.c.0.s8 %v1318
  %v1320 = vlaneseq
  %v1321 = vshrl.u32 %v1320, 7
  %v1322 = vsub.s32 %v1319, %v1321
  %v1323 = vrot.slane %v298, %v1322
  %v1325 = vunpack.c.l.s4 842150450
  %v1326 = vunpack.c.0.s8 %v1325
  %v1327 = vlaneseq
  %v1328 = vshrl.u32 %v1327, 7
  %v1329 = vsub.s32 %v1326, %v1328
  %v1330 = vrot.slane %v298, %v1329
  %v1332 = vunpack.c.l.s4 1414812756
  %v1333 = vunpack.c.0.s8 %v1332
  %v1334 = vlaneseq
  %v1335 = vshrl.u32 %v1334, 7
  %v1336 = vsub.s32 %v1333, %v1335
  %v1337 = vrot.slane %v298, %v1336
  %v1339 = vunpack.c.l.s4 1987475062
  %v1340 = vunpack.c.0.s8 %v1339
  %v1341 = vlaneseq
  %v1342 = vshrl.u32 %v1341, 7
  %v1343 = vsub.s32 %v1340, %v1342
  %v1344 = vrot.slane %v298, %v1343
  %v1346 = vunpack.c.l.s4 269488144
  %v1347 = vunpack.c.0.s8 %v1346
  %v1348 = vlaneseq
  %v1349 = vshrl.u32 %v1348, 7
  %v1350 = vsub.s32 %v1347, %v1349
  %v1351 = vrot.slane %v299, %v1350
  %v1353 = vunpack.c.l.s4 842150450
  %v1354 = vunpack.c.0.s8 %v1353
  %v1355 = vlaneseq
  %v1356 = vshrl.u32 %v1355, 7
  %v1357 = vsub.s32 %v1354, %v1356
  %v1358 = vrot.slane %v299, %v1357
  %v1360 = vunpack.c.l.s4 1414812756
  %v1361 = vunpack.c.0.s8 %v1360
  %v1362 = vlaneseq
  %v1363 = vshrl.u32 %v1362, 7
  %v1364 = vsub.s32 %v1361, %v1363
  %v1365 = vrot.slane %v299, %v1364
  %v1367 = vunpack.c.l.s4 1987475062
  %v1368 = vunpack.c.0.s8 %v1367
  %v1369 = vlaneseq
  %v1370 = vshrl.u32 %v1369, 7
  %v1371 = vsub.s32 %v1368, %v1370
  %v1372 = vrot.slane %v299, %v1371
  %v1374 = vunpack.c.l.s4 269488144
  %v1375 = vunpack.c.0.s8 %v1374
  %v1376 = vlaneseq
  %v1377 = vshrl.u32 %v1376, 7
  %v1378 = vsub.s32 %v1375, %v1377
  %v1379 = vrot.slane %v300, %v1378
  %v1381 = vunpack.c.l.s4 842150450
  %v1382 = vunpack.c.0.s8 %v1381
  %v1383 = vlaneseq
  %v1384 = vshrl.u32 %v1383, 7
  %v1385 = vsub.s32 %v1382, %v1384
  %v1386 = vrot.slane %v300, %v1385
  %v1388 = vunpack.c.l.s4 1414812756
  %v1389 = vunpack.c.0.s8 %v1388
  %v1390 = vlaneseq
  %v1391 = vshrl.u32 %v1390, 7
  %v1392 = vsub.s32 %v1389, %v1391
  %v1393 = vrot.slane %v300, %v1392
  %v1395 = vunpack.c.l.s4 1987475062
  %v1396 = vunpack.c.0.s8 %v1395
  %v1397 = vlaneseq
  %v1398 = vshrl.u32 %v1397, 7
  %v1399 = vsub.s32 %v1396, %v1398
  %v1400 = vrot.slane %v300, %v1399
  %v1402 = vunpack.c.l.s4 269488144
  %v1403 = vunpack.c.0.s8 %v1402
  %v1404 = vlaneseq
  %v1405 = vshrl.u32 %v1404, 7
  %v1406 = vsub.s32 %v1403, %v1405
  %v1407 = vrot.slane %v301, %v1406
  %v1409 = vunpack.c.l.s4 842150450
  %v1410 = vunpack.c.0.s8 %v1409
  %v1411 = vlaneseq
  %v1412 = vshrl.u32 %v1411, 7
  %v1413 = vsub.s32 %v1410, %v1412
  %v1414 = vrot.slane %v301, %v1413
  %v1416 = vunpack.c.l.s4 1414812756
  %v1417 = vunpack.c.0.s8 %v1416
  %v1418 = vlaneseq
  %v1419 = vshrl.u32 %v1418, 7
  %v1420 = vsub.s32 %v1417, %v1419
  %v1421 = vrot.slane %v301, %v1420
  %v1423 = vunpack.c.l.s4 1987475062
  %v1424 = vunpack.c.0.s8 %v1423
  %v1425 = vlaneseq
  %v1426 = vshrl.u32 %v1425, 7
  %v1427 = vsub.s32 %v1424, %v1426
  %v1428 = vrot.slane %v301, %v1427
  %v1430 = vunpack.c.l.s4 269488144
  %v1431 = vunpack.c.0.s8 %v1430
  %v1432 = vlaneseq
  %v1433 = vshrl.u32 %v1432, 7
  %v1434 = vsub.s32 %v1431, %v1433
  %v1435 = vrot.slane %v302, %v1434
  %v1437 = vunpack.c.l.s4 842150450
  %v1438 = vunpack.c.0.s8 %v1437
  %v1439 = vlaneseq
  %v1440 = vshrl.u32 %v1439, 7
  %v1441 = vsub.s32 %v1438, %v1440
  %v1442 = vrot.slane %v302, %v1441
  %v1444 = vunpack.c.l.s4 1414812756
  %v1445 = vunpack.c.0.s8 %v1444
  %v1446 = vlaneseq
  %v1447 = vshrl.u32 %v1446, 7
  %v1448 = vsub.s32 %v1445, %v1447
  %v1449 = vrot.slane %v302, %v1448
  %v1451 = vunpack.c.l.s4 1987475062
  %v1452 = vunpack.c.0.s8 %v1451
  %v1453 = vlaneseq
  %v1454 = vshrl.u32 %v1453, 7
  %v1455 = vsub.s32 %v1452, %v1454
  %v1456 = vrot.slane %v302, %v1455
  %v1458 = vunpack.c.l.s4 269488144
  %v1459 = vunpack.c.0.s8 %v1458
  %v1460 = vlaneseq
  %v1461 = vshrl.u32 %v1460, 7
  %v1462 = vsub.s32 %v1459, %v1461
  %v1463 = vrot.slane %v303, %v1462
  %v1465 = vunpack.c.l.s4 842150450
  %v1466 = vunpack.c.0.s8 %v1465
  %v1467 = vlaneseq
  %v1468 = vshrl.u32 %v1467, 7
  %v1469 = vsub.s32 %v1466, %v1468
  %v1470 = vrot.slane %v303, %v1469
  %v1472 = vunpack.c.l.s4 1414812756
  %v1473 = vunpack.c.0.s8 %v1472
  %v1474 = vlaneseq
  %v1475 = vshrl.u32 %v1474, 7
  %v1476 = vsub.s32 %v1473, %v1475
  %v1477 = vrot.slane %v303, %v1476
  %v1479 = vunpack.c.l.s4 1987475062
  %v1480 = vunpack.c.0.s8 %v1479
  %v1481 = vlaneseq
  %v1482 = vshrl.u32 %v1481, 7
  %v1483 = vsub.s32 %v1480, %v1482
  %v1484 = vrot.slane %v303, %v1483
  %v1486 = vunpack.c.l.s4 269488144
  %v1487 = vunpack.c.0.s8 %v1486
  %v1488 = vlaneseq
  %v1489 = vshrl.u32 %v1488, 7
  %v1490 = vsub.s32 %v1487, %v1489
  %v1491 = vrot.slane %v304, %v1490
  %v1493 = vunpack.c.l.s4 842150450
  %v1494 = vunpack.c.0.s8 %v1493
  %v1495 = vlaneseq
  %v1496 = vshrl.u32 %v1495, 7
  %v1497 = vsub.s32 %v1494, %v1496
  %v1498 = vrot.slane %v304, %v1497
  %v1500 = vunpack.c.l.s4 1414812756
  %v1501 = vunpack.c.0.s8 %v1500
  %v1502 = vlaneseq
  %v1503 = vshrl.u32 %v1502, 7
  %v1504 = vsub.s32 %v1501, %v1503
  %v1505 = vrot.slane %v304, %v1504
  %v1507 = vunpack.c.l.s4 1987475062
  %v1508 = vunpack.c.0.s8 %v1507
  %v1509 = vlaneseq
  %v1510 = vshrl.u32 %v1509, 7
  %v1511 = vsub.s32 %v1508, %v1510
  %v1512 = vrot.slane %v304, %v1511
  %v1514 = vunpack.c.l.s4 269488144
  %v1515 = vunpack.c.0.s8 %v1514
  %v1516 = vlaneseq
  %v1517 = vshrl.u32 %v1516, 7
  %v1518 = vsub.s32 %v1515, %v1517
  %v1519 = vrot.slane %v305, %v1518
  %v1521 = vunpack.c.l.s4 842150450
  %v1522 = vunpack.c.0.s8 %v1521
  %v1523 = vlaneseq
  %v1524 = vshrl.u32 %v1523, 7
  %v1525 = vsub.s32 %v1522, %v1524
  %v1526 = vrot.slane %v305, %v1525
  %v1528 = vunpack.c.l.s4 1414812756
  %v1529 = vunpack.c.0.s8 %v1528
  %v1530 = vlaneseq
  %v1531 = vshrl.u32 %v1530, 7
  %v1532 = vsub.s32 %v1529, %v1531
  %v1533 = vrot.slane %v305, %v1532
  %v1535 = vunpack.c.l.s4 1987475062
  %v1536 = vunpack.c.0.s8 %v1535
  %v1537 = vlaneseq
  %v1538 = vshrl.u32 %v1537, 7
  %v1539 = vsub.s32 %v1536, %v1538
  %v1540 = vrot.slane %v305, %v1539
  %v1542 = vunpack.c.l.s4 269488144
  %v1543 = vunpack.c.0.s8 %v1542
  %v1544 = vlaneseq
  %v1545 = vshrl.u32 %v1544, 7
  %v1546 = vsub.s32 %v1543, %v1545
  %v1547 = vrot.slane %v306, %v1546
  %v1549 = vunpack.c.l.s4 842150450
  %v1550 = vunpack.c.0.s8 %v1549
  %v1551 = vlaneseq
  %v1552 = vshrl.u32 %v1551, 7
  %v1553 = vsub.s32 %v1550, %v1552
  %v1554 = vrot.slane %v306, %v1553
  %v1556 = vunpack.c.l.s4 1414812756
  %v1557 = vunpack.c.0.s8 %v1556
  %v1558 = vlaneseq
  %v1559 = vshrl.u32 %v1558, 7
  %v1560 = vsub.s32 %v1557, %v1559
  %v1561 = vrot.slane %v306, %v1560
  %v1563 = vunpack.c.l.s4 1987475062
  %v1564 = vunpack.c.0.s8 %v1563
  %v1565 = vlaneseq
  %v1566 = vshrl.u32 %v1565, 7
  %v1567 = vsub.s32 %v1564, %v1566
  %v1568 = vrot.slane %v306, %v1567
  %v1570 = vunpack.c.l.s4 269488144
  %v1571 = vunpack.c.0.s8 %v1570
  %v1572 = vlaneseq
  %v1573 = vshrl.u32 %v1572, 7
  %v1574 = vsub.s32 %v1571, %v1573
  %v1575 = vrot.slane %v307, %v1574
  %v1577 = vunpack.c.l.s4 842150450
  %v1578 = vunpack.c.0.s8 %v1577
  %v1579 = vlaneseq
  %v1580 = vshrl.u32 %v1579, 7
  %v1581 = vsub.s32 %v1578, %v1580
  %v1582 = vrot.slane %v307, %v1581
  %v1584 = vunpack.c.l.s4 1414812756
  %v1585 = vunpack.c.0.s8 %v1584
  %v1586 = vlaneseq
  %v1587 = vshrl.u32 %v1586, 7
  %v1588 = vsub.s32 %v1585, %v1587
  %v1589 = vrot.slane %v307, %v1588
  %v1591 = vunpack.c.l.s4 1987475062
  %v1592 = vunpack.c.0.s8 %v1591
  %v1593 = vlaneseq
  %v1594 = vshrl.u32 %v1593, 7
  %v1595 = vsub.s32 %v1592, %v1594
  %v1596 = vrot.slane %v307, %v1595
  %v1598 = vunpack.c.l.s4 269488144
  %v1599 = vunpack.c.0.s8 %v1598
  %v1600 = vlaneseq
  %v1601 = vshrl.u32 %v1600, 7
  %v1602 = vsub.s32 %v1599, %v1601
  %v1603 = vrot.slane %v308, %v1602
  %v1605 = vunpack.c.l.s4 842150450
  %v1606 = vunpack.c.0.s8 %v1605
  %v1607 = vlaneseq
  %v1608 = vshrl.u32 %v1607, 7
  %v1609 = vsub.s32 %v1606, %v1608
  %v1610 = vrot.slane %v308, %v1609
  %v1612 = vunpack.c.l.s4 1414812756
  %v1613 = vunpack.c.0.s8 %v1612
  %v1614 = vlaneseq
  %v1615 = vshrl.u32 %v1614, 7
  %v1616 = vsub.s32 %v1613, %v1615
  %v1617 = vrot.slane %v308, %v1616
  %v1619 = vunpack.c.l.s4 1987475062
  %v1620 = vunpack.c.0.s8 %v1619
  %v1621 = vlaneseq
  %v1622 = vshrl.u32 %v1621, 7
  %v1623 = vsub.s32 %v1620, %v1622
  %v1624 = vrot.slane %v308, %v1623
  %v1626 = vunpack.c.l.s4 269488144
  %v1627 = vunpack.c.0.s8 %v1626
  %v1628 = vlaneseq
  %v1629 = vshrl.u32 %v1628, 7
  %v1630 = vsub.s32 %v1627, %v1629
  %v1631 = vrot.slane %v309, %v1630
  %v1633 = vunpack.c.l.s4 842150450
  %v1634 = vunpack.c.0.s8 %v1633
  %v1635 = vlaneseq
  %v1636 = vshrl.u32 %v1635, 7
  %v1637 = vsub.s32 %v1634, %v1636
  %v1638 = vrot.slane %v309, %v1637
  %v1640 = vunpack.c.l.s4 1414812756
  %v1641 = vunpack.c.0.s8 %v1640
  %v1642 = vlaneseq
  %v1643 = vshrl.u32 %v1642, 7
  %v1644 = vsub.s32 %v1641, %v1643
  %v1645 = vrot.slane %v309, %v1644
  %v1647 = vunpack.c.l.s4 1987475062
  %v1648 = vunpack.c.0.s8 %v1647
  %v1649 = vlaneseq
  %v1650 = vshrl.u32 %v1649, 7
  %v1651 = vsub.s32 %v1648, %v1650
  %v1652 = vrot.slane %v309, %v1651
  %v1654 = vunpack.c.l.s4 269488144
  %v1655 = vunpack.c.0.s8 %v1654
  %v1656 = vlaneseq
  %v1657 = vshrl.u32 %v1656, 7
  %v1658 = vsub.s32 %v1655, %v1657
  %v1659 = vrot.slane %v310, %v1658
  %v1661 = vunpack.c.l.s4 842150450
  %v1662 = vunpack.c.0.s8 %v1661
  %v1663 = vlaneseq
  %v1664 = vshrl.u32 %v1663, 7
  %v1665 = vsub.s32 %v1662, %v1664
  %v1666 = vrot.slane %v310, %v1665
  %v1668 = vunpack.c.l.s4 1414812756
  %v1669 = vunpack.c.0.s8 %v1668
  %v1670 = vlaneseq
  %v1671 = vshrl.u32 %v1670, 7
  %v1672 = vsub.s32 %v1669, %v1671
  %v1673 = vrot.slane %v310, %v1672
  %v1675 = vunpack.c.l.s4 1987475062
  %v1676 = vunpack.c.0.s8 %v1675
  %v1677 = vlaneseq
  %v1678 = vshrl.u32 %v1677, 7
  %v1679 = vsub.s32 %v1676, %v1678
  %v1680 = vrot.slane %v310, %v1679
  %v1682 = vunpack.c.l.s4 269488144
  %v1683 = vunpack.c.0.s8 %v1682
  %v1684 = vlaneseq
  %v1685 = vshrl.u32 %v1684, 7
  %v1686 = vsub.s32 %v1683, %v1685
  %v1687 = vrot.slane %v311, %v1686
  %v1689 = vunpack.c.l.s4 842150450
  %v1690 = vunpack.c.0.s8 %v1689
  %v1691 = vlaneseq
  %v1692 = vshrl.u32 %v1691, 7
  %v1693 = vsub.s32 %v1690, %v1692
  %v1694 = vrot.slane %v311, %v1693
  %v1696 = vunpack.c.l.s4 1414812756
  %v1697 = vunpack.c.0.s8 %v1696
  %v1698 = vlaneseq
  %v1699 = vshrl.u32 %v1698, 7
  %v1700 = vsub.s32 %v1697, %v1699
  %v1701 = vrot.slane %v311, %v1700
  %v1703 = vunpack.c.l.s4 1987475062
  %v1704 = vunpack.c.0.s8 %v1703
  %v1705 = vlaneseq
  %v1706 = vshrl.u32 %v1705, 7
  %v1707 = vsub.s32 %v1704, %v1706
  %v1708 = vrot.slane %v311, %v1707
  %v1710 = vunpack.c.l.s4 269488144
  %v1711 = vunpack.c.0.s8 %v1710
  %v1712 = vlaneseq
  %v1713 = vshrl.u32 %v1712, 7
  %v1714 = vsub.s32 %v1711, %v1713
  %v1715 = vrot.slane %v312, %v1714
  %v1717 = vunpack.c.l.s4 842150450
  %v1718 = vunpack.c.0.s8 %v1717
  %v1719 = vlaneseq
  %v1720 = vshrl.u32 %v1719, 7
  %v1721 = vsub.s32 %v1718, %v1720
  %v1722 = vrot.slane %v312, %v1721
  %v1724 = vunpack.c.l.s4 1414812756
  %v1725 = vunpack.c.0.s8 %v1724
  %v1726 = vlaneseq
  %v1727 = vshrl.u32 %v1726, 7
  %v1728 = vsub.s32 %v1725, %v1727
  %v1729 = vrot.slane %v312, %v1728
  %v1731 = vunpack.c.l.s4 1987475062
  %v1732 = vunpack.c.0.s8 %v1731
  %v1733 = vlaneseq
  %v1734 = vshrl.u32 %v1733, 7
  %v1735 = vsub.s32 %v1732, %v1734
  %v1736 = vrot.slane %v312, %v1735
  %v1738 = vunpack.c.l.s4 269488144
  %v1739 = vunpack.c.0.s8 %v1738
  %v1740 = vlaneseq
  %v1741 = vshrl.u32 %v1740, 7
  %v1742 = vsub.s32 %v1739, %v1741
  %v1743 = vrot.slane %v313, %v1742
  %v1745 = vunpack.c.l.s4 842150450
  %v1746 = vunpack.c.0.s8 %v1745
  %v1747 = vlaneseq
  %v1748 = vshrl.u32 %v1747, 7
  %v1749 = vsub.s32 %v1746, %v1748
  %v1750 = vrot.slane %v313, %v1749
  %v1752 = vunpack.c.l.s4 1414812756
  %v1753 = vunpack.c.0.s8 %v1752
  %v1754 = vlaneseq
  %v1755 = vshrl.u32 %v1754, 7
  %v1756 = vsub.s32 %v1753, %v1755
  %v1757 = vrot.slane %v313, %v1756
  %v1759 = vunpack.c.l.s4 1987475062
  %v1760 = vunpack.c.0.s8 %v1759
  %v1761 = vlaneseq
  %v1762 = vshrl.u32 %v1761, 7
  %v1763 = vsub.s32 %v1760, %v1762
  %v1764 = vrot.slane %v313, %v1763
  %v1766 = vunpack.c.l.s4 269488144
  %v1767 = vunpack.c.0.s8 %v1766
  %v1768 = vlaneseq
  %v1769 = vshrl.u32 %v1768, 7
  %v1770 = vsub.s32 %v1767, %v1769
  %v1771 = vrot.slane %v314, %v1770
  %v1773 = vunpack.c.l.s4 842150450
  %v1774 = vunpack.c.0.s8 %v1773
  %v1775 = vlaneseq
  %v1776 = vshrl.u32 %v1775, 7
  %v1777 = vsub.s32 %v1774, %v1776
  %v1778 = vrot.slane %v314, %v1777
  %v1780 = vunpack.c.l.s4 1414812756
  %v1781 = vunpack.c.0.s8 %v1780
  %v1782 = vlaneseq
  %v1783 = vshrl.u32 %v1782, 7
  %v1784 = vsub.s32 %v1781, %v1783
  %v1785 = vrot.slane %v314, %v1784
  %v1787 = vunpack.c.l.s4 1987475062
  %v1788 = vunpack.c.0.s8 %v1787
  %v1789 = vlaneseq
  %v1790 = vshrl.u32 %v1789, 7
  %v1791 = vsub.s32 %v1788, %v1790
  %v1792 = vrot.slane %v314, %v1791
  %v1794 = vunpack.c.l.s4 269488144
  %v1795 = vunpack.c.0.s8 %v1794
  %v1796 = vlaneseq
  %v1797 = vshrl.u32 %v1796, 7
  %v1798 = vsub.s32 %v1795, %v1797
  %v1799 = vrot.slane %v315, %v1798
  %v1801 = vunpack.c.l.s4 842150450
  %v1802 = vunpack.c.0.s8 %v1801
  %v1803 = vlaneseq
  %v1804 = vshrl.u32 %v1803, 7
  %v1805 = vsub.s32 %v1802, %v1804
  %v1806 = vrot.slane %v315, %v1805
  %v1808 = vunpack.c.l.s4 1414812756
  %v1809 = vunpack.c.0.s8 %v1808
  %v1810 = vlaneseq
  %v1811 = vshrl.u32 %v1810, 7
  %v1812 = vsub.s32 %v1809, %v1811
  %v1813 = vrot.slane %v315, %v1812
  %v1815 = vunpack.c.l.s4 1987475062
  %v1816 = vunpack.c.0.s8 %v1815
  %v1817 = vlaneseq
  %v1818 = vshrl.u32 %v1817, 7
  %v1819 = vsub.s32 %v1816, %v1818
  %v1820 = vrot.slane %v315, %v1819
  %v1822 = vunpack.c.l.s4 269488144
  %v1823 = vunpack.c.0.s8 %v1822
  %v1824 = vlaneseq
  %v1825 = vshrl.u32 %v1824, 7
  %v1826 = vsub.s32 %v1823, %v1825
  %v1827 = vrot.slane %v316, %v1826
  %v1829 = vunpack.c.l.s4 842150450
  %v1830 = vunpack.c.0.s8 %v1829
  %v1831 = vlaneseq
  %v1832 = vshrl.u32 %v1831, 7
  %v1833 = vsub.s32 %v1830, %v1832
  %v1834 = vrot.slane %v316, %v1833
  %v1836 = vunpack.c.l.s4 1414812756
  %v1837 = vunpack.c.0.s8 %v1836
  %v1838 = vlaneseq
  %v1839 = vshrl.u32 %v1838, 7
  %v1840 = vsub.s32 %v1837, %v1839
  %v1841 = vrot.slane %v316, %v1840
  %v1843 = vunpack.c.l.s4 1987475062
  %v1844 = vunpack.c.0.s8 %v1843
  %v1845 = vlaneseq
  %v1846 = vshrl.u32 %v1845, 7
  %v1847 = vsub.s32 %v1844, %v1846
  %v1848 = vrot.slane %v316, %v1847
  %v1850 = vunpack.c.l.s4 269488144
  %v1851 = vunpack.c.0.s8 %v1850
  %v1852 = vlaneseq
  %v1853 = vshrl.u32 %v1852, 7
  %v1854 = vsub.s32 %v1851, %v1853
  %v1855 = vrot.slane %v317, %v1854
  %v1857 = vunpack.c.l.s4 842150450
  %v1858 = vunpack.c.0.s8 %v1857
  %v1859 = vlaneseq
  %v1860 = vshrl.u32 %v1859, 7
  %v1861 = vsub.s32 %v1858, %v1860
  %v1862 = vrot.slane %v317, %v1861
  %v1864 = vunpack.c.l.s4 1414812756
  %v1865 = vunpack.c.0.s8 %v1864
  %v1866 = vlaneseq
  %v1867 = vshrl.u32 %v1866, 7
  %v1868 = vsub.s32 %v1865, %v1867
  %v1869 = vrot.slane %v317, %v1868
  %v1871 = vunpack.c.l.s4 1987475062
  %v1872 = vunpack.c.0.s8 %v1871
  %v1873 = vlaneseq
  %v1874 = vshrl.u32 %v1873, 7
  %v1875 = vsub.s32 %v1872, %v1874
  %v1876 = vrot.slane %v317, %v1875
  %v1878 = vunpack.c.l.s4 269488144
  %v1879 = vunpack.c.0.s8 %v1878
  %v1880 = vlaneseq
  %v1881 = vshrl.u32 %v1880, 7
  %v1882 = vsub.s32 %v1879, %v1881
  %v1883 = vrot.slane %v318, %v1882
  %v1885 = vunpack.c.l.s4 842150450
  %v1886 = vunpack.c.0.s8 %v1885
  %v1887 = vlaneseq
  %v1888 = vshrl.u32 %v1887, 7
  %v1889 = vsub.s32 %v1886, %v1888
  %v1890 = vrot.slane %v318, %v1889
  %v1892 = vunpack.c.l.s4 1414812756
  %v1893 = vunpack.c.0.s8 %v1892
  %v1894 = vlaneseq
  %v1895 = vshrl.u32 %v1894, 7
  %v1896 = vsub.s32 %v1893, %v1895
  %v1897 = vrot.slane %v318, %v1896
  %v1899 = vunpack.c.l.s4 1987475062
  %v1900 = vunpack.c.0.s8 %v1899
  %v1901 = vlaneseq
  %v1902 = vshrl.u32 %v1901, 7
  %v1903 = vsub.s32 %v1900, %v1902
  %v1904 = vrot.slane %v318, %v1903
  %v1906 = vunpack.c.l.s4 269488144
  %v1907 = vunpack.c.0.s8 %v1906
  %v1908 = vlaneseq
  %v1909 = vshrl.u32 %v1908, 7
  %v1910 = vsub.s32 %v1907, %v1909
  %v1911 = vrot.slane %v319, %v1910
  %v1913 = vunpack.c.l.s4 842150450
  %v1914 = vunpack.c.0.s8 %v1913
  %v1915 = vlaneseq
  %v1916 = vshrl.u32 %v1915, 7
  %v1917 = vsub.s32 %v1914, %v1916
  %v1918 = vrot.slane %v319, %v1917
  %v1920 = vunpack.c.l.s4 1414812756
  %v1921 = vunpack.c.0.s8 %v1920
  %v1922 = vlaneseq
  %v1923 = vshrl.u32 %v1922, 7
  %v1924 = vsub.s32 %v1921, %v1923
  %v1925 = vrot.slane %v319, %v1924
  %v1927 = vunpack.c.l.s4 1987475062
  %v1928 = vunpack.c.0.s8 %v1927
  %v1929 = vlaneseq
  %v1930 = vshrl.u32 %v1929, 7
  %v1931 = vsub.s32 %v1928, %v1930
  %v1932 = vrot.slane %v319, %v1931
  %v1934 = vunpack.c.l.s4 269488144
  %v1935 = vunpack.c.0.s8 %v1934
  %v1936 = vlaneseq
  %v1937 = vshrl.u32 %v1936, 7
  %v1938 = vsub.s32 %v1935, %v1937
  %v1939 = vrot.slane %v320, %v1938
  %v1941 = vunpack.c.l.s4 842150450
  %v1942 = vunpack.c.0.s8 %v1941
  %v1943 = vlaneseq
  %v1944 = vshrl.u32 %v1943, 7
  %v1945 = vsub.s32 %v1942, %v1944
  %v1946 = vrot.slane %v320, %v1945
  %v1948 = vunpack.c.l.s4 1414812756
  %v1949 = vunpack.c.0.s8 %v1948
  %v1950 = vlaneseq
  %v1951 = vshrl.u32 %v1950, 7
  %v1952 = vsub.s32 %v1949, %v1951
  %v1953 = vrot.slane %v320, %v1952
  %v1955 = vunpack.c.l.s4 1987475062
  %v1956 = vunpack.c.0.s8 %v1955
  %v1957 = vlaneseq
  %v1958 = vshrl.u32 %v1957, 7
  %v1959 = vsub.s32 %v1956, %v1958
  %v1960 = vrot.slane %v320, %v1959
  %v1962 = vunpack.c.l.s4 269488144
  %v1963 = vunpack.c.0.s8 %v1962
  %v1964 = vlaneseq
  %v1965 = vshrl.u32 %v1964, 7
  %v1966 = vsub.s32 %v1963, %v1965
  %v1967 = vrot.slane %v321, %v1966
  %v1969 = vunpack.c.l.s4 842150450
  %v1970 = vunpack.c.0.s8 %v1969
  %v1971 = vlaneseq
  %v1972 = vshrl.u32 %v1971, 7
  %v1973 = vsub.s32 %v1970, %v1972
  %v1974 = vrot.slane %v321, %v1973
  %v1976 = vunpack.c.l.s4 1414812756
  %v1977 = vunpack.c.0.s8 %v1976
  %v1978 = vlaneseq
  %v1979 = vshrl.u32 %v1978, 7
  %v1980 = vsub.s32 %v1977, %v1979
  %v1981 = vrot.slane %v321, %v1980
  %v1983 = vunpack.c.l.s4 1987475062
  %v1984 = vunpack.c.0.s8 %v1983
  %v1985 = vlaneseq
  %v1986 = vshrl.u32 %v1985, 7
  %v1987 = vsub.s32 %v1984, %v1986
  %v1988 = vrot.slane %v321, %v1987
  %v1990 = vunpack.c.l.s4 269488144
  %v1991 = vunpack.c.0.s8 %v1990
  %v1992 = vlaneseq
  %v1993 = vshrl.u32 %v1992, 7
  %v1994 = vsub.s32 %v1991, %v1993
  %v1995 = vrot.slane %v322, %v1994
  %v1997 = vunpack.c.l.s4 842150450
  %v1998 = vunpack.c.0.s8 %v1997
  %v1999 = vlaneseq
  %v2000 = vshrl.u32 %v1999, 7
  %v2001 = vsub.s32 %v1998, %v2000
  %v2002 = vrot.slane %v322, %v2001
  %v2004 = vunpack.c.l.s4 1414812756
  %v2005 = vunpack.c.0.s8 %v2004
  %v2006 = vlaneseq
  %v2007 = vshrl.u32 %v2006, 7
  %v2008 = vsub.s32 %v2005, %v2007
  %v2009 = vrot.slane %v322, %v2008
  %v2011 = vunpack.c.l.s4 1987475062
  %v2012 = vunpack.c.0.s8 %v2011
  %v2013 = vlaneseq
  %v2014 = vshrl.u32 %v2013, 7
  %v2015 = vsub.s32 %v2012, %v2014
  %v2016 = vrot.slane %v322, %v2015
  %v2018 = vunpack.c.l.s4 269488144
  %v2019 = vunpack.c.0.s8 %v2018
  %v2020 = vlaneseq
  %v2021 = vshrl.u32 %v2020, 7
  %v2022 = vsub.s32 %v2019, %v2021
  %v2023 = vrot.slane %v323, %v2022
  %v2025 = vunpack.c.l.s4 842150450
  %v2026 = vunpack.c.0.s8 %v2025
  %v2027 = vlaneseq
  %v2028 = vshrl.u32 %v2027, 7
  %v2029 = vsub.s32 %v2026, %v2028
  %v2030 = vrot.slane %v323, %v2029
  %v2032 = vunpack.c.l.s4 1414812756
  %v2033 = vunpack.c.0.s8 %v2032
  %v2034 = vlaneseq
  %v2035 = vshrl.u32 %v2034, 7
  %v2036 = vsub.s32 %v2033, %v2035
  %v2037 = vrot.slane %v323, %v2036
  %v2039 = vunpack.c.l.s4 1987475062
  %v2040 = vunpack.c.0.s8 %v2039
  %v2041 = vlaneseq
  %v2042 = vshrl.u32 %v2041, 7
  %v2043 = vsub.s32 %v2040, %v2042
  %v2044 = vrot.slane %v323, %v2043
  %v2046 = vunpack.c.l.s4 269488144
  %v2047 = vunpack.c.0.s8 %v2046
  %v2048 = vlaneseq
  %v2049 = vshrl.u32 %v2048, 7
  %v2050 = vsub.s32 %v2047, %v2049
  %v2051 = vrot.slane %v324, %v2050
  %v2053 = vunpack.c.l.s4 842150450
  %v2054 = vunpack.c.0.s8 %v2053
  %v2055 = vlaneseq
  %v2056 = vshrl.u32 %v2055, 7
  %v2057 = vsub.s32 %v2054, %v2056
  %v2058 = vrot.slane %v324, %v2057
  %v2060 = vunpack.c.l.s4 1414812756
  %v2061 = vunpack.c.0.s8 %v2060
  %v2062 = vlaneseq
  %v2063 = vshrl.u32 %v2062, 7
  %v2064 = vsub.s32 %v2061, %v2063
  %v2065 = vrot.slane %v324, %v2064
  %v2067 = vunpack.c.l.s4 1987475062
  %v2068 = vunpack.c.0.s8 %v2067
  %v2069 = vlaneseq
  %v2070 = vshrl.u32 %v2069, 7
  %v2071 = vsub.s32 %v2068, %v2070
  %v2072 = vrot.slane %v324, %v2071
  %v2074 = vunpack.c.l.s4 269488144
  %v2075 = vunpack.c.0.s8 %v2074
  %v2076 = vlaneseq
  %v2077 = vshrl.u32 %v2076, 7
  %v2078 = vsub.s32 %v2075, %v2077
  %v2079 = vrot.slane %v325, %v2078
  %v2081 = vunpack.c.l.s4 842150450
  %v2082 = vunpack.c.0.s8 %v2081
  %v2083 = vlaneseq
  %v2084 = vshrl.u32 %v2083, 7
  %v2085 = vsub.s32 %v2082, %v2084
  %v2086 = vrot.slane %v325, %v2085
  %v2088 = vunpack.c.l.s4 1414812756
  %v2089 = vunpack.c.0.s8 %v2088
  %v2090 = vlaneseq
  %v2091 = vshrl.u32 %v2090, 7
  %v2092 = vsub.s32 %v2089, %v2091
  %v2093 = vrot.slane %v325, %v2092
  %v2095 = vunpack.c.l.s4 1987475062
  %v2096 = vunpack.c.0.s8 %v2095
  %v2097 = vlaneseq
  %v2098 = vshrl.u32 %v2097, 7
  %v2099 = vsub.s32 %v2096, %v2098
  %v2100 = vrot.slane %v325, %v2099
  %v2102 = vunpack.c.l.s4 269488144
  %v2103 = vunpack.c.0.s8 %v2102
  %v2104 = vlaneseq
  %v2105 = vshrl.u32 %v2104, 7
  %v2106 = vsub.s32 %v2103, %v2105
  %v2107 = vrot.slane %v326, %v2106
  %v2109 = vunpack.c.l.s4 842150450
  %v2110 = vunpack.c.0.s8 %v2109
  %v2111 = vlaneseq
  %v2112 = vshrl.u32 %v2111, 7
  %v2113 = vsub.s32 %v2110, %v2112
  %v2114 = vrot.slane %v326, %v2113
  %v2116 = vunpack.c.l.s4 1414812756
  %v2117 = vunpack.c.0.s8 %v2116
  %v2118 = vlaneseq
  %v2119 = vshrl.u32 %v2118, 7
  %v2120 = vsub.s32 %v2117, %v2119
  %v2121 = vrot.slane %v326, %v2120
  %v2123 = vunpack.c.l.s4 1987475062
  %v2124 = vunpack.c.0.s8 %v2123
  %v2125 = vlaneseq
  %v2126 = vshrl.u32 %v2125, 7
  %v2127 = vsub.s32 %v2124, %v2126
  %v2128 = vrot.slane %v326, %v2127
  %v2130 = vunpack.c.l.s4 269488144
  %v2131 = vunpack.c.0.s8 %v2130
  %v2132 = vlaneseq
  %v2133 = vshrl.u32 %v2132, 7
  %v2134 = vsub.s32 %v2131, %v2133
  %v2135 = vrot.slane %v327, %v2134
  %v2137 = vunpack.c.l.s4 842150450
  %v2138 = vunpack.c.0.s8 %v2137
  %v2139 = vlaneseq
  %v2140 = vshrl.u32 %v2139, 7
  %v2141 = vsub.s32 %v2138, %v2140
  %v2142 = vrot.slane %v327, %v2141
  %v2144 = vunpack.c.l.s4 1414812756
  %v2145 = vunpack.c.0.s8 %v2144
  %v2146 = vlaneseq
  %v2147 = vshrl.u32 %v2146, 7
  %v2148 = vsub.s32 %v2145, %v2147
  %v2149 = vrot.slane %v327, %v2148
  %v2151 = vunpack.c.l.s4 1987475062
  %v2152 = vunpack.c.0.s8 %v2151
  %v2153 = vlaneseq
  %v2154 = vshrl.u32 %v2153, 7
  %v2155 = vsub.s32 %v2152, %v2154
  %v2156 = vrot.slane %v327, %v2155
  %v2158 = vunpack.c.l.s4 269488144
  %v2159 = vunpack.c.0.s8 %v2158
  %v2160 = vlaneseq
  %v2161 = vshrl.u32 %v2160, 7
  %v2162 = vsub.s32 %v2159, %v2161
  %v2163 = vrot.slane %v328, %v2162
  %v2165 = vunpack.c.l.s4 842150450
  %v2166 = vunpack.c.0.s8 %v2165
  %v2167 = vlaneseq
  %v2168 = vshrl.u32 %v2167, 7
  %v2169 = vsub.s32 %v2166, %v2168
  %v2170 = vrot.slane %v328, %v2169
  %v2172 = vunpack.c.l.s4 1414812756
  %v2173 = vunpack.c.0.s8 %v2172
  %v2174 = vlaneseq
  %v2175 = vshrl.u32 %v2174, 7
  %v2176 = vsub.s32 %v2173, %v2175
  %v2177 = vrot.slane %v328, %v2176
  %v2179 = vunpack.c.l.s4 1987475062
  %v2180 = vunpack.c.0.s8 %v2179
  %v2181 = vlaneseq
  %v2182 = vshrl.u32 %v2181, 7
  %v2183 = vsub.s32 %v2180, %v2182
  %v2184 = vrot.slane %v328, %v2183
  %v2185 = vcombine.low %v399, %v406
  %v2186 = vcombine.low %v413, %v420
  %v2188 = vunpack.c.l.s4 1983009808
  %v2189 = vunpack.c.0.s8 %v2188
  %v2190 = vlaneseq
  %v2191 = vshrl.u32 %v2190, 7
  %v2192 = vsub.s32 %v2189, %v2191
  %v2193 = vrot.slane %v2185, %v2192
  %v2195 = vunpack.c.l.s4 1983009808
  %v2196 = vunpack.c.0.s8 %v2195
  %v2197 = vlaneseq
  %v2198 = vshrl.u32 %v2197, 7
  %v2199 = vsub.s32 %v2196, %v2198
  %v2200 = vrot.slane %v2186, %v2199
  %v2201 = vcombine.low %v2193, %v2200
  %v2202 = vcombine.low %v427, %v434
  %v2203 = vcombine.low %v441, %v448
  %v2205 = vunpack.c.l.s4 1983009808
  %v2206 = vunpack.c.0.s8 %v2205
  %v2207 = vlaneseq
  %v2208 = vshrl.u32 %v2207, 7
  %v2209 = vsub.s32 %v2206, %v2208
  %v2210 = vrot.slane %v2202, %v2209
  %v2212 = vunpack.c.l.s4 1983009808
  %v2213 = vunpack.c.0.s8 %v2212
  %v2214 = vlaneseq
  %v2215 = vshrl.u32 %v2214, 7
  %v2216 = vsub.s32 %v2213, %v2215
  %v2217 = vrot.slane %v2203, %v2216
  %v2218 = vcombine.low %v2210, %v2217
  %v2219 = vcombine.low %v455, %v462
  %v2220 = vcombine.low %v469, %v476
  %v2222 = vunpack.c.l.s4 1983009808
  %v2223 = vunpack.c.0.s8 %v2222
  %v2224 = vlaneseq
  %v2225 = vshrl.u32 %v2224, 7
  %v2226 = vsub.s32 %v2223, %v2225
  %v2227 = vrot.slane %v2219, %v2226
  %v2229 = vunpack.c.l.s4 1983009808
  %v2230 = vunpack.c.0.s8 %v2229
  %v2231 = vlaneseq
  %v2232 = vshrl.u32 %v2231, 7
  %v2233 = vsub.s32 %v2230, %v2232
  %v2234 = vrot.slane %v2220, %v2233
  %v2235 = vcombine.low %v2227, %v2234
  %v2236 = vcombine.low %v483, %v490
  %v2237 = vcombine.low %v497, %v504
  %v2239 = vunpack.c.l.s4 1983009808
  %v2240 = vunpack.c.0.s8 %v2239
  %v2241 = vlaneseq
  %v2242 = vshrl.u32 %v2241, 7
  %v2243 = vsub.s32 %v2240, %v2242
  %v2244 = vrot.slane %v2236, %v2243
  %v2246 = vunpack.c.l.s4 1983009808
  %v2247 = vunpack.c.0.s8 %v2246
  %v2248 = vlaneseq
  %v2249 = vshrl.u32 %v2248, 7
  %v2250 = vsub.s32 %v2247, %v2249
  %v2251 = vrot.slane %v2237, %v2250
  %v2252 = vcombine.low %v2244, %v2251
  %v2253 = vcombine.low %v511, %v518
  %v2254 = vcombine.low %v525, %v532
  %v2256 = vunpack.c.l.s4 1983009808
  %v2257 = vunpack.c.0.s8 %v2256
  %v2258 = vlaneseq
  %v2259 = vshrl.u32 %v2258, 7
  %v2260 = vsub.s32 %v2257, %v2259
  %v2261 = vrot.slane %v2253, %v2260
  %v2263 = vunpack.c.l.s4 1983009808
  %v2264 = vunpack.c.0.s8 %v2263
  %v2265 = vlaneseq
  %v2266 = vshrl.u32 %v2265, 7
  %v2267 = vsub.s32 %v2264, %v2266
  %v2268 = vrot.slane %v2254, %v2267
  %v2269 = vcombine.low %v2261, %v2268
  %v2270 = vcombine.low %v539, %v546
  %v2271 = vcombine.low %v553, %v560
  %v2273 = vunpack.c.l.s4 1983009808
  %v2274 = vunpack.c.0.s8 %v2273
  %v2275 = vlaneseq
  %v2276 = vshrl.u32 %v2275, 7
  %v2277 = vsub.s32 %v2274, %v2276
  %v2278 = vrot.slane %v2270, %v2277
  %v2280 = vunpack.c.l.s4 1983009808
  %v2281 = vunpack.c.0.s8 %v2280
  %v2282 = vlaneseq
  %v2283 = vshrl.u32 %v2282, 7
  %v2284 = vsub.s32 %v2281, %v2283
  %v2285 = vrot.slane %v2271, %v2284
  %v2286 = vcombine.low %v2278, %v2285
  %v2287 = vcombine.low %v567, %v574
  %v2288 = vcombine.low %v581, %v588
  %v2290 = vunpack.c.l.s4 1983009808
  %v2291 = vunpack.c.0.s8 %v2290
  %v2292 = vlaneseq
  %v2293 = vshrl.u32 %v2292, 7
  %v2294 = vsub.s32 %v2291, %v2293
  %v2295 = vrot.slane %v2287, %v2294
  %v2297 = vunpack.c.l.s4 1983009808
  %v2298 = vunpack.c.0.s8 %v2297
  %v2299 = vlaneseq
  %v2300 = vshrl.u32 %v2299, 7
  %v2301 = vsub.s32 %v2298, %v2300
  %v2302 = vrot.slane %v2288, %v2301
  %v2303 = vcombine.low %v2295, %v2302
  %v2304 = vcombine.low %v595, %v602
  %v2305 = vcombine.low %v609, %v616
  %v2307 = vunpack.c.l.s4 1983009808
  %v2308 = vunpack.c.0.s8 %v2307
  %v2309 = vlaneseq
  %v2310 = vshrl.u32 %v2309, 7
  %v2311 = vsub.s32 %v2308, %v2310
  %v2312 = vrot.slane %v2304, %v2311
  %v2314 = vunpack.c.l.s4 1983009808
  %v2315 = vunpack.c.0.s8 %v2314
  %v2316 = vlaneseq
  %v2317 = vshrl.u32 %v2316, 7
  %v2318 = vsub.s32 %v2315, %v2317
  %v2319 = vrot.slane %v2305, %v2318
  %v2320 = vcombine.low %v2312, %v2319
  %v2321 = vcombine.low %v623, %v630
  %v2322 = vcombine.low %v637, %v644
  %v2324 = vunpack.c.l.s4 1983009808
  %v2325 = vunpack.c.0.s8 %v2324
  %v2326 = vlaneseq
  %v2327 = vshrl.u32 %v2326, 7
  %v2328 = vsub.s32 %v2325, %v2327
  %v2329 = vrot.slane %v2321, %v2328
  %v2331 = vunpack.c.l.s4 1983009808
  %v2332 = vunpack.c.0.s8 %v2331
  %v2333 = vlaneseq
  %v2334 = vshrl.u32 %v2333, 7
  %v2335 = vsub.s32 %v2332, %v2334
  %v2336 = vrot.slane %v2322, %v2335
  %v2337 = vcombine.low %v2329, %v2336
  %v2338 = vcombine.low %v651, %v658
  %v2339 = vcombine.low %v665, %v672
  %v2341 = vunpack.c.l.s4 1983009808
  %v2342 = vunpack.c.0.s8 %v2341
  %v2343 = vlaneseq
  %v2344 = vshrl.u32 %v2343, 7
  %v2345 = vsub.s32 %v2342, %v2344
  %v2346 = vrot.slane %v2338, %v2345
  %v2348 = vunpack.c.l.s4 1983009808
  %v2349 = vunpack.c.0.s8 %v2348
  %v2350 = vlaneseq
  %v2351 = vshrl.u32 %v2350, 7
  %v2352 = vsub.s32 %v2349, %v2351
  %v2353 = vrot.slane %v2339, %v2352
  %v2354 = vcombine.low %v2346, %v2353
  %v2355 = vcombine.low %v679, %v686
  %v2356 = vcombine.low %v693, %v700
  %v2358 = vunpack.c.l.s4 1983009808
  %v2359 = vunpack.c.0.s8 %v2358
  %v2360 = vlaneseq
  %v2361 = vshrl.u32 %v2360, 7
  %v2362 = vsub.s32 %v2359, %v2361
  %v2363 = vrot.slane %v2355, %v2362
  %v2365 = vunpack.c.l.s4 1983009808
  %v2366 = vunpack.c.0.s8 %v2365
  %v2367 = vlaneseq
  %v2368 = vshrl.u32 %v2367, 7
  %v2369 = vsub.s32 %v2366, %v2368
  %v2370 = vrot.slane %v2356, %v2369
  %v2371 = vcombine.low %v2363, %v2370
  %v2372 = vcombine.low %v707, %v714
  %v2373 = vcombine.low %v721, %v728
  %v2375 = vunpack.c.l.s4 1983009808
  %v2376 = vunpack.c.0.s8 %v2375
  %v2377 = vlaneseq
  %v2378 = vshrl.u32 %v2377, 7
  %v2379 = vsub.s32 %v2376, %v2378
  %v2380 = vrot.slane %v2372, %v2379
  %v2382 = vunpack.c.l.s4 1983009808
  %v2383 = vunpack.c.0.s8 %v2382
  %v2384 = vlaneseq
  %v2385 = vshrl.u32 %v2384, 7
  %v2386 = vsub.s32 %v2383, %v2385
  %v2387 = vrot.slane %v2373, %v2386
  %v2388 = vcombine.low %v2380, %v2387
  %v2389 = vcombine.low %v735, %v742
  %v2390 = vcombine.low %v749, %v756
  %v2392 = vunpack.c.l.s4 1983009808
  %v2393 = vunpack.c.0.s8 %v2392
  %v2394 = vlaneseq
  %v2395 = vshrl.u32 %v2394, 7
  %v2396 = vsub.s32 %v2393, %v2395
  %v2397 = vrot.slane %v2389, %v2396
  %v2399 = vunpack.c.l.s4 1983009808
  %v2400 = vunpack.c.0.s8 %v2399
  %v2401 = vlaneseq
  %v2402 = vshrl.u32 %v2401, 7
  %v2403 = vsub.s32 %v2400, %v2402
  %v2404 = vrot.slane %v2390, %v2403
  %v2405 = vcombine.low %v2397, %v2404
  %v2406 = vcombine.low %v763, %v770
  %v2407 = vcombine.low %v777, %v784
  %v2409 = vunpack.c.l.s4 1983009808
  %v2410 = vunpack.c.0.s8 %v2409
  %v2411 = vlaneseq
  %v2412 = vshrl.u32 %v2411, 7
  %v2413 = vsub.s32 %v2410, %v2412
  %v2414 = vrot.slane %v2406, %v2413
  %v2416 = vunpack.c.l.s4 1983009808
  %v2417 = vunpack.c.0.s8 %v2416
  %v2418 = vlaneseq
  %v2419 = vshrl.u32 %v2418, 7
  %v2420 = vsub.s32 %v2417, %v2419
  %v2421 = vrot.slane %v2407, %v2420
  %v2422 = vcombine.low %v2414, %v2421
  %v2423 = vcombine.low %v791, %v798
  %v2424 = vcombine.low %v805, %v812
  %v2426 = vunpack.c.l.s4 1983009808
  %v2427 = vunpack.c.0.s8 %v2426
  %v2428 = vlaneseq
  %v2429 = vshrl.u32 %v2428, 7
  %v2430 = vsub.s32 %v2427, %v2429
  %v2431 = vrot.slane %v2423, %v2430
  %v2433 = vunpack.c.l.s4 1983009808
  %v2434 = vunpack.c.0.s8 %v2433
  %v2435 = vlaneseq
  %v2436 = vshrl.u32 %v2435, 7
  %v2437 = vsub.s32 %v2434, %v2436
  %v2438 = vrot.slane %v2424, %v2437
  %v2439 = vcombine.low %v2431, %v2438
  %v2440 = vcombine.low %v819, %v826
  %v2441 = vcombine.low %v833, %v840
  %v2443 = vunpack.c.l.s4 1983009808
  %v2444 = vunpack.c.0.s8 %v2443
  %v2445 = vlaneseq
  %v2446 = vshrl.u32 %v2445, 7
  %v2447 = vsub.s32 %v2444, %v2446
  %v2448 = vrot.slane %v2440, %v2447
  %v2450 = vunpack.c.l.s4 1983009808
  %v2451 = vunpack.c.0.s8 %v2450
  %v2452 = vlaneseq
  %v2453 = vshrl.u32 %v2452, 7
  %v2454 = vsub.s32 %v2451, %v2453
  %v2455 = vrot.slane %v2441, %v2454
  %v2456 = vcombine.low %v2448, %v2455
  %v2457 = vcombine.low %v847, %v854
  %v2458 = vcombine.low %v861, %v868
  %v2460 = vunpack.c.l.s4 1983009808
  %v2461 = vunpack.c.0.s8 %v2460
  %v2462 = vlaneseq
  %v2463 = vshrl.u32 %v2462, 7
  %v2464 = vsub.s32 %v2461, %v2463
  %v2465 = vrot.slane %v2457, %v2464
  %v2467 = vunpack.c.l.s4 1983009808
  %v2468 = vunpack.c.0.s8 %v2467
  %v2469 = vlaneseq
  %v2470 = vshrl.u32 %v2469, 7
  %v2471 = vsub.s32 %v2468, %v2470
  %v2472 = vrot.slane %v2458, %v2471
  %v2473 = vcombine.low %v2465, %v2472
  %v2474 = vcombine.low %v875, %v882
  %v2475 = vcombine.low %v889, %v896
  %v2477 = vunpack.c.l.s4 1983009808
  %v2478 = vunpack.c.0.s8 %v2477
  %v2479 = vlaneseq
  %v2480 = vshrl.u32 %v2479, 7
  %v2481 = vsub.s32 %v2478, %v2480
  %v2482 = vrot.slane %v2474, %v2481
  %v2484 = vunpack.c.l.s4 1983009808
  %v2485 = vunpack.c.0.s8 %v2484
  %v2486 = vlaneseq
  %v2487 = vshrl.u32 %v2486, 7
  %v2488 = vsub.s32 %v2485, %v2487
  %v2489 = vrot.slane %v2475, %v2488
  %v2490 = vcombine.low %v2482, %v2489
  %v2491 = vcombine.low %v903, %v910
  %v2492 = vcombine.low %v917, %v924
  %v2494 = vunpack.c.l.s4 1983009808
  %v2495 = vunpack.c.0.s8 %v2494
  %v2496 = vlaneseq
  %v2497 = vshrl.u32 %v2496, 7
  %v2498 = vsub.s32 %v2495, %v2497
  %v2499 = vrot.slane %v2491, %v2498
  %v2501 = vunpack.c.l.s4 1983009808
  %v2502 = vunpack.c.0.s8 %v2501
  %v2503 = vlaneseq
  %v2504 = vshrl.u32 %v2503, 7
  %v2505 = vsub.s32 %v2502, %v2504
  %v2506 = vrot.slane %v2492, %v2505
  %v2507 = vcombine.low %v2499, %v2506
  %v2508 = vcombine.low %v931, %v938
  %v2509 = vcombine.low %v945, %v952
  %v2511 = vunpack.c.l.s4 1983009808
  %v2512 = vunpack.c.0.s8 %v2511
  %v2513 = vlaneseq
  %v2514 = vshrl.u32 %v2513, 7
  %v2515 = vsub.s32 %v2512, %v2514
  %v2516 = vrot.slane %v2508, %v2515
  %v2518 = vunpack.c.l.s4 1983009808
  %v2519 = vunpack.c.0.s8 %v2518
  %v2520 = vlaneseq
  %v2521 = vshrl.u32 %v2520, 7
  %v2522 = vsub.s32 %v2519, %v2521
  %v2523 = vrot.slane %v2509, %v2522
  %v2524 = vcombine.low %v2516, %v2523
  %v2525 = vcombine.low %v959, %v966
  %v2526 = vcombine.low %v973, %v980
  %v2528 = vunpack.c.l.s4 1983009808
  %v2529 = vunpack.c.0.s8 %v2528
  %v2530 = vlaneseq
  %v2531 = vshrl.u32 %v2530, 7
  %v2532 = vsub.s32 %v2529, %v2531
  %v2533 = vrot.slane %v2525, %v2532
  %v2535 = vunpack.c.l.s4 1983009808
  %v2536 = vunpack.c.0.s8 %v2535
  %v2537 = vlaneseq
  %v2538 = vshrl.u32 %v2537, 7
  %v2539 = vsub.s32 %v2536, %v2538
  %v2540 = vrot.slane %v2526, %v2539
  %v2541 = vcombine.low %v2533, %v2540
  %v2542 = vcombine.low %v987, %v994
  %v2543 = vcombine.low %v1001, %v1008
  %v2545 = vunpack.c.l.s4 1983009808
  %v2546 = vunpack.c.0.s8 %v2545
  %v2547 = vlaneseq
  %v2548 = vshrl.u32 %v2547, 7
  %v2549 = vsub.s32 %v2546, %v2548
  %v2550 = vrot.slane %v2542, %v2549
  %v2552 = vunpack.c.l.s4 1983009808
  %v2553 = vunpack.c.0.s8 %v2552
  %v2554 = vlaneseq
  %v2555 = vshrl.u32 %v2554, 7
  %v2556 = vsub.s32 %v2553, %v2555
  %v2557 = vrot.slane %v2543, %v2556
  %v2558 = vcombine.low %v2550, %v2557
  %v2559 = vcombine.low %v1015, %v1022
  %v2560 = vcombine.low %v1029, %v1036
  %v2562 = vunpack.c.l.s4 1983009808
  %v2563 = vunpack.c.0.s8 %v2562
  %v2564 = vlaneseq
  %v2565 = vshrl.u32 %v2564, 7
  %v2566 = vsub.s32 %v2563, %v2565
  %v2567 = vrot.slane %v2559, %v2566
  %v2569 = vunpack.c.l.s4 1983009808
  %v2570 = vunpack.c.0.s8 %v2569
  %v2571 = vlaneseq
  %v2572 = vshrl.u32 %v2571, 7
  %v2573 = vsub.s32 %v2570, %v2572
  %v2574 = vrot.slane %v2560, %v2573
  %v2575 = vcombine.low %v2567, %v2574
  %v2576 = vcombine.low %v1043, %v1050
  %v2577 = vcombine.low %v1057, %v1064
  %v2579 = vunpack.c.l.s4 1983009808
  %v2580 = vunpack.c.0.s8 %v2579
  %v2581 = vlaneseq
  %v2582 = vshrl.u32 %v2581, 7
  %v2583 = vsub.s32 %v2580, %v2582
  %v2584 = vrot.slane %v2576, %v2583
  %v2586 = vunpack.c.l.s4 1983009808
  %v2587 = vunpack.c.0.s8 %v2586
  %v2588 = vlaneseq
  %v2589 = vshrl.u32 %v2588, 7
  %v2590 = vsub.s32 %v2587, %v2589
  %v2591 = vrot.slane %v2577, %v2590
  %v2592 = vcombine.low %v2584, %v2591
  %v2593 = vcombine.low %v1071, %v1078
  %v2594 = vcombine.low %v1085, %v1092
  %v2596 = vunpack.c.l.s4 1983009808
  %v2597 = vunpack.c.0.s8 %v2596
  %v2598 = vlaneseq
  %v2599 = vshrl.u32 %v2598, 7
  %v2600 = vsub.s32 %v2597, %v2599
  %v2601 = vrot.slane %v2593, %v2600
  %v2603 = vunpack.c.l.s4 1983009808
  %v2604 = vunpack.c.0.s8 %v2603
  %v2605 = vlaneseq
  %v2606 = vshrl.u32 %v2605, 7
  %v2607 = vsub.s32 %v2604, %v2606
  %v2608 = vrot.slane %v2594, %v2607
  %v2609 = vcombine.low %v2601, %v2608
  %v2610 = vcombine.low %v1099, %v1106
  %v2611 = vcombine.low %v1113, %v1120
  %v2613 = vunpack.c.l.s4 1983009808
  %v2614 = vunpack.c.0.s8 %v2613
  %v2615 = vlaneseq
  %v2616 = vshrl.u32 %v2615, 7
  %v2617 = vsub.s32 %v2614, %v2616
  %v2618 = vrot.slane %v2610, %v2617
  %v2620 = vunpack.c.l.s4 1983009808
  %v2621 = vunpack.c.0.s8 %v2620
  %v2622 = vlaneseq
  %v2623 = vshrl.u32 %v2622, 7
  %v2624 = vsub.s32 %v2621, %v2623
  %v2625 = vrot.slane %v2611, %v2624
  %v2626 = vcombine.low %v2618, %v2625
  %v2627 = vcombine.low %v1127, %v1134
  %v2628 = vcombine.low %v1141, %v1148
  %v2630 = vunpack.c.l.s4 1983009808
  %v2631 = vunpack.c.0.s8 %v2630
  %v2632 = vlaneseq
  %v2633 = vshrl.u32 %v2632, 7
  %v2634 = vsub.s32 %v2631, %v2633
  %v2635 = vrot.slane %v2627, %v2634
  %v2637 = vunpack.c.l.s4 1983009808
  %v2638 = vunpack.c.0.s8 %v2637
  %v2639 = vlaneseq
  %v2640 = vshrl.u32 %v2639, 7
  %v2641 = vsub.s32 %v2638, %v2640
  %v2642 = vrot.slane %v2628, %v2641
  %v2643 = vcombine.low %v2635, %v2642
  %v2644 = vcombine.low %v1155, %v1162
  %v2645 = vcombine.low %v1169, %v1176
  %v2647 = vunpack.c.l.s4 1983009808
  %v2648 = vunpack.c.0.s8 %v2647
  %v2649 = vlaneseq
  %v2650 = vshrl.u32 %v2649, 7
  %v2651 = vsub.s32 %v2648, %v2650
  %v2652 = vrot.slane %v2644, %v2651
  %v2654 = vunpack.c.l.s4 1983009808
  %v2655 = vunpack.c.0.s8 %v2654
  %v2656 = vlaneseq
  %v2657 = vshrl.u32 %v2656, 7
  %v2658 = vsub.s32 %v2655, %v2657
  %v2659 = vrot.slane %v2645, %v2658
  %v2660 = vcombine.low %v2652, %v2659
  %v2661 = vcombine.low %v1183, %v1190
  %v2662 = vcombine.low %v1197, %v1204
  %v2664 = vunpack.c.l.s4 1983009808
  %v2665 = vunpack.c.0.s8 %v2664
  %v2666 = vlaneseq
  %v2667 = vshrl.u32 %v2666, 7
  %v2668 = vsub.s32 %v2665, %v2667
  %v2669 = vrot.slane %v2661, %v2668
  %v2671 = vunpack.c.l.s4 1983009808
  %v2672 = vunpack.c.0.s8 %v2671
  %v2673 = vlaneseq
  %v2674 = vshrl.u32 %v2673, 7
  %v2675 = vsub.s32 %v2672, %v2674
  %v2676 = vrot.slane %v2662, %v2675
  %v2677 = vcombine.low %v2669, %v2676
  %v2678 = vcombine.low %v1211, %v1218
  %v2679 = vcombine.low %v1225, %v1232
  %v2681 = vunpack.c.l.s4 1983009808
  %v2682 = vunpack.c.0.s8 %v2681
  %v2683 = vlaneseq
  %v2684 = vshrl.u32 %v2683, 7
  %v2685 = vsub.s32 %v2682, %v2684
  %v2686 = vrot.slane %v2678, %v2685
  %v2688 = vunpack.c.l.s4 1983009808
  %v2689 = vunpack.c.0.s8 %v2688
  %v2690 = vlaneseq
  %v2691 = vshrl.u32 %v2690, 7
  %v2692 = vsub.s32 %v2689, %v2691
  %v2693 = vrot.slane %v2679, %v2692
  %v2694 = vcombine.low %v2686, %v2693
  %v2695 = vcombine.low %v1239, %v1246
  %v2696 = vcombine.low %v1253, %v1260
  %v2698 = vunpack.c.l.s4 1983009808
  %v2699 = vunpack.c.0.s8 %v2698
  %v2700 = vlaneseq
  %v2701 = vshrl.u32 %v2700, 7
  %v2702 = vsub.s32 %v2699, %v2701
  %v2703 = vrot.slane %v2695, %v2702
  %v2705 = vunpack.c.l.s4 1983009808
  %v2706 = vunpack.c.0.s8 %v2705
  %v2707 = vlaneseq
  %v2708 = vshrl.u32 %v2707, 7
  %v2709 = vsub.s32 %v2706, %v2708
  %v2710 = vrot.slane %v2696, %v2709
  %v2711 = vcombine.low %v2703, %v2710
  %v2712 = vcombine.low %v1267, %v1274
  %v2713 = vcombine.low %v1281, %v1288
  %v2715 = vunpack.c.l.s4 1983009808
  %v2716 = vunpack.c.0.s8 %v2715
  %v2717 = vlaneseq
  %v2718 = vshrl.u32 %v2717, 7
  %v2719 = vsub.s32 %v2716, %v2718
  %v2720 = vrot.slane %v2712, %v2719
  %v2722 = vunpack.c.l.s4 1983009808
  %v2723 = vunpack.c.0.s8 %v2722
  %v2724 = vlaneseq
  %v2725 = vshrl.u32 %v2724, 7
  %v2726 = vsub.s32 %v2723, %v2725
  %v2727 = vrot.slane %v2713, %v2726
  %v2728 = vcombine.low %v2720, %v2727
  %v2729 = vcombine.low %v1295, %v1302
  %v2730 = vcombine.low %v1309, %v1316
  %v2732 = vunpack.c.l.s4 1983009808
  %v2733 = vunpack.c.0.s8 %v2732
  %v2734 = vlaneseq
  %v2735 = vshrl.u32 %v2734, 7
  %v2736 = vsub.s32 %v2733, %v2735
  %v2737 = vrot.slane %v2729, %v2736
  %v2739 = vunpack.c.l.s4 1983009808
  %v2740 = vunpack.c.0.s8 %v2739
  %v2741 = vlaneseq
  %v2742 = vshrl.u32 %v2741, 7
  %v2743 = vsub.s32 %v2740, %v2742
  %v2744 = vrot.slane %v2730, %v2743
  %v2745 = vcombine.low %v2737, %v2744
  %v2746 = vcombine.low %v1323, %v1330
  %v2747 = vcombine.low %v1337, %v1344
  %v2749 = vunpack.c.l.s4 1983009808
  %v2750 = vunpack.c.0.s8 %v2749
  %v2751 = vlaneseq
  %v2752 = vshrl.u32 %v2751, 7
  %v2753 = vsub.s32 %v2750, %v2752
  %v2754 = vrot.slane %v2746, %v2753
  %v2756 = vunpack.c.l.s4 1983009808
  %v2757 = vunpack.c.0.s8 %v2756
  %v2758 = vlaneseq
  %v2759 = vshrl.u32 %v2758, 7
  %v2760 = vsub.s32 %v2757, %v2759
  %v2761 = vrot.slane %v2747, %v2760
  %v2762 = vcombine.low %v2754, %v2761
  %v2763 = vcombine.low %v1351, %v1358
  %v2764 = vcombine.low %v1365, %v1372
  %v2766 = vunpack.c.l.s4 1983009808
  %v2767 = vunpack.c.0.s8 %v2766
  %v2768 = vlaneseq
  %v2769 = vshrl.u32 %v2768, 7
  %v2770 = vsub.s32 %v2767, %v2769
  %v2771 = vrot.slane %v2763, %v2770
  %v2773 = vunpack.c.l.s4 1983009808
  %v2774 = vunpack.c.0.s8 %v2773
  %v2775 = vlaneseq
  %v2776 = vshrl.u32 %v2775, 7
  %v2777 = vsub.s32 %v2774, %v2776
  %v2778 = vrot.slane %v2764, %v2777
  %v2779 = vcombine.low %v2771, %v2778
  %v2780 = vcombine.low %v1379, %v1386
  %v2781 = vcombine.low %v1393, %v1400
  %v2783 = vunpack.c.l.s4 1983009808
  %v2784 = vunpack.c.0.s8 %v2783
  %v2785 = vlaneseq
  %v2786 = vshrl.u32 %v2785, 7
  %v2787 = vsub.s32 %v2784, %v2786
  %v2788 = vrot.slane %v2780, %v2787
  %v2790 = vunpack.c.l.s4 1983009808
  %v2791 = vunpack.c.0.s8 %v2790
  %v2792 = vlaneseq
  %v2793 = vshrl.u32 %v2792, 7
  %v2794 = vsub.s32 %v2791, %v2793
  %v2795 = vrot.slane %v2781, %v2794
  %v2796 = vcombine.low %v2788, %v2795
  %v2797 = vcombine.low %v1407, %v1414
  %v2798 = vcombine.low %v1421, %v1428
  %v2800 = vunpack.c.l.s4 1983009808
  %v2801 = vunpack.c.0.s8 %v2800
  %v2802 = vlaneseq
  %v2803 = vshrl.u32 %v2802, 7
  %v2804 = vsub.s32 %v2801, %v2803
  %v2805 = vrot.slane %v2797, %v2804
  %v2807 = vunpack.c.l.s4 1983009808
  %v2808 = vunpack.c.0.s8 %v2807
  %v2809 = vlaneseq
  %v2810 = vshrl.u32 %v2809, 7
  %v2811 = vsub.s32 %v2808, %v2810
  %v2812 = vrot.slane %v2798, %v2811
  %v2813 = vcombine.low %v2805, %v2812
  %v2814 = vcombine.low %v1435, %v1442
  %v2815 = vcombine.low %v1449, %v1456
  %v2817 = vunpack.c.l.s4 1983009808
  %v2818 = vunpack.c.0.s8 %v2817
  %v2819 = vlaneseq
  %v2820 = vshrl.u32 %v2819, 7
  %v2821 = vsub.s32 %v2818, %v2820
  %v2822 = vrot.slane %v2814, %v2821
  %v2824 = vunpack.c.l.s4 1983009808
  %v2825 = vunpack.c.0.s8 %v2824
  %v2826 = vlaneseq
  %v2827 = vshrl.u32 %v2826, 7
  %v2828 = vsub.s32 %v2825, %v2827
  %v2829 = vrot.slane %v2815, %v2828
  %v2830 = vcombine.low %v2822, %v2829
  %v2831 = vcombine.low %v1463, %v1470
  %v2832 = vcombine.low %v1477, %v1484
  %v2834 = vunpack.c.l.s4 1983009808
  %v2835 = vunpack.c.0.s8 %v2834
  %v2836 = vlaneseq
  %v2837 = vshrl.u32 %v2836, 7
  %v2838 = vsub.s32 %v2835, %v2837
  %v2839 = vrot.slane %v2831, %v2838
  %v2841 = vunpack.c.l.s4 1983009808
  %v2842 = vunpack.c.0.s8 %v2841
  %v2843 = vlaneseq
  %v2844 = vshrl.u32 %v2843, 7
  %v2845 = vsub.s32 %v2842, %v2844
  %v2846 = vrot.slane %v2832, %v2845
  %v2847 = vcombine.low %v2839, %v2846
  %v2848 = vcombine.low %v1491, %v1498
  %v2849 = vcombine.low %v1505, %v1512
  %v2851 = vunpack.c.l.s4 1983009808
  %v2852 = vunpack.c.0.s8 %v2851
  %v2853 = vlaneseq
  %v2854 = vshrl.u32 %v2853, 7
  %v2855 = vsub.s32 %v2852, %v2854
  %v2856 = vrot.slane %v2848, %v2855
  %v2858 = vunpack.c.l.s4 1983009808
  %v2859 = vunpack.c.0.s8 %v2858
  %v2860 = vlaneseq
  %v2861 = vshrl.u32 %v2860, 7
  %v2862 = vsub.s32 %v2859, %v2861
  %v2863 = vrot.slane %v2849, %v2862
  %v2864 = vcombine.low %v2856, %v2863
  %v2865 = vcombine.low %v1519, %v1526
  %v2866 = vcombine.low %v1533, %v1540
  %v2868 = vunpack.c.l.s4 1983009808
  %v2869 = vunpack.c.0.s8 %v2868
  %v2870 = vlaneseq
  %v2871 = vshrl.u32 %v2870, 7
  %v2872 = vsub.s32 %v2869, %v2871
  %v2873 = vrot.slane %v2865, %v2872
  %v2875 = vunpack.c.l.s4 1983009808
  %v2876 = vunpack.c.0.s8 %v2875
  %v2877 = vlaneseq
  %v2878 = vshrl.u32 %v2877, 7
  %v2879 = vsub.s32 %v2876, %v2878
  %v2880 = vrot.slane %v2866, %v2879
  %v2881 = vcombine.low %v2873, %v2880
  %v2882 = vcombine.low %v1547, %v1554
  %v2883 = vcombine.low %v1561, %v1568
  %v2885 = vunpack.c.l.s4 1983009808
  %v2886 = vunpack.c.0.s8 %v2885
  %v2887 = vlaneseq
  %v2888 = vshrl.u32 %v2887, 7
  %v2889 = vsub.s32 %v2886, %v2888
  %v2890 = vrot.slane %v2882, %v2889
  %v2892 = vunpack.c.l.s4 1983009808
  %v2893 = vunpack.c.0.s8 %v2892
  %v2894 = vlaneseq
  %v2895 = vshrl.u32 %v2894, 7
  %v2896 = vsub.s32 %v2893, %v2895
  %v2897 = vrot.slane %v2883, %v2896
  %v2898 = vcombine.low %v2890, %v2897
  %v2899 = vcombine.low %v1575, %v1582
  %v2900 = vcombine.low %v1589, %v1596
  %v2902 = vunpack.c.l.s4 1983009808
  %v2903 = vunpack.c.0.s8 %v2902
  %v2904 = vlaneseq
  %v2905 = vshrl.u32 %v2904, 7
  %v2906 = vsub.s32 %v2903, %v2905
  %v2907 = vrot.slane %v2899, %v2906
  %v2909 = vunpack.c.l.s4 1983009808
  %v2910 = vunpack.c.0.s8 %v2909
  %v2911 = vlaneseq
  %v2912 = vshrl.u32 %v2911, 7
  %v2913 = vsub.s32 %v2910, %v2912
  %v2914 = vrot.slane %v2900, %v2913
  %v2915 = vcombine.low %v2907, %v2914
  %v2916 = vcombine.low %v1603, %v1610
  %v2917 = vcombine.low %v1617, %v1624
  %v2919 = vunpack.c.l.s4 1983009808
  %v2920 = vunpack.c.0.s8 %v2919
  %v2921 = vlaneseq
  %v2922 = vshrl.u32 %v2921, 7
  %v2923 = vsub.s32 %v2920, %v2922
  %v2924 = vrot.slane %v2916, %v2923
  %v2926 = vunpack.c.l.s4 1983009808
  %v2927 = vunpack.c.0.s8 %v2926
  %v2928 = vlaneseq
  %v2929 = vshrl.u32 %v2928, 7
  %v2930 = vsub.s32 %v2927, %v2929
  %v2931 = vrot.slane %v2917, %v2930
  %v2932 = vcombine.low %v2924, %v2931
  %v2933 = vcombine.low %v1631, %v1638
  %v2934 = vcombine.low %v1645, %v1652
  %v2936 = vunpack.c.l.s4 1983009808
  %v2937 = vunpack.c.0.s8 %v2936
  %v2938 = vlaneseq
  %v2939 = vshrl.u32 %v2938, 7
  %v2940 = vsub.s32 %v2937, %v2939
  %v2941 = vrot.slane %v2933, %v2940
  %v2943 = vunpack.c.l.s4 1983009808
  %v2944 = vunpack.c.0.s8 %v2943
  %v2945 = vlaneseq
  %v2946 = vshrl.u32 %v2945, 7
  %v2947 = vsub.s32 %v2944, %v2946
  %v2948 = vrot.slane %v2934, %v2947
  %v2949 = vcombine.low %v2941, %v2948
  %v2950 = vcombine.low %v1659, %v1666
  %v2951 = vcombine.low %v1673, %v1680
  %v2953 = vunpack.c.l.s4 1983009808
  %v2954 = vunpack.c.0.s8 %v2953
  %v2955 = vlaneseq
  %v2956 = vshrl.u32 %v2955, 7
  %v2957 = vsub.s32 %v2954, %v2956
  %v2958 = vrot.slane %v2950, %v2957
  %v2960 = vunpack.c.l.s4 1983009808
  %v2961 = vunpack.c.0.s8 %v2960
  %v2962 = vlaneseq
  %v2963 = vshrl.u32 %v2962, 7
  %v2964 = vsub.s32 %v2961, %v2963
  %v2965 = vrot.slane %v2951, %v2964
  %v2966 = vcombine.low %v2958, %v2965
  %v2967 = vcombine.low %v1687, %v1694
  %v2968 = vcombine.low %v1701, %v1708
  %v2970 = vunpack.c.l.s4 1983009808
  %v2971 = vunpack.c.0.s8 %v2970
  %v2972 = vlaneseq
  %v2973 = vshrl.u32 %v2972, 7
  %v2974 = vsub.s32 %v2971, %v2973
  %v2975 = vrot.slane %v2967, %v2974
  %v2977 = vunpack.c.l.s4 1983009808
  %v2978 = vunpack.c.0.s8 %v2977
  %v2979 = vlaneseq
  %v2980 = vshrl.u32 %v2979, 7
  %v2981 = vsub.s32 %v2978, %v2980
  %v2982 = vrot.slane %v2968, %v2981
  %v2983 = vcombine.low %v2975, %v2982
  %v2984 = vcombine.low %v1715, %v1722
  %v2985 = vcombine.low %v1729, %v1736
  %v2987 = vunpack.c.l.s4 1983009808
  %v2988 = vunpack.c.0.s8 %v2987
  %v2989 = vlaneseq
  %v2990 = vshrl.u32 %v2989, 7
  %v2991 = vsub.s32 %v2988, %v2990
  %v2992 = vrot.slane %v2984, %v2991
  %v2994 = vunpack.c.l.s4 1983009808
  %v2995 = vunpack.c.0.s8 %v2994
  %v2996 = vlaneseq
  %v2997 = vshrl.u32 %v2996, 7
  %v2998 = vsub.s32 %v2995, %v2997
  %v2999 = vrot.slane %v2985, %v2998
  %v3000 = vcombine.low %v2992, %v2999
  %v3001 = vcombine.low %v1743, %v1750
  %v3002 = vcombine.low %v1757, %v1764
  %v3004 = vunpack.c.l.s4 1983009808
  %v3005 = vunpack.c.0.s8 %v3004
  %v3006 = vlaneseq
  %v3007 = vshrl.u32 %v3006, 7
  %v3008 = vsub.s32 %v3005, %v3007
  %v3009 = vrot.slane %v3001, %v3008
  %v3011 = vunpack.c.l.s4 1983009808
  %v3012 = vunpack.c.0.s8 %v3011
  %v3013 = vlaneseq
  %v3014 = vshrl.u32 %v3013, 7
  %v3015 = vsub.s32 %v3012, %v3014
  %v3016 = vrot.slane %v3002, %v3015
  %v3017 = vcombine.low %v3009, %v3016
  %v3018 = vcombine.low %v1771, %v1778
  %v3019 = vcombine.low %v1785, %v1792
  %v3021 = vunpack.c.l.s4 1983009808
  %v3022 = vunpack.c.0.s8 %v3021
  %v3023 = vlaneseq
  %v3024 = vshrl.u32 %v3023, 7
  %v3025 = vsub.s32 %v3022, %v3024
  %v3026 = vrot.slane %v3018, %v3025
  %v3028 = vunpack.c.l.s4 1983009808
  %v3029 = vunpack.c.0.s8 %v3028
  %v3030 = vlaneseq
  %v3031 = vshrl.u32 %v3030, 7
  %v3032 = vsub.s32 %v3029, %v3031
  %v3033 = vrot.slane %v3019, %v3032
  %v3034 = vcombine.low %v3026, %v3033
  %v3035 = vcombine.low %v1799, %v1806
  %v3036 = vcombine.low %v1813, %v1820
  %v3038 = vunpack.c.l.s4 1983009808
  %v3039 = vunpack.c.0.s8 %v3038
  %v3040 = vlaneseq
  %v3041 = vshrl.u32 %v3040, 7
  %v3042 = vsub.s32 %v3039, %v3041
  %v3043 = vrot.slane %v3035, %v3042
  %v3045 = vunpack.c.l.s4 1983009808
  %v3046 = vunpack.c.0.s8 %v3045
  %v3047 = vlaneseq
  %v3048 = vshrl.u32 %v3047, 7
  %v3049 = vsub.s32 %v3046, %v3048
  %v3050 = vrot.slane %v3036, %v3049
  %v3051 = vcombine.low %v3043, %v3050
  %v3052 = vcombine.low %v1827, %v1834
  %v3053 = vcombine.low %v1841, %v1848
  %v3055 = vunpack.c.l.s4 1983009808
  %v3056 = vunpack.c.0.s8 %v3055
  %v3057 = vlaneseq
  %v3058 = vshrl.u32 %v3057, 7
  %v3059 = vsub.s32 %v3056, %v3058
  %v3060 = vrot.slane %v3052, %v3059
  %v3062 = vunpack.c.l.s4 1983009808
  %v3063 = vunpack.c.0.s8 %v3062
  %v3064 = vlaneseq
  %v3065 = vshrl.u32 %v3064, 7
  %v3066 = vsub.s32 %v3063, %v3065
  %v3067 = vrot.slane %v3053, %v3066
  %v3068 = vcombine.low %v3060, %v3067
  %v3069 = vcombine.low %v1855, %v1862
  %v3070 = vcombine.low %v1869, %v1876
  %v3072 = vunpack.c.l.s4 1983009808
  %v3073 = vunpack.c.0.s8 %v3072
  %v3074 = vlaneseq
  %v3075 = vshrl.u32 %v3074, 7
  %v3076 = vsub.s32 %v3073, %v3075
  %v3077 = vrot.slane %v3069, %v3076
  %v3079 = vunpack.c.l.s4 1983009808
  %v3080 = vunpack.c.0.s8 %v3079
  %v3081 = vlaneseq
  %v3082 = vshrl.u32 %v3081, 7
  %v3083 = vsub.s32 %v3080, %v3082
  %v3084 = vrot.slane %v3070, %v3083
  %v3085 = vcombine.low %v3077, %v3084
  %v3086 = vcombine.low %v1883, %v1890
  %v3087 = vcombine.low %v1897, %v1904
  %v3089 = vunpack.c.l.s4 1983009808
  %v3090 = vunpack.c.0.s8 %v3089
  %v3091 = vlaneseq
  %v3092 = vshrl.u32 %v3091, 7
  %v3093 = vsub.s32 %v3090, %v3092
  %v3094 = vrot.slane %v3086, %v3093
  %v3096 = vunpack.c.l.s4 1983009808
  %v3097 = vunpack.c.0.s8 %v3096
  %v3098 = vlaneseq
  %v3099 = vshrl.u32 %v3098, 7
  %v3100 = vsub.s32 %v3097, %v3099
  %v3101 = vrot.slane %v3087, %v3100
  %v3102 = vcombine.low %v3094, %v3101
  %v3103 = vcombine.low %v1911, %v1918
  %v3104 = vcombine.low %v1925, %v1932
  %v3106 = vunpack.c.l.s4 1983009808
  %v3107 = vunpack.c.0.s8 %v3106
  %v3108 = vlaneseq
  %v3109 = vshrl.u32 %v3108, 7
  %v3110 = vsub.s32 %v3107, %v3109
  %v3111 = vrot.slane %v3103, %v3110
  %v3113 = vunpack.c.l.s4 1983009808
  %v3114 = vunpack.c.0.s8 %v3113
  %v3115 = vlaneseq
  %v3116 = vshrl.u32 %v3115, 7
  %v3117 = vsub.s32 %v3114, %v3116
  %v3118 = vrot.slane %v3104, %v3117
  %v3119 = vcombine.low %v3111, %v3118
  %v3120 = vcombine.low %v1939, %v1946
  %v3121 = vcombine.low %v1953, %v1960
  %v3123 = vunpack.c.l.s4 1983009808
  %v3124 = vunpack.c.0.s8 %v3123
  %v3125 = vlaneseq
  %v3126 = vshrl.u32 %v3125, 7
  %v3127 = vsub.s32 %v3124, %v3126
  %v3128 = vrot.slane %v3120, %v3127
  %v3130 = vunpack.c.l.s4 1983009808
  %v3131 = vunpack.c.0.s8 %v3130
  %v3132 = vlaneseq
  %v3133 = vshrl.u32 %v3132, 7
  %v3134 = vsub.s32 %v3131, %v3133
  %v3135 = vrot.slane %v3121, %v3134
  %v3136 = vcombine.low %v3128, %v3135
  %v3137 = vcombine.low %v1967, %v1974
  %v3138 = vcombine.low %v1981, %v1988
  %v3140 = vunpack.c.l.s4 1983009808
  %v3141 = vunpack.c.0.s8 %v3140
  %v3142 = vlaneseq
  %v3143 = vshrl.u32 %v3142, 7
  %v3144 = vsub.s32 %v3141, %v3143
  %v3145 = vrot.slane %v3137, %v3144
  %v3147 = vunpack.c.l.s4 1983009808
  %v3148 = vunpack.c.0.s8 %v3147
  %v3149 = vlaneseq
  %v3150 = vshrl.u32 %v3149, 7
  %v3151 = vsub.s32 %v3148, %v3150
  %v3152 = vrot.slane %v3138, %v3151
  %v3153 = vcombine.low %v3145, %v3152
  %v3154 = vcombine.low %v1995, %v2002
  %v3155 = vcombine.low %v2009, %v2016
  %v3157 = vunpack.c.l.s4 1983009808
  %v3158 = vunpack.c.0.s8 %v3157
  %v3159 = vlaneseq
  %v3160 = vshrl.u32 %v3159, 7
  %v3161 = vsub.s32 %v3158, %v3160
  %v3162 = vrot.slane %v3154, %v3161
  %v3164 = vunpack.c.l.s4 1983009808
  %v3165 = vunpack.c.0.s8 %v3164
  %v3166 = vlaneseq
  %v3167 = vshrl.u32 %v3166, 7
  %v3168 = vsub.s32 %v3165, %v3167
  %v3169 = vrot.slane %v3155, %v3168
  %v3170 = vcombine.low %v3162, %v3169
  %v3171 = vcombine.low %v2023, %v2030
  %v3172 = vcombine.low %v2037, %v2044
  %v3174 = vunpack.c.l.s4 1983009808
  %v3175 = vunpack.c.0.s8 %v3174
  %v3176 = vlaneseq
  %v3177 = vshrl.u32 %v3176, 7
  %v3178 = vsub.s32 %v3175, %v3177
  %v3179 = vrot.slane %v3171, %v3178
  %v3181 = vunpack.c.l.s4 1983009808
  %v3182 = vunpack.c.0.s8 %v3181
  %v3183 = vlaneseq
  %v3184 = vshrl.u32 %v3183, 7
  %v3185 = vsub.s32 %v3182, %v3184
  %v3186 = vrot.slane %v3172, %v3185
  %v3187 = vcombine.low %v3179, %v3186
  %v3188 = vcombine.low %v2051, %v2058
  %v3189 = vcombine.low %v2065, %v2072
  %v3191 = vunpack.c.l.s4 1983009808
  %v3192 = vunpack.c.0.s8 %v3191
  %v3193 = vlaneseq
  %v3194 = vshrl.u32 %v3193, 7
  %v3195 = vsub.s32 %v3192, %v3194
  %v3196 = vrot.slane %v3188, %v3195
  %v3198 = vunpack.c.l.s4 1983009808
  %v3199 = vunpack.c.0.s8 %v3198
  %v3200 = vlaneseq
  %v3201 = vshrl.u32 %v3200, 7
  %v3202 = vsub.s32 %v3199, %v3201
  %v3203 = vrot.slane %v3189, %v3202
  %v3204 = vcombine.low %v3196, %v3203
  %v3205 = vcombine.low %v2079, %v2086
  %v3206 = vcombine.low %v2093, %v2100
  %v3208 = vunpack.c.l.s4 1983009808
  %v3209 = vunpack.c.0.s8 %v3208
  %v3210 = vlaneseq
  %v3211 = vshrl.u32 %v3210, 7
  %v3212 = vsub.s32 %v3209, %v3211
  %v3213 = vrot.slane %v3205, %v3212
  %v3215 = vunpack.c.l.s4 1983009808
  %v3216 = vunpack.c.0.s8 %v3215
  %v3217 = vlaneseq
  %v3218 = vshrl.u32 %v3217, 7
  %v3219 = vsub.s32 %v3216, %v3218
  %v3220 = vrot.slane %v3206, %v3219
  %v3221 = vcombine.low %v3213, %v3220
  %v3222 = vcombine.low %v2107, %v2114
  %v3223 = vcombine.low %v2121, %v2128
  %v3225 = vunpack.c.l.s4 1983009808
  %v3226 = vunpack.c.0.s8 %v3225
  %v3227 = vlaneseq
  %v3228 = vshrl.u32 %v3227, 7
  %v3229 = vsub.s32 %v3226, %v3228
  %v3230 = vrot.slane %v3222, %v3229
  %v3232 = vunpack.c.l.s4 1983009808
  %v3233 = vunpack.c.0.s8 %v3232
  %v3234 = vlaneseq
  %v3235 = vshrl.u32 %v3234, 7
  %v3236 = vsub.s32 %v3233, %v3235
  %v3237 = vrot.slane %v3223, %v3236
  %v3238 = vcombine.low %v3230, %v3237
  %v3239 = vcombine.low %v2135, %v2142
  %v3240 = vcombine.low %v2149, %v2156
  %v3242 = vunpack.c.l.s4 1983009808
  %v3243 = vunpack.c.0.s8 %v3242
  %v3244 = vlaneseq
  %v3245 = vshrl.u32 %v3244, 7
  %v3246 = vsub.s32 %v3243, %v3245
  %v3247 = vrot.slane %v3239, %v3246
  %v3249 = vunpack.c.l.s4 1983009808
  %v3250 = vunpack.c.0.s8 %v3249
  %v3251 = vlaneseq
  %v3252 = vshrl.u32 %v3251, 7
  %v3253 = vsub.s32 %v3250, %v3252
  %v3254 = vrot.slane %v3240, %v3253
  %v3255 = vcombine.low %v3247, %v3254
  %v3256 = vcombine.low %v2163, %v2170
  %v3257 = vcombine.low %v2177, %v2184
  %v3259 = vunpack.c.l.s4 1983009808
  %v3260 = vunpack.c.0.s8 %v3259
  %v3261 = vlaneseq
  %v3262 = vshrl.u32 %v3261, 7
  %v3263 = vsub.s32 %v3260, %v3262
  %v3264 = vrot.slane %v3256, %v3263
  %v3266 = vunpack.c.l.s4 1983009808
  %v3267 = vunpack.c.0.s8 %v3266
  %v3268 = vlaneseq
  %v3269 = vshrl.u32 %v3268, 7
  %v3270 = vsub.s32 %v3267, %v3269
  %v3271 = vrot.slane %v3257, %v3270
  %v3272 = vcombine.low %v3264, %v3271
  %3273 = vset.pattern.permute.xlu0 0
  %3274 = vperm.xlu0 %3273, %v2201
  %v3275 = vpop.permute.xlu0 %3274
  %3276 = vset.pattern.permute.xlu0 0
  %3277 = vperm.xlu0 %3276, %v2218
  %v3278 = vpop.permute.xlu0 %3277
  %3279 = vset.pattern.permute.xlu0 0
  %3280 = vperm.xlu0 %3279, %v2235
  %v3281 = vpop.permute.xlu0 %3280
  %3282 = vset.pattern.permute.xlu0 0
  %3283 = vperm.xlu0 %3282, %v2252
  %v3284 = vpop.permute.xlu0 %3283
  %3285 = vset.pattern.permute.xlu0 0
  %3286 = vperm.xlu0 %3285, %v2269
  %v3287 = vpop.permute.xlu0 %3286
  %3288 = vset.pattern.permute.xlu0 0
  %3289 = vperm.xlu0 %3288, %v2286
  %v3290 = vpop.permute.xlu0 %3289
  %3291 = vset.pattern.permute.xlu0 0
  %3292 = vperm.xlu0 %3291, %v2303
  %v3293 = vpop.permute.xlu0 %3292
  %3294 = vset.pattern.permute.xlu0 0
  %3295 = vperm.xlu0 %3294, %v2320
  %v3296 = vpop.permute.xlu0 %3295
  %3297 = vset.pattern.permute.xlu0 0
  %3298 = vperm.xlu0 %3297, %v2337
  %v3299 = vpop.permute.xlu0 %3298
  %3300 = vset.pattern.permute.xlu0 0
  %3301 = vperm.xlu0 %3300, %v2354
  %v3302 = vpop.permute.xlu0 %3301
  %3303 = vset.pattern.permute.xlu0 0
  %3304 = vperm.xlu0 %3303, %v2371
  %v3305 = vpop.permute.xlu0 %3304
  %3306 = vset.pattern.permute.xlu0 0
  %3307 = vperm.xlu0 %3306, %v2388
  %v3308 = vpop.permute.xlu0 %3307
  %3309 = vset.pattern.permute.xlu0 0
  %3310 = vperm.xlu0 %3309, %v2405
  %v3311 = vpop.permute.xlu0 %3310
  %3312 = vset.pattern.permute.xlu0 0
  %3313 = vperm.xlu0 %3312, %v2422
  %v3314 = vpop.permute.xlu0 %3313
  %3315 = vset.pattern.permute.xlu0 0
  %3316 = vperm.xlu0 %3315, %v2439
  %v3317 = vpop.permute.xlu0 %3316
  %3318 = vset.pattern.permute.xlu0 0
  %3319 = vperm.xlu0 %3318, %v2456
  %v3320 = vpop.permute.xlu0 %3319
  %3321 = vset.pattern.permute.xlu0 0
  %3322 = vperm.xlu0 %3321, %v2473
  %v3323 = vpop.permute.xlu0 %3322
  %3324 = vset.pattern.permute.xlu0 0
  %3325 = vperm.xlu0 %3324, %v2490
  %v3326 = vpop.permute.xlu0 %3325
  %3327 = vset.pattern.permute.xlu0 0
  %3328 = vperm.xlu0 %3327, %v2507
  %v3329 = vpop.permute.xlu0 %3328
  %3330 = vset.pattern.permute.xlu0 0
  %3331 = vperm.xlu0 %3330, %v2524
  %v3332 = vpop.permute.xlu0 %3331
  %3333 = vset.pattern.permute.xlu0 0
  %3334 = vperm.xlu0 %3333, %v2541
  %v3335 = vpop.permute.xlu0 %3334
  %3336 = vset.pattern.permute.xlu0 0
  %3337 = vperm.xlu0 %3336, %v2558
  %v3338 = vpop.permute.xlu0 %3337
  %3339 = vset.pattern.permute.xlu0 0
  %3340 = vperm.xlu0 %3339, %v2575
  %v3341 = vpop.permute.xlu0 %3340
  %3342 = vset.pattern.permute.xlu0 0
  %3343 = vperm.xlu0 %3342, %v2592
  %v3344 = vpop.permute.xlu0 %3343
  %3345 = vset.pattern.permute.xlu0 0
  %3346 = vperm.xlu0 %3345, %v2609
  %v3347 = vpop.permute.xlu0 %3346
  %3348 = vset.pattern.permute.xlu0 0
  %3349 = vperm.xlu0 %3348, %v2626
  %v3350 = vpop.permute.xlu0 %3349
  %3351 = vset.pattern.permute.xlu0 0
  %3352 = vperm.xlu0 %3351, %v2643
  %v3353 = vpop.permute.xlu0 %3352
  %3354 = vset.pattern.permute.xlu0 0
  %3355 = vperm.xlu0 %3354, %v2660
  %v3356 = vpop.permute.xlu0 %3355
  %3357 = vset.pattern.permute.xlu0 0
  %3358 = vperm.xlu0 %3357, %v2677
  %v3359 = vpop.permute.xlu0 %3358
  %3360 = vset.pattern.permute.xlu0 0
  %3361 = vperm.xlu0 %3360, %v2694
  %v3362 = vpop.permute.xlu0 %3361
  %3363 = vset.pattern.permute.xlu0 0
  %3364 = vperm.xlu0 %3363, %v2711
  %v3365 = vpop.permute.xlu0 %3364
  %3366 = vset.pattern.permute.xlu0 0
  %3367 = vperm.xlu0 %3366, %v2728
  %v3368 = vpop.permute.xlu0 %3367
  %3369 = vset.pattern.permute.xlu0 0
  %3370 = vperm.xlu0 %3369, %v2745
  %v3371 = vpop.permute.xlu0 %3370
  %3372 = vset.pattern.permute.xlu0 0
  %3373 = vperm.xlu0 %3372, %v2762
  %v3374 = vpop.permute.xlu0 %3373
  %3375 = vset.pattern.permute.xlu0 0
  %3376 = vperm.xlu0 %3375, %v2779
  %v3377 = vpop.permute.xlu0 %3376
  %3378 = vset.pattern.permute.xlu0 0
  %3379 = vperm.xlu0 %3378, %v2796
  %v3380 = vpop.permute.xlu0 %3379
  %3381 = vset.pattern.permute.xlu0 0
  %3382 = vperm.xlu0 %3381, %v2813
  %v3383 = vpop.permute.xlu0 %3382
  %3384 = vset.pattern.permute.xlu0 0
  %3385 = vperm.xlu0 %3384, %v2830
  %v3386 = vpop.permute.xlu0 %3385
  %3387 = vset.pattern.permute.xlu0 0
  %3388 = vperm.xlu0 %3387, %v2847
  %v3389 = vpop.permute.xlu0 %3388
  %3390 = vset.pattern.permute.xlu0 0
  %3391 = vperm.xlu0 %3390, %v2864
  %v3392 = vpop.permute.xlu0 %3391
  %3393 = vset.pattern.permute.xlu0 0
  %3394 = vperm.xlu0 %3393, %v2881
  %v3395 = vpop.permute.xlu0 %3394
  %3396 = vset.pattern.permute.xlu0 0
  %3397 = vperm.xlu0 %3396, %v2898
  %v3398 = vpop.permute.xlu0 %3397
  %3399 = vset.pattern.permute.xlu0 0
  %3400 = vperm.xlu0 %3399, %v2915
  %v3401 = vpop.permute.xlu0 %3400
  %3402 = vset.pattern.permute.xlu0 0
  %3403 = vperm.xlu0 %3402, %v2932
  %v3404 = vpop.permute.xlu0 %3403
  %3405 = vset.pattern.permute.xlu0 0
  %3406 = vperm.xlu0 %3405, %v2949
  %v3407 = vpop.permute.xlu0 %3406
  %3408 = vset.pattern.permute.xlu0 0
  %3409 = vperm.xlu0 %3408, %v2966
  %v3410 = vpop.permute.xlu0 %3409
  %3411 = vset.pattern.permute.xlu0 0
  %3412 = vperm.xlu0 %3411, %v2983
  %v3413 = vpop.permute.xlu0 %3412
  %3414 = vset.pattern.permute.xlu0 0
  %3415 = vperm.xlu0 %3414, %v3000
  %v3416 = vpop.permute.xlu0 %3415
  %3417 = vset.pattern.permute.xlu0 0
  %3418 = vperm.xlu0 %3417, %v3017
  %v3419 = vpop.permute.xlu0 %3418
  %3420 = vset.pattern.permute.xlu0 0
  %3421 = vperm.xlu0 %3420, %v3034
  %v3422 = vpop.permute.xlu0 %3421
  %3423 = vset.pattern.permute.xlu0 0
  %3424 = vperm.xlu0 %3423, %v3051
  %v3425 = vpop.permute.xlu0 %3424
  %3426 = vset.pattern.permute.xlu0 0
  %3427 = vperm.xlu0 %3426, %v3068
  %v3428 = vpop.permute.xlu0 %3427
  %3429 = vset.pattern.permute.xlu0 0
  %3430 = vperm.xlu0 %3429, %v3085
  %v3431 = vpop.permute.xlu0 %3430
  %3432 = vset.pattern.permute.xlu0 0
  %3433 = vperm.xlu0 %3432, %v3102
  %v3434 = vpop.permute.xlu0 %3433
  %3435 = vset.pattern.permute.xlu0 0
  %3436 = vperm.xlu0 %3435, %v3119
  %v3437 = vpop.permute.xlu0 %3436
  %3438 = vset.pattern.permute.xlu0 0
  %3439 = vperm.xlu0 %3438, %v3136
  %v3440 = vpop.permute.xlu0 %3439
  %3441 = vset.pattern.permute.xlu0 0
  %3442 = vperm.xlu0 %3441, %v3153
  %v3443 = vpop.permute.xlu0 %3442
  %3444 = vset.pattern.permute.xlu0 0
  %3445 = vperm.xlu0 %3444, %v3170
  %v3446 = vpop.permute.xlu0 %3445
  %3447 = vset.pattern.permute.xlu0 0
  %3448 = vperm.xlu0 %3447, %v3187
  %v3449 = vpop.permute.xlu0 %3448
  %3450 = vset.pattern.permute.xlu0 0
  %3451 = vperm.xlu0 %3450, %v3204
  %v3452 = vpop.permute.xlu0 %3451
  %3453 = vset.pattern.permute.xlu0 0
  %3454 = vperm.xlu0 %3453, %v3221
  %v3455 = vpop.permute.xlu0 %3454
  %3456 = vset.pattern.permute.xlu0 0
  %3457 = vperm.xlu0 %3456, %v3238
  %v3458 = vpop.permute.xlu0 %3457
  %3459 = vset.pattern.permute.xlu0 0
  %3460 = vperm.xlu0 %3459, %v3255
  %v3461 = vpop.permute.xlu0 %3460
  %3462 = vset.pattern.permute.xlu0 0
  %3463 = vperm.xlu0 %3462, %v3272
  %v3464 = vpop.permute.xlu0 %3463
  %v3465 = vlaneseq
  %v3466 = vand.u32 %v3465, 127
  %v3467 = vlaneseq
  %v3468 = vshrl.u32 %v3467, 7
  %v3469 = vsub.s32 %v3466, %v3468
  %v3470 = vrot.slane %v3275, %v3469
  %v3471 = vadd.s32 %v3466, 4294967288
  %v3472 = vlaneseq
  %v3473 = vshrl.u32 %v3472, 7
  %v3474 = vsub.s32 %v3471, %v3473
  %v3475 = vrot.slane %v3278, %v3474
  %vm3476 = vcmask 130112
  %v3477 = vsel %vm3476, %v3475, %v3470
  %v3478 = vadd.s32 %v3466, 4294967280
  %v3479 = vlaneseq
  %v3480 = vshrl.u32 %v3479, 7
  %v3481 = vsub.s32 %v3478, %v3480
  %v3482 = vrot.slane %v3281, %v3481
  %vm3483 = vcmask 195712
  %v3484 = vsel %vm3483, %v3482, %v3477
  %v3485 = vadd.s32 %v3466, 4294967272
  %v3486 = vlaneseq
  %v3487 = vshrl.u32 %v3486, 7
  %v3488 = vsub.s32 %v3485, %v3487
  %v3489 = vrot.slane %v3284, %v3488
  %vm3490 = vcmask 261312
  %v3491 = vsel %vm3490, %v3489, %v3484
  %v3492 = vadd.s32 %v3466, 4294967264
  %v3493 = vlaneseq
  %v3494 = vshrl.u32 %v3493, 7
  %v3495 = vsub.s32 %v3492, %v3494
  %v3496 = vrot.slane %v3287, %v3495
  %vm3497 = vcmask 326912
  %v3498 = vsel %vm3497, %v3496, %v3491
  %v3499 = vadd.s32 %v3466, 4294967256
  %v3500 = vlaneseq
  %v3501 = vshrl.u32 %v3500, 7
  %v3502 = vsub.s32 %v3499, %v3501
  %v3503 = vrot.slane %v3290, %v3502
  %vm3504 = vcmask 392512
  %v3505 = vsel %vm3504, %v3503, %v3498
  %v3506 = vadd.s32 %v3466, 4294967248
  %v3507 = vlaneseq
  %v3508 = vshrl.u32 %v3507, 7
  %v3509 = vsub.s32 %v3506, %v3508
  %v3510 = vrot.slane %v3293, %v3509
  %vm3511 = vcmask 458112
  %v3512 = vsel %vm3511, %v3510, %v3505
  %v3513 = vadd.s32 %v3466, 4294967240
  %v3514 = vlaneseq
  %v3515 = vshrl.u32 %v3514, 7
  %v3516 = vsub.s32 %v3513, %v3515
  %v3517 = vrot.slane %v3296, %v3516
  %vm3518 = vcmask 523712
  %v3519 = vsel %vm3518, %v3517, %v3512
  %v3520 = vadd.s32 %v3466, 4294967232
  %v3521 = vlaneseq
  %v3522 = vshrl.u32 %v3521, 7
  %v3523 = vsub.s32 %v3520, %v3522
  %v3524 = vrot.slane %v3299, %v3523
  %vm3525 = vcmask 589312
  %v3526 = vsel %vm3525, %v3524, %v3519
  %v3527 = vadd.s32 %v3466, 4294967224
  %v3528 = vlaneseq
  %v3529 = vshrl.u32 %v3528, 7
  %v3530 = vsub.s32 %v3527, %v3529
  %v3531 = vrot.slane %v3302, %v3530
  %vm3532 = vcmask 654912
  %v3533 = vsel %vm3532, %v3531, %v3526
  %v3534 = vadd.s32 %v3466, 4294967216
  %v3535 = vlaneseq
  %v3536 = vshrl.u32 %v3535, 7
  %v3537 = vsub.s32 %v3534, %v3536
  %v3538 = vrot.slane %v3305, %v3537
  %vm3539 = vcmask 720512
  %v3540 = vsel %vm3539, %v3538, %v3533
  %v3541 = vadd.s32 %v3466, 4294967208
  %v3542 = vlaneseq
  %v3543 = vshrl.u32 %v3542, 7
  %v3544 = vsub.s32 %v3541, %v3543
  %v3545 = vrot.slane %v3308, %v3544
  %vm3546 = vcmask 786112
  %v3547 = vsel %vm3546, %v3545, %v3540
  %v3548 = vadd.s32 %v3466, 4294967200
  %v3549 = vlaneseq
  %v3550 = vshrl.u32 %v3549, 7
  %v3551 = vsub.s32 %v3548, %v3550
  %v3552 = vrot.slane %v3311, %v3551
  %vm3553 = vcmask 851712
  %v3554 = vsel %vm3553, %v3552, %v3547
  %v3555 = vadd.s32 %v3466, 4294967192
  %v3556 = vlaneseq
  %v3557 = vshrl.u32 %v3556, 7
  %v3558 = vsub.s32 %v3555, %v3557
  %v3559 = vrot.slane %v3314, %v3558
  %vm3560 = vcmask 917312
  %v3561 = vsel %vm3560, %v3559, %v3554
  %v3562 = vadd.s32 %v3466, 4294967184
  %v3563 = vlaneseq
  %v3564 = vshrl.u32 %v3563, 7
  %v3565 = vsub.s32 %v3562, %v3564
  %v3566 = vrot.slane %v3317, %v3565
  %vm3567 = vcmask 982912
  %v3568 = vsel %vm3567, %v3566, %v3561
  %v3569 = vadd.s32 %v3466, 4294967176
  %v3570 = vlaneseq
  %v3571 = vshrl.u32 %v3570, 7
  %v3572 = vsub.s32 %v3569, %v3571
  %v3573 = vrot.slane %v3320, %v3572
  %vm3574 = vcmask 1048512
  %v3575 = vsel %vm3574, %v3573, %v3568
  %v3576 = vlaneseq
  %v3577 = vshrl.u32 %v3576, 7
  %v3578 = vsub.s32 %v3466, %v3577
  %v3579 = vrot.slane %v3323, %v3578
  %v3580 = vlaneseq
  %v3581 = vshrl.u32 %v3580, 7
  %v3582 = vsub.s32 %v3471, %v3581
  %v3583 = vrot.slane %v3326, %v3582
  %v3584 = vsel %vm3476, %v3583, %v3579
  %v3585 = vlaneseq
  %v3586 = vshrl.u32 %v3585, 7
  %v3587 = vsub.s32 %v3478, %v3586
  %v3588 = vrot.slane %v3329, %v3587
  %v3589 = vsel %vm3483, %v3588, %v3584
  %v3590 = vlaneseq
  %v3591 = vshrl.u32 %v3590, 7
  %v3592 = vsub.s32 %v3485, %v3591
  %v3593 = vrot.slane %v3332, %v3592
  %v3594 = vsel %vm3490, %v3593, %v3589
  %v3595 = vlaneseq
  %v3596 = vshrl.u32 %v3595, 7
  %v3597 = vsub.s32 %v3492, %v3596
  %v3598 = vrot.slane %v3335, %v3597
  %v3599 = vsel %vm3497, %v3598, %v3594
  %v3600 = vlaneseq
  %v3601 = vshrl.u32 %v3600, 7
  %v3602 = vsub.s32 %v3499, %v3601
  %v3603 = vrot.slane %v3338, %v3602
  %v3604 = vsel %vm3504, %v3603, %v3599
  %v3605 = vlaneseq
  %v3606 = vshrl.u32 %v3605, 7
  %v3607 = vsub.s32 %v3506, %v3606
  %v3608 = vrot.slane %v3341, %v3607
  %v3609 = vsel %vm3511, %v3608, %v3604
  %v3610 = vlaneseq
  %v3611 = vshrl.u32 %v3610, 7
  %v3612 = vsub.s32 %v3513, %v3611
  %v3613 = vrot.slane %v3344, %v3612
  %v3614 = vsel %vm3518, %v3613, %v3609
  %v3615 = vlaneseq
  %v3616 = vshrl.u32 %v3615, 7
  %v3617 = vsub.s32 %v3520, %v3616
  %v3618 = vrot.slane %v3347, %v3617
  %v3619 = vsel %vm3525, %v3618, %v3614
  %v3620 = vlaneseq
  %v3621 = vshrl.u32 %v3620, 7
  %v3622 = vsub.s32 %v3527, %v3621
  %v3623 = vrot.slane %v3350, %v3622
  %v3624 = vsel %vm3532, %v3623, %v3619
  %v3625 = vlaneseq
  %v3626 = vshrl.u32 %v3625, 7
  %v3627 = vsub.s32 %v3534, %v3626
  %v3628 = vrot.slane %v3353, %v3627
  %v3629 = vsel %vm3539, %v3628, %v3624
  %v3630 = vlaneseq
  %v3631 = vshrl.u32 %v3630, 7
  %v3632 = vsub.s32 %v3541, %v3631
  %v3633 = vrot.slane %v3356, %v3632
  %v3634 = vsel %vm3546, %v3633, %v3629
  %v3635 = vlaneseq
  %v3636 = vshrl.u32 %v3635, 7
  %v3637 = vsub.s32 %v3548, %v3636
  %v3638 = vrot.slane %v3359, %v3637
  %v3639 = vsel %vm3553, %v3638, %v3634
  %v3640 = vlaneseq
  %v3641 = vshrl.u32 %v3640, 7
  %v3642 = vsub.s32 %v3555, %v3641
  %v3643 = vrot.slane %v3362, %v3642
  %v3644 = vsel %vm3560, %v3643, %v3639
  %v3645 = vlaneseq
  %v3646 = vshrl.u32 %v3645, 7
  %v3647 = vsub.s32 %v3562, %v3646
  %v3648 = vrot.slane %v3365, %v3647
  %v3649 = vsel %vm3567, %v3648, %v3644
  %v3650 = vlaneseq
  %v3651 = vshrl.u32 %v3650, 7
  %v3652 = vsub.s32 %v3569, %v3651
  %v3653 = vrot.slane %v3368, %v3652
  %v3654 = vsel %vm3574, %v3653, %v3649
  %v3655 = vlaneseq
  %v3656 = vshrl.u32 %v3655, 7
  %v3657 = vsub.s32 %v3466, %v3656
  %v3658 = vrot.slane %v3371, %v3657
  %v3659 = vlaneseq
  %v3660 = vshrl.u32 %v3659, 7
  %v3661 = vsub.s32 %v3471, %v3660
  %v3662 = vrot.slane %v3374, %v3661
  %v3663 = vsel %vm3476, %v3662, %v3658
  %v3664 = vlaneseq
  %v3665 = vshrl.u32 %v3664, 7
  %v3666 = vsub.s32 %v3478, %v3665
  %v3667 = vrot.slane %v3377, %v3666
  %v3668 = vsel %vm3483, %v3667, %v3663
  %v3669 = vlaneseq
  %v3670 = vshrl.u32 %v3669, 7
  %v3671 = vsub.s32 %v3485, %v3670
  %v3672 = vrot.slane %v3380, %v3671
  %v3673 = vsel %vm3490, %v3672, %v3668
  %v3674 = vlaneseq
  %v3675 = vshrl.u32 %v3674, 7
  %v3676 = vsub.s32 %v3492, %v3675
  %v3677 = vrot.slane %v3383, %v3676
  %v3678 = vsel %vm3497, %v3677, %v3673
  %v3679 = vlaneseq
  %v3680 = vshrl.u32 %v3679, 7
  %v3681 = vsub.s32 %v3499, %v3680
  %v3682 = vrot.slane %v3386, %v3681
  %v3683 = vsel %vm3504, %v3682, %v3678
  %v3684 = vlaneseq
  %v3685 = vshrl.u32 %v3684, 7
  %v3686 = vsub.s32 %v3506, %v3685
  %v3687 = vrot.slane %v3389, %v3686
  %v3688 = vsel %vm3511, %v3687, %v3683
  %v3689 = vlaneseq
  %v3690 = vshrl.u32 %v3689, 7
  %v3691 = vsub.s32 %v3513, %v3690
  %v3692 = vrot.slane %v3392, %v3691
  %v3693 = vsel %vm3518, %v3692, %v3688
  %v3694 = vlaneseq
  %v3695 = vshrl.u32 %v3694, 7
  %v3696 = vsub.s32 %v3520, %v3695
  %v3697 = vrot.slane %v3395, %v3696
  %v3698 = vsel %vm3525, %v3697, %v3693
  %v3699 = vlaneseq
  %v3700 = vshrl.u32 %v3699, 7
  %v3701 = vsub.s32 %v3527, %v3700
  %v3702 = vrot.slane %v3398, %v3701
  %v3703 = vsel %vm3532, %v3702, %v3698
  %v3704 = vlaneseq
  %v3705 = vshrl.u32 %v3704, 7
  %v3706 = vsub.s32 %v3534, %v3705
  %v3707 = vrot.slane %v3401, %v3706
  %v3708 = vsel %vm3539, %v3707, %v3703
  %v3709 = vlaneseq
  %v3710 = vshrl.u32 %v3709, 7
  %v3711 = vsub.s32 %v3541, %v3710
  %v3712 = vrot.slane %v3404, %v3711
  %v3713 = vsel %vm3546, %v3712, %v3708
  %v3714 = vlaneseq
  %v3715 = vshrl.u32 %v3714, 7
  %v3716 = vsub.s32 %v3548, %v3715
  %v3717 = vrot.slane %v3407, %v3716
  %v3718 = vsel %vm3553, %v3717, %v3713
  %v3719 = vlaneseq
  %v3720 = vshrl.u32 %v3719, 7
  %v3721 = vsub.s32 %v3555, %v3720
  %v3722 = vrot.slane %v3410, %v3721
  %v3723 = vsel %vm3560, %v3722, %v3718
  %v3724 = vlaneseq
  %v3725 = vshrl.u32 %v3724, 7
  %v3726 = vsub.s32 %v3562, %v3725
  %v3727 = vrot.slane %v3413, %v3726
  %v3728 = vsel %vm3567, %v3727, %v3723
  %v3729 = vlaneseq
  %v3730 = vshrl.u32 %v3729, 7
  %v3731 = vsub.s32 %v3569, %v3730
  %v3732 = vrot.slane %v3416, %v3731
  %v3733 = vsel %vm3574, %v3732, %v3728
  %v3734 = vlaneseq
  %v3735 = vshrl.u32 %v3734, 7
  %v3736 = vsub.s32 %v3466, %v3735
  %v3737 = vrot.slane %v3419, %v3736
  %v3738 = vlaneseq
  %v3739 = vshrl.u32 %v3738, 7
  %v3740 = vsub.s32 %v3471, %v3739
  %v3741 = vrot.slane %v3422, %v3740
  %v3742 = vsel %vm3476, %v3741, %v3737
  %v3743 = vlaneseq
  %v3744 = vshrl.u32 %v3743, 7
  %v3745 = vsub.s32 %v3478, %v3744
  %v3746 = vrot.slane %v3425, %v3745
  %v3747 = vsel %vm3483, %v3746, %v3742
  %v3748 = vlaneseq
  %v3749 = vshrl.u32 %v3748, 7
  %v3750 = vsub.s32 %v3485, %v3749
  %v3751 = vrot.slane %v3428, %v3750
  %v3752 = vsel %vm3490, %v3751, %v3747
  %v3753 = vlaneseq
  %v3754 = vshrl.u32 %v3753, 7
  %v3755 = vsub.s32 %v3492, %v3754
  %v3756 = vrot.slane %v3431, %v3755
  %v3757 = vsel %vm3497, %v3756, %v3752
  %v3758 = vlaneseq
  %v3759 = vshrl.u32 %v3758, 7
  %v3760 = vsub.s32 %v3499, %v3759
  %v3761 = vrot.slane %v3434, %v3760
  %v3762 = vsel %vm3504, %v3761, %v3757
  %v3763 = vlaneseq
  %v3764 = vshrl.u32 %v3763, 7
  %v3765 = vsub.s32 %v3506, %v3764
  %v3766 = vrot.slane %v3437, %v3765
  %v3767 = vsel %vm3511, %v3766, %v3762
  %v3768 = vlaneseq
  %v3769 = vshrl.u32 %v3768, 7
  %v3770 = vsub.s32 %v3513, %v3769
  %v3771 = vrot.slane %v3440, %v3770
  %v3772 = vsel %vm3518, %v3771, %v3767
  %v3773 = vlaneseq
  %v3774 = vshrl.u32 %v3773, 7
  %v3775 = vsub.s32 %v3520, %v3774
  %v3776 = vrot.slane %v3443, %v3775
  %v3777 = vsel %vm3525, %v3776, %v3772
  %v3778 = vlaneseq
  %v3779 = vshrl.u32 %v3778, 7
  %v3780 = vsub.s32 %v3527, %v3779
  %v3781 = vrot.slane %v3446, %v3780
  %v3782 = vsel %vm3532, %v3781, %v3777
  %v3783 = vlaneseq
  %v3784 = vshrl.u32 %v3783, 7
  %v3785 = vsub.s32 %v3534, %v3784
  %v3786 = vrot.slane %v3449, %v3785
  %v3787 = vsel %vm3539, %v3786, %v3782
  %v3788 = vlaneseq
  %v3789 = vshrl.u32 %v3788, 7
  %v3790 = vsub.s32 %v3541, %v3789
  %v3791 = vrot.slane %v3452, %v3790
  %v3792 = vsel %vm3546, %v3791, %v3787
  %v3793 = vlaneseq
  %v3794 = vshrl.u32 %v3793, 7
  %v3795 = vsub.s32 %v3548, %v3794
  %v3796 = vrot.slane %v3455, %v3795
  %v3797 = vsel %vm3553, %v3796, %v3792
  %v3798 = vlaneseq
  %v3799 = vshrl.u32 %v3798, 7
  %v3800 = vsub.s32 %v3555, %v3799
  %v3801 = vrot.slane %v3458, %v3800
  %v3802 = vsel %vm3560, %v3801, %v3797
  %v3803 = vlaneseq
  %v3804 = vshrl.u32 %v3803, 7
  %v3805 = vsub.s32 %v3562, %v3804
  %v3806 = vrot.slane %v3461, %v3805
  %v3807 = vsel %vm3567, %v3806, %v3802
  %v3808 = vlaneseq
  %v3809 = vshrl.u32 %v3808, 7
  %v3810 = vsub.s32 %v3569, %v3809
  %v3811 = vrot.slane %v3464, %v3810
  %v3812 = vsel %vm3574, %v3811, %v3807
  %vm3813 = vcmask 1041409
  %v3814 = vsel %vm3813, %v3733, %v3575
  %v3815 = vsel %vm3813, %v3812, %v3654
  %v3816 = vcombine.low %v3814, %v3815
  %v3818 = vunpack.c.l.s4 1983009808
  %v3819 = vunpack.c.0.s8 %v3818
  %v3820 = vlaneseq
  %v3821 = vshrl.u32 %v3820, 7
  %v3822 = vsub.s32 %v3819, %v3821
  %v3823 = vrot.slane %v3816, %v3822
  %3825 = vst [vmem:[%s1] sm:$0xf] %v3823
  // Predicated region
  $region6: #{backbone_forward.2} parent=0 // pred_check
    _
  $region7: #{backbone_forward.2} parent=0 // pred_check_branch
    %3827 = sbr.rel (0) target = $region9
  $region8: #{backbone_forward.2} parent=0 // pred_region
    _
  $region9: #{backbone_forward.2} parent=0 // pred_fallthru
    _
  // Predicated region
  $region10: #{backbone_forward.2} parent=0 // pred_check
    _
  $region11: #{backbone_forward.2} parent=0 // pred_check_branch
    %3829 = sbr.rel (0) target = $region13
  $region12: #{backbone_forward.2} parent=0 // pred_region
    _
  $region13: #{backbone_forward.2} parent=0 // pred_fallthru
    _

</llo_original>
